<compile_context>
chip_gen: v7x
topology: tpu7x:2x2x1
jax: 0.10.0
libtpu: 0.0.40
codegen_flags: <defaults>
</compile_context>

<pallas_src>
import math

import jax
import jax.numpy as jnp
from jax.experimental import pallas as pl
from jax.experimental.pallas import tpu as pltpu

# ----------------------------- static config ------------------------------
B = 2
T = 16
H = 32               # hidden_size
C_COND = 16
C_OUT = 16
KS = 3               # kernel_size of residual convs
POST_KS = 3          # post_net_kernel
DILATIONS = (1, 2)
LAYERS_IN_BLOCK = 2
C_MULTIPLE = 2
LN_EPS = 1e-5
L = len(DILATIONS) * LAYERS_IN_BLOCK    # stacked LN->conv->gelu->conv sub-blocks

BT = B * T
MAX_OFF = max(max(DILATIONS) * (KS - 1) // 2, POST_KS // 2)   # largest |time shift| = 2
N_OFF = 2 * MAX_OFF + 1

# rows of the packed f32 "misc" table (all LN params + all biases in one operand)
ROW_LN = 0            # rows [0, L)   : lng | lnb        (lanes [:H] | [H:2H])
ROW_B1 = L            # rows [L, 2L)  : b1               (full 2H lanes)
ROW_B2 = 2 * L        # rows [2L, 3L) : b2               (lanes [:H])
ROW_LAST = 3 * L      # last_norm gamma | beta
ROW_GB = 3 * L + 1    # g_prenet bias                    (lanes [:H])
ROW_PB = 3 * L + 2    # post_net bias                    (lanes [:C_OUT])
MISC_ROWS = 3 * L + 3
MISC_COLS = C_MULTIPLE * H


def _select_mxu_dtype():
    """bf16 MXU inputs only pay off at production widths on v6e/v7x; at toy H=32
    (and always on v5e, whose VPU has no bf16) the casts are pure critical-path
    overhead, so stay in f32."""
    if H < 128:
        return jnp.float32
    try:
        kind = jax.devices()[0].device_kind.lower()
    except Exception:
        return jnp.float32
    if "v5 lite" in kind or "v5e" in kind or "v5litepod" in kind:
        return jnp.float32
    return jnp.bfloat16


MXU_DTYPE = _select_mxu_dtype()


# ----------------------------- kernel helpers ------------------------------
def _mxu_dot(a, b):
    # weights (b) are pre-cast on the host; only the activation may need a cast
    # (a no-op when MXU_DTYPE == f32).
    return jnp.dot(a.astype(MXU_DTYPE), b, preferred_element_type=jnp.float32)


def _erf(v):
    # Abramowitz & Stegun 7.1.26 rational approximation (|err| < 1.5e-7).
    a1, a2, a3, a4, a5 = 0.254829592, -0.284496736, 1.421413741, -1.453152027, 1.061405429
    p = 0.3275911
    sgn = jnp.where(v >= 0.0, 1.0, -1.0)
    av = jnp.abs(v)
    # precise reciprocal: the approx EUP recip would cap overall accuracy (review note)
    t = pl.reciprocal(1.0 + p * av, approx=False)
    poly = t * (a1 + t * (a2 + t * (a3 + t * (a4 + t * a5))))
    return sgn * (1.0 - poly * jnp.exp(-av * av))


def _gelu(v):
    # exact (erf) GELU, matching torch nn.GELU() default
    return 0.5 * v * (1.0 + _erf(v * 0.7071067811865476))


def _layer_norm(v, gamma, beta):
    # LN over channels (lane axis).  Two independent lane reductions that can
    # pipeline on the XLU; var = E[x^2] - mu^2 (f32 accumulation).
    mu = jnp.mean(v, axis=-1, keepdims=True)
    m2 = jnp.mean(v * v, axis=-1, keepdims=True)
    var = m2 - mu * mu
    return (v - mu) * jax.lax.rsqrt(var + LN_EPS) * gamma + beta


# ------------------------------- the kernel --------------------------------
def _cond_convblocks_kernel(
    x_ref, cond_ref, smask_ref,
    gw_ref, w1_ref, w2_ref, pw_ref, misc_ref,
    out_ref,
):
    def conv_same_k3(h, w2d, bias, dilation, c_in):
        """'same' K=3 dilated conv over time as ONE im2col MXU dot.

        Tap k has time offset off = k*dilation - dilation.  Each shifted slab is
        built in-register with pltpu.roll along the sublane (time) axis; the
        host-precomputed segment mask zeroes rows whose source crosses a batch
        boundary (this also covers the roll wrap-around rows).  The three slabs
        are lane-concatenated to [BT, 3*c_in] and hit the MXU once against the
        host-pre-reshaped [3*c_in, c_out] weight.
        """
        pad = dilation * (KS - 1) // 2
        taps = []
        for k in range(KS):
            off = k * dilation - pad
            if off == 0:
                taps.append(h)
            else:
                slab = pltpu.roll(h, shift=(-off) % BT, axis=0)     # XLU sublane rotate
                taps.append(slab * smask_ref[off + MAX_OFF, :, :c_in])
        return _mxu_dot(jnp.concatenate(taps, axis=-1), w2d) + bias

    x = x_ref[...]                                    # [BT, H] f32
    cond = cond_ref[...]                              # [BT, C_COND] f32

    # --- ConditionalConvBlocks.forward ---
    # nonpadding = x.abs().sum(C)  (raw abs-sum, computed BEFORE the prenet add)
    nonpad0 = jnp.sum(jnp.abs(x), axis=-1, keepdims=True)            # [BT, 1]
    gb = misc_ref[ROW_GB:ROW_GB + 1, :H]
    x = (x + conv_same_k3(cond, gw_ref[...], gb, 1, C_COND)) * nonpad0

    # --- ConvBlocks.forward (is_BTC=False, nonpadding=None) ---
    nonpad1 = (jnp.sum(jnp.abs(x), axis=-1, keepdims=True) > 0.0).astype(jnp.float32)

    scale = KS ** (-0.5)
    idx = 0
    for blk, d in enumerate(DILATIONS):               # one ResidualBlock per dilation
        if blk == 0:
            nonpad_rb = nonpad1                       # x unchanged since nonpad1 -> identical value
        else:
            nonpad_rb = (jnp.sum(jnp.abs(x), axis=-1, keepdims=True) > 0.0).astype(jnp.float32)
        for _ in range(LAYERS_IN_BLOCK):
            lng = misc_ref[ROW_LN + idx:ROW_LN + idx + 1, :H]
            lnb = misc_ref[ROW_LN + idx:ROW_LN + idx + 1, H:]
            b1 = misc_ref[ROW_B1 + idx:ROW_B1 + idx + 1, :]
            b2 = misc_ref[ROW_B2 + idx:ROW_B2 + idx + 1, :H]
            h = _layer_norm(x, lng, lnb)
            h = conv_same_k3(h, w1_ref[idx], b1, d, H)               # [BT, 2H]
            h = _gelu(h * scale)
            h = _mxu_dot(h, w2_ref[idx]) + b2                        # 1x1 conv
            # TODO(synk): dropout path skipped (dropout=0.0 and eval mode in reference)
            x = (x + h) * nonpad_rb      # masked rows must stay zero so the next k=3
            idx += 1                     # conv doesn't leak across the padding

    lastg = misc_ref[ROW_LAST:ROW_LAST + 1, :H]
    lastb = misc_ref[ROW_LAST:ROW_LAST + 1, H:]
    pb = misc_ref[ROW_PB:ROW_PB + 1, :C_OUT]
    x = x * nonpad1
    x = _layer_norm(x, lastg, lastb) * nonpad1
    y = conv_same_k3(x, pw_ref[...], pb, 1, H) * nonpad1
    # TODO(synk): C_OUT=16 < 128 forces a masked (lane-sparse) final store; production
    # out_dims should be a multiple of 128 for an unmasked lane-dense writeback.
    out_ref[...] = y.astype(out_ref.dtype)


# ------------------------------ host wrapper --------------------------------
def conditional_conv_blocks(x, cond, packed_params):
    """x: [B, T, H], cond: [B, T, C_COND] (BTC interface) -> [B, T, C_OUT]."""
    gw_p, w1_p, w2_p, pw_p, misc = packed_params
    x2 = x.reshape(BT, H)
    c2 = cond.reshape(BT, C_COND)

    # Per-offset "stay inside your own length-T segment" masks, pre-broadcast to the
    # full lane width so the kernel never re-broadcasts a 1-lane column per tap.
    t_idx = (jnp.arange(BT) % T)[None, :, None]                      # [1, BT, 1]
    offs = jnp.arange(-MAX_OFF, MAX_OFF + 1)[:, None, None]          # [N_OFF, 1, 1]
    src = t_idx + offs
    smask = jnp.broadcast_to(((src >= 0) & (src < T)).astype(jnp.float32),
                             (N_OFF, BT, H))                         # [N_OFF, BT, H]

    y2 = pl.pallas_call(
        _cond_convblocks_kernel,
        out_shape=jax.ShapeDtypeStruct((BT, C_OUT), jnp.float32),
        # single gridless invocation: every operand fully VMEM-resident.
    )(x2, c2, smask, gw_p, w1_p, w2_p, pw_p, misc)
    return y2.reshape(B, T, C_OUT)


# --------------------------- deterministic params ---------------------------
def init_params(key):
    """Natural (per-tensor) parameter layout, matching torch initialisers."""
    ks = jax.random.split(key, 8)

    def xavier(k, shape, fan_in, fan_out):      # torch xavier_uniform_ on Conv1d weight
        bound = math.sqrt(6.0 / (fan_in + fan_out))
        return jax.random.uniform(k, shape, jnp.float32, -bound, bound)

    def conv_bias(k, shape, fan_in):            # torch Conv1d default bias init
        bound = 1.0 / math.sqrt(fan_in)
        return jax.random.uniform(k, shape, jnp.float32, -bound, bound)

    gw = xavier(ks[0], (KS, C_COND, H), C_COND * KS, H * KS)          # [K, Cin, Cout]
    gb = conv_bias(ks[1], (1, H), C_COND * KS)
    lng = jnp.ones((L, H), jnp.float32)
    lnb = jnp.zeros((L, H), jnp.float32)
    w1 = xavier(ks[2], (L, KS, H, C_MULTIPLE * H), H * KS, C_MULTIPLE * H * KS)
    b1 = conv_bias(ks[3], (L, C_MULTIPLE * H), H * KS)
    w2 = xavier(ks[4], (L, C_MULTIPLE * H, H), C_MULTIPLE * H, H)
    b2 = conv_bias(ks[5], (L, H), C_MULTIPLE * H)
    lastg = jnp.ones((1, H), jnp.float32)
    lastb = jnp.zeros((1, H), jnp.float32)
    pw = xavier(ks[6], (POST_KS, H, C_OUT), H * POST_KS, C_OUT * POST_KS)
    pb = conv_bias(ks[7], (1, C_OUT), H * POST_KS)
    return (gw, gb, lng, lnb, w1, b1, w2, b2, lastg, lastb, pw, pb)


def pack_params(params):
    """Host-side pre-packing: conv weights reshaped for im2col ([K*Cin, Cout]) and
    pre-cast to the MXU input dtype; every tiny tensor folded into one f32 table."""
    (gw, gb, lng, lnb, w1, b1, w2, b2, lastg, lastb, pw, pb) = params
    gw_p = gw.reshape(KS * C_COND, H).astype(MXU_DTYPE)
    w1_p = w1.reshape(L, KS * H, C_MULTIPLE * H).astype(MXU_DTYPE)
    w2_p = w2.astype(MXU_DTYPE)
    pw_p = pw.reshape(POST_KS * H, C_OUT).astype(MXU_DTYPE)

    misc = jnp.zeros((MISC_ROWS, MISC_COLS), jnp.float32)
    misc = misc.at[ROW_LN:ROW_LN + L, :H].set(lng)
    misc = misc.at[ROW_LN:ROW_LN + L, H:].set(lnb)
    misc = misc.at[ROW_B1:ROW_B1 + L, :].set(b1)
    misc = misc.at[ROW_B2:ROW_B2 + L, :H].set(b2)
    misc = misc.at[ROW_LAST, :H].set(lastg[0])
    misc = misc.at[ROW_LAST, H:].set(lastb[0])
    misc = misc.at[ROW_GB, :H].set(gb[0])
    misc = misc.at[ROW_PB, :C_OUT].set(pb[0])
    return (gw_p, w1_p, w2_p, pw_p, misc)


# ----------------------------- pure-JAX reference ----------------------------
def reference_forward(x, cond, params):
    (gw, gb, lng, lnb, w1, b1, w2, b2, lastg, lastb, pw, pb) = params

    def conv1d(h, w, bias, dilation, padding):
        k_taps, tn = w.shape[0], h.shape[1]
        hp = jnp.pad(h, ((0, 0), (padding, padding), (0, 0)))
        out = 0.0
        for k in range(k_taps):
            s = k * dilation
            out = out + jnp.einsum('btc,cd->btd', hp[:, s:s + tn, :], w[k])
        return out + bias[None]

    def layer_norm(h, g, bb, eps):
        mu = jnp.mean(h, axis=-1, keepdims=True)
        var = jnp.mean((h - mu) ** 2, axis=-1, keepdims=True)
        return (h - mu) * jax.lax.rsqrt(var + eps) * g[None] + bb[None]

    def gelu(h):  # exact erf GELU
        return 0.5 * h * (1.0 + jax.lax.erf(h * 0.7071067811865476))

    nonpad0 = jnp.sum(jnp.abs(x), axis=-1, keepdims=True)
    x = (x + conv1d(cond, gw, gb, 1, 1)) * nonpad0
    nonpad1 = (jnp.sum(jnp.abs(x), axis=-1, keepdims=True) > 0.0).astype(jnp.float32)

    scale = KS ** (-0.5)
    idx = 0
    for d in DILATIONS:
        nonpad_rb = (jnp.sum(jnp.abs(x), axis=-1, keepdims=True) > 0.0).astype(jnp.float32)
        for _ in range(LAYERS_IN_BLOCK):
            h = layer_norm(x, lng[idx], lnb[idx], LN_EPS)
            h = conv1d(h, w1[idx], b1[idx:idx + 1], d, d * (KS - 1) // 2)
            h = gelu(h * scale)
            h = jnp.einsum('btc,cd->btd', h, w2[idx]) + b2[idx][None, None]
            x = (x + h) * nonpad_rb
            idx += 1

    x = x * nonpad1
    x = layer_norm(x, lastg[0], lastb[0], LN_EPS) * nonpad1
    return conv1d(x, pw, pb, 1, POST_KS // 2) * nonpad1


# ----------------------------------- main ------------------------------------
if __name__ == "__main__":
    key = jax.random.PRNGKey(0)
    kx, kc = jax.random.split(key)
    x = jax.random.normal(kx, (B, T, H), jnp.float32)
    x = x.at[:, -4:, :].set(0.0)     # zero tail -> exercises the nonpadding masking
    cond = jax.random.normal(kc, (B, T, C_COND), jnp.float32)

    params = init_params(jax.random.PRNGKey(42))
    packed = pack_params(params)

    y = jax.jit(conditional_conv_blocks)(x, cond, packed)
    y = jax.block_until_ready(y)

    y_ref = reference_forward(x, cond, params)
    # f32 MXU inputs at toy widths -> tight tolerance; bf16 (H>=128 on v6e/v7x) loosens it.
    tol = 5e-2 if MXU_DTYPE == jnp.bfloat16 else 5e-3
    if not bool(jnp.allclose(y, y_ref, atol=tol, rtol=tol)):
        raise AssertionError(
            f"Pallas vs reference mismatch, max abs err = {float(jnp.max(jnp.abs(y - y_ref)))}")

    print("KERNEL_OK")
</pallas_src>

<mosaic_0001>
module attributes {stable_mosaic.version = 11 : i64} {
  func.func @_cond_convblocks_kernel(%arg0: memref<32x32xf32, #tpu.memory_space<vmem>>, %arg1: memref<32x16xf32, #tpu.memory_space<vmem>>, %arg2: memref<5x32x32xf32, #tpu.memory_space<vmem>>, %arg3: memref<48x32xf32, #tpu.memory_space<vmem>>, %arg4: memref<4x96x64xf32, #tpu.memory_space<vmem>>, %arg5: memref<4x64x32xf32, #tpu.memory_space<vmem>>, %arg6: memref<96x16xf32, #tpu.memory_space<vmem>>, %arg7: memref<15x64xf32, #tpu.memory_space<vmem>>, %arg8: memref<32x16xf32, #tpu.memory_space<vmem>>) attributes {dimension_semantics = [], scalar_prefetch = 0 : i64, scratch_operands = 0 : i64, tpu.core_type = #tpu.core_type<tc>} {
    %c0 = arith.constant 0 : index
    %c0_0 = arith.constant 0 : index
    %0 = vector.load %arg0[%c0, %c0_0] : memref<32x32xf32, #tpu.memory_space<vmem>>, vector<32x32xf32>
    %c0_1 = arith.constant 0 : index
    %c0_2 = arith.constant 0 : index
    %1 = vector.load %arg1[%c0_1, %c0_2] : memref<32x16xf32, #tpu.memory_space<vmem>>, vector<32x16xf32>
    %2 = math.absf %0 : vector<32x32xf32>
    %cst = arith.constant dense<0.000000e+00> : vector<32xf32>
    %3 = vector.multi_reduction <add>, %2, %cst [1] : vector<32x32xf32> to vector<32xf32>
    %4 = vector.shape_cast %3 : vector<32xf32> to vector<32x1xf32>
    %c13 = arith.constant 13 : index
    %c0_3 = arith.constant 0 : index
    %5 = vector.load %arg7[%c13, %c0_3] : memref<15x64xf32, #tpu.memory_space<vmem>>, vector<1x32xf32>
    %c0_4 = arith.constant 0 : index
    %c0_5 = arith.constant 0 : index
    %6 = vector.load %arg3[%c0_4, %c0_5] : memref<48x32xf32, #tpu.memory_space<vmem>>, vector<48x32xf32>
    %c1_i32 = arith.constant 1 : i32
    %7 = tpu.dynamic_rotate %1 by %c1_i32 dim 0 : vector<32x16xf32>, i32 -> vector<32x16xf32>
    %c1 = arith.constant 1 : index
    %c0_6 = arith.constant 0 : index
    %c0_7 = arith.constant 0 : index
    %8 = vector.load %arg2[%c1, %c0_6, %c0_7] : memref<5x32x32xf32, #tpu.memory_space<vmem>>, vector<1x32x16xf32>
    %9 = vector.shape_cast %8 : vector<1x32x16xf32> to vector<32x16xf32>
    %10 = arith.mulf %7, %9 : vector<32x16xf32>
    %c31_i32 = arith.constant 31 : i32
    %11 = tpu.dynamic_rotate %1 by %c31_i32 dim 0 : vector<32x16xf32>, i32 -> vector<32x16xf32>
    %c3 = arith.constant 3 : index
    %c0_8 = arith.constant 0 : index
    %c0_9 = arith.constant 0 : index
    %12 = vector.load %arg2[%c3, %c0_8, %c0_9] : memref<5x32x32xf32, #tpu.memory_space<vmem>>, vector<1x32x16xf32>
    %13 = vector.shape_cast %12 : vector<1x32x16xf32> to vector<32x16xf32>
    %14 = arith.mulf %11, %13 : vector<32x16xf32>
    %15 = tpu.concatenate %10, %1, %14 in 1 : vector<32x16xf32>, vector<32x16xf32>, vector<32x16xf32> -> vector<32x48xf32>
    %cst_10 = arith.constant dense<0.000000e+00> : vector<32x32xf32>
    %16 = tpu.matmul %15, %6, %cst_10 {dimension_numbers = #tpu.dot_dimension_numbers<[1], [0], [0], [1], [0, 0, 1, 1], [], []>} : vector<32x48xf32>, vector<48x32xf32>, vector<32x32xf32> -> vector<32x32xf32>
    %17 = vector.broadcast %5 : vector<1x32xf32> to vector<32x32xf32>
    %18 = arith.addf %16, %17 : vector<32x32xf32>
    %19 = arith.addf %0, %18 : vector<32x32xf32>
    %20 = vector.broadcast %4 : vector<32x1xf32> to vector<32x32xf32>
    %21 = arith.mulf %19, %20 : vector<32x32xf32>
    %22 = math.absf %21 : vector<32x32xf32>
    %cst_11 = arith.constant dense<0.000000e+00> : vector<32xf32>
    %23 = vector.multi_reduction <add>, %22, %cst_11 [1] : vector<32x32xf32> to vector<32xf32>
    %24 = vector.shape_cast %23 : vector<32xf32> to vector<32x1xf32>
    %cst_12 = arith.constant 0.000000e+00 : f32
    %25 = vector.broadcast %cst_12 : f32 to vector<32x1xf32>
    %26 = arith.cmpf ogt, %24, %25 : vector<32x1xf32>
    %27 = arith.extui %26 : vector<32x1xi1> to vector<32x1xi32>
    %28 = arith.sitofp %27 : vector<32x1xi32> to vector<32x1xf32>
    %c0_13 = arith.constant 0 : index
    %c0_14 = arith.constant 0 : index
    %29 = vector.load %arg7[%c0_13, %c0_14] : memref<15x64xf32, #tpu.memory_space<vmem>>, vector<1x32xf32>
    %c0_15 = arith.constant 0 : index
    %c32 = arith.constant 32 : index
    %30 = vector.load %arg7[%c0_15, %c32] : memref<15x64xf32, #tpu.memory_space<vmem>>, vector<1x32xf32>
    %c4 = arith.constant 4 : index
    %c0_16 = arith.constant 0 : index
    %31 = vector.load %arg7[%c4, %c0_16] : memref<15x64xf32, #tpu.memory_space<vmem>>, vector<1x64xf32>
    %c8 = arith.constant 8 : index
    %c0_17 = arith.constant 0 : index
    %32 = vector.load %arg7[%c8, %c0_17] : memref<15x64xf32, #tpu.memory_space<vmem>>, vector<1x32xf32>
    %cst_18 = arith.constant dense<0.000000e+00> : vector<32xf32>
    %33 = vector.multi_reduction <add>, %21, %cst_18 [1] : vector<32x32xf32> to vector<32xf32>
    %34 = vector.shape_cast %33 : vector<32xf32> to vector<32x1xf32>
    %cst_19 = arith.constant 3.200000e+01 : f32
    %35 = vector.broadcast %cst_19 : f32 to vector<32x1xf32>
    %36 = arith.divf %34, %35 : vector<32x1xf32>
    %37 = arith.mulf %21, %21 : vector<32x32xf32>
    %cst_20 = arith.constant dense<0.000000e+00> : vector<32xf32>
    %38 = vector.multi_reduction <add>, %37, %cst_20 [1] : vector<32x32xf32> to vector<32xf32>
    %39 = vector.shape_cast %38 : vector<32xf32> to vector<32x1xf32>
    %cst_21 = arith.constant 3.200000e+01 : f32
    %40 = vector.broadcast %cst_21 : f32 to vector<32x1xf32>
    %41 = arith.divf %39, %40 : vector<32x1xf32>
    %42 = arith.mulf %36, %36 : vector<32x1xf32>
    %43 = arith.subf %41, %42 : vector<32x1xf32>
    %44 = vector.broadcast %36 : vector<32x1xf32> to vector<32x32xf32>
    %45 = arith.subf %21, %44 : vector<32x32xf32>
    %cst_22 = arith.constant 9.99999974E-6 : f32
    %46 = vector.broadcast %cst_22 : f32 to vector<32x1xf32>
    %47 = arith.addf %43, %46 : vector<32x1xf32>
    %48 = math.rsqrt %47 : vector<32x1xf32>
    %49 = vector.broadcast %48 : vector<32x1xf32> to vector<32x32xf32>
    %50 = arith.mulf %45, %49 : vector<32x32xf32>
    %51 = vector.broadcast %29 : vector<1x32xf32> to vector<32x32xf32>
    %52 = arith.mulf %50, %51 : vector<32x32xf32>
    %53 = vector.broadcast %30 : vector<1x32xf32> to vector<32x32xf32>
    %54 = arith.addf %52, %53 : vector<32x32xf32>
    %c0_23 = arith.constant 0 : index
    %c0_24 = arith.constant 0 : index
    %c0_25 = arith.constant 0 : index
    %55 = vector.load %arg4[%c0_23, %c0_24, %c0_25] : memref<4x96x64xf32, #tpu.memory_space<vmem>>, vector<1x96x64xf32>
    %56 = vector.shape_cast %55 : vector<1x96x64xf32> to vector<96x64xf32>
    %c1_i32_26 = arith.constant 1 : i32
    %57 = tpu.dynamic_rotate %54 by %c1_i32_26 dim 0 : vector<32x32xf32>, i32 -> vector<32x32xf32>
    %c1_27 = arith.constant 1 : index
    %c0_28 = arith.constant 0 : index
    %c0_29 = arith.constant 0 : index
    %58 = vector.load %arg2[%c1_27, %c0_28, %c0_29] : memref<5x32x32xf32, #tpu.memory_space<vmem>>, vector<1x32x32xf32>
    %59 = vector.shape_cast %58 : vector<1x32x32xf32> to vector<32x32xf32>
    %60 = arith.mulf %57, %59 : vector<32x32xf32>
    %c31_i32_30 = arith.constant 31 : i32
    %61 = tpu.dynamic_rotate %54 by %c31_i32_30 dim 0 : vector<32x32xf32>, i32 -> vector<32x32xf32>
    %c3_31 = arith.constant 3 : index
    %c0_32 = arith.constant 0 : index
    %c0_33 = arith.constant 0 : index
    %62 = vector.load %arg2[%c3_31, %c0_32, %c0_33] : memref<5x32x32xf32, #tpu.memory_space<vmem>>, vector<1x32x32xf32>
    %63 = vector.shape_cast %62 : vector<1x32x32xf32> to vector<32x32xf32>
    %64 = arith.mulf %61, %63 : vector<32x32xf32>
    %65 = tpu.concatenate %60, %54, %64 in 1 : vector<32x32xf32>, vector<32x32xf32>, vector<32x32xf32> -> vector<32x96xf32>
    %cst_34 = arith.constant dense<0.000000e+00> : vector<32x64xf32>
    %66 = tpu.matmul %65, %56, %cst_34 {dimension_numbers = #tpu.dot_dimension_numbers<[1], [0], [0], [1], [0, 0, 1, 1], [], []>} : vector<32x96xf32>, vector<96x64xf32>, vector<32x64xf32> -> vector<32x64xf32>
    %67 = vector.broadcast %31 : vector<1x64xf32> to vector<32x64xf32>
    %68 = arith.addf %66, %67 : vector<32x64xf32>
    %cst_35 = arith.constant 0.577350259 : f32
    %69 = vector.broadcast %cst_35 : f32 to vector<32x64xf32>
    %70 = arith.mulf %68, %69 : vector<32x64xf32>
    %cst_36 = arith.constant 5.000000e-01 : f32
    %71 = vector.broadcast %cst_36 : f32 to vector<32x64xf32>
    %72 = arith.mulf %71, %70 : vector<32x64xf32>
    %cst_37 = arith.constant 0.707106769 : f32
    %73 = vector.broadcast %cst_37 : f32 to vector<32x64xf32>
    %74 = arith.mulf %70, %73 : vector<32x64xf32>
    %cst_38 = arith.constant 0.000000e+00 : f32
    %75 = vector.broadcast %cst_38 : f32 to vector<32x64xf32>
    %76 = arith.cmpf oge, %74, %75 : vector<32x64xf32>
    %cst_39 = arith.constant 1.000000e+00 : f32
    %cst_40 = arith.constant -1.000000e+00 : f32
    %77 = vector.broadcast %cst_39 : f32 to vector<32x64xf32>
    %78 = vector.broadcast %cst_40 : f32 to vector<32x64xf32>
    %79 = arith.select %76, %77, %78 : vector<32x64xi1>, vector<32x64xf32>
    %80 = math.absf %74 : vector<32x64xf32>
    %cst_41 = arith.constant 0.327591091 : f32
    %81 = vector.broadcast %cst_41 : f32 to vector<32x64xf32>
    %82 = arith.mulf %81, %80 : vector<32x64xf32>
    %cst_42 = arith.constant 1.000000e+00 : f32
    %83 = vector.broadcast %cst_42 : f32 to vector<32x64xf32>
    %84 = arith.addf %83, %82 : vector<32x64xf32>
    %85 = tpu.reciprocal %84 : vector<32x64xf32> -> vector<32x64xf32>
    %cst_43 = arith.constant 1.06140542 : f32
    %86 = vector.broadcast %cst_43 : f32 to vector<32x64xf32>
    %87 = arith.mulf %85, %86 : vector<32x64xf32>
    %cst_44 = arith.constant -1.45315206 : f32
    %88 = vector.broadcast %cst_44 : f32 to vector<32x64xf32>
    %89 = arith.addf %88, %87 : vector<32x64xf32>
    %90 = arith.mulf %85, %89 : vector<32x64xf32>
    %cst_45 = arith.constant 1.42141378 : f32
    %91 = vector.broadcast %cst_45 : f32 to vector<32x64xf32>
    %92 = arith.addf %91, %90 : vector<32x64xf32>
    %93 = arith.mulf %85, %92 : vector<32x64xf32>
    %cst_46 = arith.constant -0.284496725 : f32
    %94 = vector.broadcast %cst_46 : f32 to vector<32x64xf32>
    %95 = arith.addf %94, %93 : vector<32x64xf32>
    %96 = arith.mulf %85, %95 : vector<32x64xf32>
    %cst_47 = arith.constant 0.254829586 : f32
    %97 = vector.broadcast %cst_47 : f32 to vector<32x64xf32>
    %98 = arith.addf %97, %96 : vector<32x64xf32>
    %99 = arith.mulf %85, %98 : vector<32x64xf32>
    %cst_48 = arith.constant 0.000000e+00 : f32
    %100 = vector.broadcast %cst_48 : f32 to vector<32x64xf32>
    %101 = arith.subf %100, %80 : vector<32x64xf32>
    %102 = arith.mulf %101, %80 : vector<32x64xf32>
    %103 = math.exp %102 : vector<32x64xf32>
    %104 = arith.mulf %99, %103 : vector<32x64xf32>
    %cst_49 = arith.constant 1.000000e+00 : f32
    %105 = vector.broadcast %cst_49 : f32 to vector<32x64xf32>
    %106 = arith.subf %105, %104 : vector<32x64xf32>
    %107 = arith.mulf %79, %106 : vector<32x64xf32>
    %cst_50 = arith.constant 1.000000e+00 : f32
    %108 = vector.broadcast %cst_50 : f32 to vector<32x64xf32>
    %109 = arith.addf %108, %107 : vector<32x64xf32>
    %110 = arith.mulf %72, %109 : vector<32x64xf32>
    %c0_51 = arith.constant 0 : index
    %c0_52 = arith.constant 0 : index
    %c0_53 = arith.constant 0 : index
    %111 = vector.load %arg5[%c0_51, %c0_52, %c0_53] : memref<4x64x32xf32, #tpu.memory_space<vmem>>, vector<1x64x32xf32>
    %112 = vector.shape_cast %111 : vector<1x64x32xf32> to vector<64x32xf32>
    %cst_54 = arith.constant dense<0.000000e+00> : vector<32x32xf32>
    %113 = tpu.matmul %110, %112, %cst_54 {dimension_numbers = #tpu.dot_dimension_numbers<[1], [0], [0], [1], [0, 0, 1, 1], [], []>} : vector<32x64xf32>, vector<64x32xf32>, vector<32x32xf32> -> vector<32x32xf32>
    %114 = vector.broadcast %32 : vector<1x32xf32> to vector<32x32xf32>
    %115 = arith.addf %113, %114 : vector<32x32xf32>
    %116 = arith.addf %21, %115 : vector<32x32xf32>
    %117 = vector.broadcast %28 : vector<32x1xf32> to vector<32x32xf32>
    %118 = arith.mulf %116, %117 : vector<32x32xf32>
    %c1_55 = arith.constant 1 : index
    %c0_56 = arith.constant 0 : index
    %119 = vector.load %arg7[%c1_55, %c0_56] : memref<15x64xf32, #tpu.memory_space<vmem>>, vector<1x32xf32>
    %c1_57 = arith.constant 1 : index
    %c32_58 = arith.constant 32 : index
    %120 = vector.load %arg7[%c1_57, %c32_58] : memref<15x64xf32, #tpu.memory_space<vmem>>, vector<1x32xf32>
    %c5 = arith.constant 5 : index
    %c0_59 = arith.constant 0 : index
    %121 = vector.load %arg7[%c5, %c0_59] : memref<15x64xf32, #tpu.memory_space<vmem>>, vector<1x64xf32>
    %c9 = arith.constant 9 : index
    %c0_60 = arith.constant 0 : index
    %122 = vector.load %arg7[%c9, %c0_60] : memref<15x64xf32, #tpu.memory_space<vmem>>, vector<1x32xf32>
    %cst_61 = arith.constant dense<0.000000e+00> : vector<32xf32>
    %123 = vector.multi_reduction <add>, %118, %cst_61 [1] : vector<32x32xf32> to vector<32xf32>
    %124 = vector.shape_cast %123 : vector<32xf32> to vector<32x1xf32>
    %cst_62 = arith.constant 3.200000e+01 : f32
    %125 = vector.broadcast %cst_62 : f32 to vector<32x1xf32>
    %126 = arith.divf %124, %125 : vector<32x1xf32>
    %127 = arith.mulf %118, %118 : vector<32x32xf32>
    %cst_63 = arith.constant dense<0.000000e+00> : vector<32xf32>
    %128 = vector.multi_reduction <add>, %127, %cst_63 [1] : vector<32x32xf32> to vector<32xf32>
    %129 = vector.shape_cast %128 : vector<32xf32> to vector<32x1xf32>
    %cst_64 = arith.constant 3.200000e+01 : f32
    %130 = vector.broadcast %cst_64 : f32 to vector<32x1xf32>
    %131 = arith.divf %129, %130 : vector<32x1xf32>
    %132 = arith.mulf %126, %126 : vector<32x1xf32>
    %133 = arith.subf %131, %132 : vector<32x1xf32>
    %134 = vector.broadcast %126 : vector<32x1xf32> to vector<32x32xf32>
    %135 = arith.subf %118, %134 : vector<32x32xf32>
    %cst_65 = arith.constant 9.99999974E-6 : f32
    %136 = vector.broadcast %cst_65 : f32 to vector<32x1xf32>
    %137 = arith.addf %133, %136 : vector<32x1xf32>
    %138 = math.rsqrt %137 : vector<32x1xf32>
    %139 = vector.broadcast %138 : vector<32x1xf32> to vector<32x32xf32>
    %140 = arith.mulf %135, %139 : vector<32x32xf32>
    %141 = vector.broadcast %119 : vector<1x32xf32> to vector<32x32xf32>
    %142 = arith.mulf %140, %141 : vector<32x32xf32>
    %143 = vector.broadcast %120 : vector<1x32xf32> to vector<32x32xf32>
    %144 = arith.addf %142, %143 : vector<32x32xf32>
    %c1_66 = arith.constant 1 : index
    %c0_67 = arith.constant 0 : index
    %c0_68 = arith.constant 0 : index
    %145 = vector.load %arg4[%c1_66, %c0_67, %c0_68] : memref<4x96x64xf32, #tpu.memory_space<vmem>>, vector<1x96x64xf32>
    %146 = vector.shape_cast %145 : vector<1x96x64xf32> to vector<96x64xf32>
    %c1_i32_69 = arith.constant 1 : i32
    %147 = tpu.dynamic_rotate %144 by %c1_i32_69 dim 0 : vector<32x32xf32>, i32 -> vector<32x32xf32>
    %c1_70 = arith.constant 1 : index
    %c0_71 = arith.constant 0 : index
    %c0_72 = arith.constant 0 : index
    %148 = vector.load %arg2[%c1_70, %c0_71, %c0_72] : memref<5x32x32xf32, #tpu.memory_space<vmem>>, vector<1x32x32xf32>
    %149 = vector.shape_cast %148 : vector<1x32x32xf32> to vector<32x32xf32>
    %150 = arith.mulf %147, %149 : vector<32x32xf32>
    %c31_i32_73 = arith.constant 31 : i32
    %151 = tpu.dynamic_rotate %144 by %c31_i32_73 dim 0 : vector<32x32xf32>, i32 -> vector<32x32xf32>
    %c3_74 = arith.constant 3 : index
    %c0_75 = arith.constant 0 : index
    %c0_76 = arith.constant 0 : index
    %152 = vector.load %arg2[%c3_74, %c0_75, %c0_76] : memref<5x32x32xf32, #tpu.memory_space<vmem>>, vector<1x32x32xf32>
    %153 = vector.shape_cast %152 : vector<1x32x32xf32> to vector<32x32xf32>
    %154 = arith.mulf %151, %153 : vector<32x32xf32>
    %155 = tpu.concatenate %150, %144, %154 in 1 : vector<32x32xf32>, vector<32x32xf32>, vector<32x32xf32> -> vector<32x96xf32>
    %cst_77 = arith.constant dense<0.000000e+00> : vector<32x64xf32>
    %156 = tpu.matmul %155, %146, %cst_77 {dimension_numbers = #tpu.dot_dimension_numbers<[1], [0], [0], [1], [0, 0, 1, 1], [], []>} : vector<32x96xf32>, vector<96x64xf32>, vector<32x64xf32> -> vector<32x64xf32>
    %157 = vector.broadcast %121 : vector<1x64xf32> to vector<32x64xf32>
    %158 = arith.addf %156, %157 : vector<32x64xf32>
    %cst_78 = arith.constant 0.577350259 : f32
    %159 = vector.broadcast %cst_78 : f32 to vector<32x64xf32>
    %160 = arith.mulf %158, %159 : vector<32x64xf32>
    %cst_79 = arith.constant 5.000000e-01 : f32
    %161 = vector.broadcast %cst_79 : f32 to vector<32x64xf32>
    %162 = arith.mulf %161, %160 : vector<32x64xf32>
    %cst_80 = arith.constant 0.707106769 : f32
    %163 = vector.broadcast %cst_80 : f32 to vector<32x64xf32>
    %164 = arith.mulf %160, %163 : vector<32x64xf32>
    %cst_81 = arith.constant 0.000000e+00 : f32
    %165 = vector.broadcast %cst_81 : f32 to vector<32x64xf32>
    %166 = arith.cmpf oge, %164, %165 : vector<32x64xf32>
    %cst_82 = arith.constant 1.000000e+00 : f32
    %cst_83 = arith.constant -1.000000e+00 : f32
    %167 = vector.broadcast %cst_82 : f32 to vector<32x64xf32>
    %168 = vector.broadcast %cst_83 : f32 to vector<32x64xf32>
    %169 = arith.select %166, %167, %168 : vector<32x64xi1>, vector<32x64xf32>
    %170 = math.absf %164 : vector<32x64xf32>
    %cst_84 = arith.constant 0.327591091 : f32
    %171 = vector.broadcast %cst_84 : f32 to vector<32x64xf32>
    %172 = arith.mulf %171, %170 : vector<32x64xf32>
    %cst_85 = arith.constant 1.000000e+00 : f32
    %173 = vector.broadcast %cst_85 : f32 to vector<32x64xf32>
    %174 = arith.addf %173, %172 : vector<32x64xf32>
    %175 = tpu.reciprocal %174 : vector<32x64xf32> -> vector<32x64xf32>
    %cst_86 = arith.constant 1.06140542 : f32
    %176 = vector.broadcast %cst_86 : f32 to vector<32x64xf32>
    %177 = arith.mulf %175, %176 : vector<32x64xf32>
    %cst_87 = arith.constant -1.45315206 : f32
    %178 = vector.broadcast %cst_87 : f32 to vector<32x64xf32>
    %179 = arith.addf %178, %177 : vector<32x64xf32>
    %180 = arith.mulf %175, %179 : vector<32x64xf32>
    %cst_88 = arith.constant 1.42141378 : f32
    %181 = vector.broadcast %cst_88 : f32 to vector<32x64xf32>
    %182 = arith.addf %181, %180 : vector<32x64xf32>
    %183 = arith.mulf %175, %182 : vector<32x64xf32>
    %cst_89 = arith.constant -0.284496725 : f32
    %184 = vector.broadcast %cst_89 : f32 to vector<32x64xf32>
    %185 = arith.addf %184, %183 : vector<32x64xf32>
    %186 = arith.mulf %175, %185 : vector<32x64xf32>
    %cst_90 = arith.constant 0.254829586 : f32
    %187 = vector.broadcast %cst_90 : f32 to vector<32x64xf32>
    %188 = arith.addf %187, %186 : vector<32x64xf32>
    %189 = arith.mulf %175, %188 : vector<32x64xf32>
    %cst_91 = arith.constant 0.000000e+00 : f32
    %190 = vector.broadcast %cst_91 : f32 to vector<32x64xf32>
    %191 = arith.subf %190, %170 : vector<32x64xf32>
    %192 = arith.mulf %191, %170 : vector<32x64xf32>
    %193 = math.exp %192 : vector<32x64xf32>
    %194 = arith.mulf %189, %193 : vector<32x64xf32>
    %cst_92 = arith.constant 1.000000e+00 : f32
    %195 = vector.broadcast %cst_92 : f32 to vector<32x64xf32>
    %196 = arith.subf %195, %194 : vector<32x64xf32>
    %197 = arith.mulf %169, %196 : vector<32x64xf32>
    %cst_93 = arith.constant 1.000000e+00 : f32
    %198 = vector.broadcast %cst_93 : f32 to vector<32x64xf32>
    %199 = arith.addf %198, %197 : vector<32x64xf32>
    %200 = arith.mulf %162, %199 : vector<32x64xf32>
    %c1_94 = arith.constant 1 : index
    %c0_95 = arith.constant 0 : index
    %c0_96 = arith.constant 0 : index
    %201 = vector.load %arg5[%c1_94, %c0_95, %c0_96] : memref<4x64x32xf32, #tpu.memory_space<vmem>>, vector<1x64x32xf32>
    %202 = vector.shape_cast %201 : vector<1x64x32xf32> to vector<64x32xf32>
    %cst_97 = arith.constant dense<0.000000e+00> : vector<32x32xf32>
    %203 = tpu.matmul %200, %202, %cst_97 {dimension_numbers = #tpu.dot_dimension_numbers<[1], [0], [0], [1], [0, 0, 1, 1], [], []>} : vector<32x64xf32>, vector<64x32xf32>, vector<32x32xf32> -> vector<32x32xf32>
    %204 = vector.broadcast %122 : vector<1x32xf32> to vector<32x32xf32>
    %205 = arith.addf %203, %204 : vector<32x32xf32>
    %206 = arith.addf %118, %205 : vector<32x32xf32>
    %207 = vector.broadcast %28 : vector<32x1xf32> to vector<32x32xf32>
    %208 = arith.mulf %206, %207 : vector<32x32xf32>
    %209 = math.absf %208 : vector<32x32xf32>
    %cst_98 = arith.constant dense<0.000000e+00> : vector<32xf32>
    %210 = vector.multi_reduction <add>, %209, %cst_98 [1] : vector<32x32xf32> to vector<32xf32>
    %211 = vector.shape_cast %210 : vector<32xf32> to vector<32x1xf32>
    %cst_99 = arith.constant 0.000000e+00 : f32
    %212 = vector.broadcast %cst_99 : f32 to vector<32x1xf32>
    %213 = arith.cmpf ogt, %211, %212 : vector<32x1xf32>
    %214 = arith.extui %213 : vector<32x1xi1> to vector<32x1xi32>
    %215 = arith.sitofp %214 : vector<32x1xi32> to vector<32x1xf32>
    %c2 = arith.constant 2 : index
    %c0_100 = arith.constant 0 : index
    %216 = vector.load %arg7[%c2, %c0_100] : memref<15x64xf32, #tpu.memory_space<vmem>>, vector<1x32xf32>
    %c2_101 = arith.constant 2 : index
    %c32_102 = arith.constant 32 : index
    %217 = vector.load %arg7[%c2_101, %c32_102] : memref<15x64xf32, #tpu.memory_space<vmem>>, vector<1x32xf32>
    %c6 = arith.constant 6 : index
    %c0_103 = arith.constant 0 : index
    %218 = vector.load %arg7[%c6, %c0_103] : memref<15x64xf32, #tpu.memory_space<vmem>>, vector<1x64xf32>
    %c10 = arith.constant 10 : index
    %c0_104 = arith.constant 0 : index
    %219 = vector.load %arg7[%c10, %c0_104] : memref<15x64xf32, #tpu.memory_space<vmem>>, vector<1x32xf32>
    %cst_105 = arith.constant dense<0.000000e+00> : vector<32xf32>
    %220 = vector.multi_reduction <add>, %208, %cst_105 [1] : vector<32x32xf32> to vector<32xf32>
    %221 = vector.shape_cast %220 : vector<32xf32> to vector<32x1xf32>
    %cst_106 = arith.constant 3.200000e+01 : f32
    %222 = vector.broadcast %cst_106 : f32 to vector<32x1xf32>
    %223 = arith.divf %221, %222 : vector<32x1xf32>
    %224 = arith.mulf %208, %208 : vector<32x32xf32>
    %cst_107 = arith.constant dense<0.000000e+00> : vector<32xf32>
    %225 = vector.multi_reduction <add>, %224, %cst_107 [1] : vector<32x32xf32> to vector<32xf32>
    %226 = vector.shape_cast %225 : vector<32xf32> to vector<32x1xf32>
    %cst_108 = arith.constant 3.200000e+01 : f32
    %227 = vector.broadcast %cst_108 : f32 to vector<32x1xf32>
    %228 = arith.divf %226, %227 : vector<32x1xf32>
    %229 = arith.mulf %223, %223 : vector<32x1xf32>
    %230 = arith.subf %228, %229 : vector<32x1xf32>
    %231 = vector.broadcast %223 : vector<32x1xf32> to vector<32x32xf32>
    %232 = arith.subf %208, %231 : vector<32x32xf32>
    %cst_109 = arith.constant 9.99999974E-6 : f32
    %233 = vector.broadcast %cst_109 : f32 to vector<32x1xf32>
    %234 = arith.addf %230, %233 : vector<32x1xf32>
    %235 = math.rsqrt %234 : vector<32x1xf32>
    %236 = vector.broadcast %235 : vector<32x1xf32> to vector<32x32xf32>
    %237 = arith.mulf %232, %236 : vector<32x32xf32>
    %238 = vector.broadcast %216 : vector<1x32xf32> to vector<32x32xf32>
    %239 = arith.mulf %237, %238 : vector<32x32xf32>
    %240 = vector.broadcast %217 : vector<1x32xf32> to vector<32x32xf32>
    %241 = arith.addf %239, %240 : vector<32x32xf32>
    %c2_110 = arith.constant 2 : index
    %c0_111 = arith.constant 0 : index
    %c0_112 = arith.constant 0 : index
    %242 = vector.load %arg4[%c2_110, %c0_111, %c0_112] : memref<4x96x64xf32, #tpu.memory_space<vmem>>, vector<1x96x64xf32>
    %243 = vector.shape_cast %242 : vector<1x96x64xf32> to vector<96x64xf32>
    %c2_i32 = arith.constant 2 : i32
    %244 = tpu.dynamic_rotate %241 by %c2_i32 dim 0 : vector<32x32xf32>, i32 -> vector<32x32xf32>
    %c0_113 = arith.constant 0 : index
    %c0_114 = arith.constant 0 : index
    %c0_115 = arith.constant 0 : index
    %245 = vector.load %arg2[%c0_113, %c0_114, %c0_115] : memref<5x32x32xf32, #tpu.memory_space<vmem>>, vector<1x32x32xf32>
    %246 = vector.shape_cast %245 : vector<1x32x32xf32> to vector<32x32xf32>
    %247 = arith.mulf %244, %246 : vector<32x32xf32>
    %c30_i32 = arith.constant 30 : i32
    %248 = tpu.dynamic_rotate %241 by %c30_i32 dim 0 : vector<32x32xf32>, i32 -> vector<32x32xf32>
    %c4_116 = arith.constant 4 : index
    %c0_117 = arith.constant 0 : index
    %c0_118 = arith.constant 0 : index
    %249 = vector.load %arg2[%c4_116, %c0_117, %c0_118] : memref<5x32x32xf32, #tpu.memory_space<vmem>>, vector<1x32x32xf32>
    %250 = vector.shape_cast %249 : vector<1x32x32xf32> to vector<32x32xf32>
    %251 = arith.mulf %248, %250 : vector<32x32xf32>
    %252 = tpu.concatenate %247, %241, %251 in 1 : vector<32x32xf32>, vector<32x32xf32>, vector<32x32xf32> -> vector<32x96xf32>
    %cst_119 = arith.constant dense<0.000000e+00> : vector<32x64xf32>
    %253 = tpu.matmul %252, %243, %cst_119 {dimension_numbers = #tpu.dot_dimension_numbers<[1], [0], [0], [1], [0, 0, 1, 1], [], []>} : vector<32x96xf32>, vector<96x64xf32>, vector<32x64xf32> -> vector<32x64xf32>
    %254 = vector.broadcast %218 : vector<1x64xf32> to vector<32x64xf32>
    %255 = arith.addf %253, %254 : vector<32x64xf32>
    %cst_120 = arith.constant 0.577350259 : f32
    %256 = vector.broadcast %cst_120 : f32 to vector<32x64xf32>
    %257 = arith.mulf %255, %256 : vector<32x64xf32>
    %cst_121 = arith.constant 5.000000e-01 : f32
    %258 = vector.broadcast %cst_121 : f32 to vector<32x64xf32>
    %259 = arith.mulf %258, %257 : vector<32x64xf32>
    %cst_122 = arith.constant 0.707106769 : f32
    %260 = vector.broadcast %cst_122 : f32 to vector<32x64xf32>
    %261 = arith.mulf %257, %260 : vector<32x64xf32>
    %cst_123 = arith.constant 0.000000e+00 : f32
    %262 = vector.broadcast %cst_123 : f32 to vector<32x64xf32>
    %263 = arith.cmpf oge, %261, %262 : vector<32x64xf32>
    %cst_124 = arith.constant 1.000000e+00 : f32
    %cst_125 = arith.constant -1.000000e+00 : f32
    %264 = vector.broadcast %cst_124 : f32 to vector<32x64xf32>
    %265 = vector.broadcast %cst_125 : f32 to vector<32x64xf32>
    %266 = arith.select %263, %264, %265 : vector<32x64xi1>, vector<32x64xf32>
    %267 = math.absf %261 : vector<32x64xf32>
    %cst_126 = arith.constant 0.327591091 : f32
    %268 = vector.broadcast %cst_126 : f32 to vector<32x64xf32>
    %269 = arith.mulf %268, %267 : vector<32x64xf32>
    %cst_127 = arith.constant 1.000000e+00 : f32
    %270 = vector.broadcast %cst_127 : f32 to vector<32x64xf32>
    %271 = arith.addf %270, %269 : vector<32x64xf32>
    %272 = tpu.reciprocal %271 : vector<32x64xf32> -> vector<32x64xf32>
    %cst_128 = arith.constant 1.06140542 : f32
    %273 = vector.broadcast %cst_128 : f32 to vector<32x64xf32>
    %274 = arith.mulf %272, %273 : vector<32x64xf32>
    %cst_129 = arith.constant -1.45315206 : f32
    %275 = vector.broadcast %cst_129 : f32 to vector<32x64xf32>
    %276 = arith.addf %275, %274 : vector<32x64xf32>
    %277 = arith.mulf %272, %276 : vector<32x64xf32>
    %cst_130 = arith.constant 1.42141378 : f32
    %278 = vector.broadcast %cst_130 : f32 to vector<32x64xf32>
    %279 = arith.addf %278, %277 : vector<32x64xf32>
    %280 = arith.mulf %272, %279 : vector<32x64xf32>
    %cst_131 = arith.constant -0.284496725 : f32
    %281 = vector.broadcast %cst_131 : f32 to vector<32x64xf32>
    %282 = arith.addf %281, %280 : vector<32x64xf32>
    %283 = arith.mulf %272, %282 : vector<32x64xf32>
    %cst_132 = arith.constant 0.254829586 : f32
    %284 = vector.broadcast %cst_132 : f32 to vector<32x64xf32>
    %285 = arith.addf %284, %283 : vector<32x64xf32>
    %286 = arith.mulf %272, %285 : vector<32x64xf32>
    %cst_133 = arith.constant 0.000000e+00 : f32
    %287 = vector.broadcast %cst_133 : f32 to vector<32x64xf32>
    %288 = arith.subf %287, %267 : vector<32x64xf32>
    %289 = arith.mulf %288, %267 : vector<32x64xf32>
    %290 = math.exp %289 : vector<32x64xf32>
    %291 = arith.mulf %286, %290 : vector<32x64xf32>
    %cst_134 = arith.constant 1.000000e+00 : f32
    %292 = vector.broadcast %cst_134 : f32 to vector<32x64xf32>
    %293 = arith.subf %292, %291 : vector<32x64xf32>
    %294 = arith.mulf %266, %293 : vector<32x64xf32>
    %cst_135 = arith.constant 1.000000e+00 : f32
    %295 = vector.broadcast %cst_135 : f32 to vector<32x64xf32>
    %296 = arith.addf %295, %294 : vector<32x64xf32>
    %297 = arith.mulf %259, %296 : vector<32x64xf32>
    %c2_136 = arith.constant 2 : index
    %c0_137 = arith.constant 0 : index
    %c0_138 = arith.constant 0 : index
    %298 = vector.load %arg5[%c2_136, %c0_137, %c0_138] : memref<4x64x32xf32, #tpu.memory_space<vmem>>, vector<1x64x32xf32>
    %299 = vector.shape_cast %298 : vector<1x64x32xf32> to vector<64x32xf32>
    %cst_139 = arith.constant dense<0.000000e+00> : vector<32x32xf32>
    %300 = tpu.matmul %297, %299, %cst_139 {dimension_numbers = #tpu.dot_dimension_numbers<[1], [0], [0], [1], [0, 0, 1, 1], [], []>} : vector<32x64xf32>, vector<64x32xf32>, vector<32x32xf32> -> vector<32x32xf32>
    %301 = vector.broadcast %219 : vector<1x32xf32> to vector<32x32xf32>
    %302 = arith.addf %300, %301 : vector<32x32xf32>
    %303 = arith.addf %208, %302 : vector<32x32xf32>
    %304 = vector.broadcast %215 : vector<32x1xf32> to vector<32x32xf32>
    %305 = arith.mulf %303, %304 : vector<32x32xf32>
    %c3_140 = arith.constant 3 : index
    %c0_141 = arith.constant 0 : index
    %306 = vector.load %arg7[%c3_140, %c0_141] : memref<15x64xf32, #tpu.memory_space<vmem>>, vector<1x32xf32>
    %c3_142 = arith.constant 3 : index
    %c32_143 = arith.constant 32 : index
    %307 = vector.load %arg7[%c3_142, %c32_143] : memref<15x64xf32, #tpu.memory_space<vmem>>, vector<1x32xf32>
    %c7 = arith.constant 7 : index
    %c0_144 = arith.constant 0 : index
    %308 = vector.load %arg7[%c7, %c0_144] : memref<15x64xf32, #tpu.memory_space<vmem>>, vector<1x64xf32>
    %c11 = arith.constant 11 : index
    %c0_145 = arith.constant 0 : index
    %309 = vector.load %arg7[%c11, %c0_145] : memref<15x64xf32, #tpu.memory_space<vmem>>, vector<1x32xf32>
    %cst_146 = arith.constant dense<0.000000e+00> : vector<32xf32>
    %310 = vector.multi_reduction <add>, %305, %cst_146 [1] : vector<32x32xf32> to vector<32xf32>
    %311 = vector.shape_cast %310 : vector<32xf32> to vector<32x1xf32>
    %cst_147 = arith.constant 3.200000e+01 : f32
    %312 = vector.broadcast %cst_147 : f32 to vector<32x1xf32>
    %313 = arith.divf %311, %312 : vector<32x1xf32>
    %314 = arith.mulf %305, %305 : vector<32x32xf32>
    %cst_148 = arith.constant dense<0.000000e+00> : vector<32xf32>
    %315 = vector.multi_reduction <add>, %314, %cst_148 [1] : vector<32x32xf32> to vector<32xf32>
    %316 = vector.shape_cast %315 : vector<32xf32> to vector<32x1xf32>
    %cst_149 = arith.constant 3.200000e+01 : f32
    %317 = vector.broadcast %cst_149 : f32 to vector<32x1xf32>
    %318 = arith.divf %316, %317 : vector<32x1xf32>
    %319 = arith.mulf %313, %313 : vector<32x1xf32>
    %320 = arith.subf %318, %319 : vector<32x1xf32>
    %321 = vector.broadcast %313 : vector<32x1xf32> to vector<32x32xf32>
    %322 = arith.subf %305, %321 : vector<32x32xf32>
    %cst_150 = arith.constant 9.99999974E-6 : f32
    %323 = vector.broadcast %cst_150 : f32 to vector<32x1xf32>
    %324 = arith.addf %320, %323 : vector<32x1xf32>
    %325 = math.rsqrt %324 : vector<32x1xf32>
    %326 = vector.broadcast %325 : vector<32x1xf32> to vector<32x32xf32>
    %327 = arith.mulf %322, %326 : vector<32x32xf32>
    %328 = vector.broadcast %306 : vector<1x32xf32> to vector<32x32xf32>
    %329 = arith.mulf %327, %328 : vector<32x32xf32>
    %330 = vector.broadcast %307 : vector<1x32xf32> to vector<32x32xf32>
    %331 = arith.addf %329, %330 : vector<32x32xf32>
    %c3_151 = arith.constant 3 : index
    %c0_152 = arith.constant 0 : index
    %c0_153 = arith.constant 0 : index
    %332 = vector.load %arg4[%c3_151, %c0_152, %c0_153] : memref<4x96x64xf32, #tpu.memory_space<vmem>>, vector<1x96x64xf32>
    %333 = vector.shape_cast %332 : vector<1x96x64xf32> to vector<96x64xf32>
    %c2_i32_154 = arith.constant 2 : i32
    %334 = tpu.dynamic_rotate %331 by %c2_i32_154 dim 0 : vector<32x32xf32>, i32 -> vector<32x32xf32>
    %c0_155 = arith.constant 0 : index
    %c0_156 = arith.constant 0 : index
    %c0_157 = arith.constant 0 : index
    %335 = vector.load %arg2[%c0_155, %c0_156, %c0_157] : memref<5x32x32xf32, #tpu.memory_space<vmem>>, vector<1x32x32xf32>
    %336 = vector.shape_cast %335 : vector<1x32x32xf32> to vector<32x32xf32>
    %337 = arith.mulf %334, %336 : vector<32x32xf32>
    %c30_i32_158 = arith.constant 30 : i32
    %338 = tpu.dynamic_rotate %331 by %c30_i32_158 dim 0 : vector<32x32xf32>, i32 -> vector<32x32xf32>
    %c4_159 = arith.constant 4 : index
    %c0_160 = arith.constant 0 : index
    %c0_161 = arith.constant 0 : index
    %339 = vector.load %arg2[%c4_159, %c0_160, %c0_161] : memref<5x32x32xf32, #tpu.memory_space<vmem>>, vector<1x32x32xf32>
    %340 = vector.shape_cast %339 : vector<1x32x32xf32> to vector<32x32xf32>
    %341 = arith.mulf %338, %340 : vector<32x32xf32>
    %342 = tpu.concatenate %337, %331, %341 in 1 : vector<32x32xf32>, vector<32x32xf32>, vector<32x32xf32> -> vector<32x96xf32>
    %cst_162 = arith.constant dense<0.000000e+00> : vector<32x64xf32>
    %343 = tpu.matmul %342, %333, %cst_162 {dimension_numbers = #tpu.dot_dimension_numbers<[1], [0], [0], [1], [0, 0, 1, 1], [], []>} : vector<32x96xf32>, vector<96x64xf32>, vector<32x64xf32> -> vector<32x64xf32>
    %344 = vector.broadcast %308 : vector<1x64xf32> to vector<32x64xf32>
    %345 = arith.addf %343, %344 : vector<32x64xf32>
    %cst_163 = arith.constant 0.577350259 : f32
    %346 = vector.broadcast %cst_163 : f32 to vector<32x64xf32>
    %347 = arith.mulf %345, %346 : vector<32x64xf32>
    %cst_164 = arith.constant 5.000000e-01 : f32
    %348 = vector.broadcast %cst_164 : f32 to vector<32x64xf32>
    %349 = arith.mulf %348, %347 : vector<32x64xf32>
    %cst_165 = arith.constant 0.707106769 : f32
    %350 = vector.broadcast %cst_165 : f32 to vector<32x64xf32>
    %351 = arith.mulf %347, %350 : vector<32x64xf32>
    %cst_166 = arith.constant 0.000000e+00 : f32
    %352 = vector.broadcast %cst_166 : f32 to vector<32x64xf32>
    %353 = arith.cmpf oge, %351, %352 : vector<32x64xf32>
    %cst_167 = arith.constant 1.000000e+00 : f32
    %cst_168 = arith.constant -1.000000e+00 : f32
    %354 = vector.broadcast %cst_167 : f32 to vector<32x64xf32>
    %355 = vector.broadcast %cst_168 : f32 to vector<32x64xf32>
    %356 = arith.select %353, %354, %355 : vector<32x64xi1>, vector<32x64xf32>
    %357 = math.absf %351 : vector<32x64xf32>
    %cst_169 = arith.constant 0.327591091 : f32
    %358 = vector.broadcast %cst_169 : f32 to vector<32x64xf32>
    %359 = arith.mulf %358, %357 : vector<32x64xf32>
    %cst_170 = arith.constant 1.000000e+00 : f32
    %360 = vector.broadcast %cst_170 : f32 to vector<32x64xf32>
    %361 = arith.addf %360, %359 : vector<32x64xf32>
    %362 = tpu.reciprocal %361 : vector<32x64xf32> -> vector<32x64xf32>
    %cst_171 = arith.constant 1.06140542 : f32
    %363 = vector.broadcast %cst_171 : f32 to vector<32x64xf32>
    %364 = arith.mulf %362, %363 : vector<32x64xf32>
    %cst_172 = arith.constant -1.45315206 : f32
    %365 = vector.broadcast %cst_172 : f32 to vector<32x64xf32>
    %366 = arith.addf %365, %364 : vector<32x64xf32>
    %367 = arith.mulf %362, %366 : vector<32x64xf32>
    %cst_173 = arith.constant 1.42141378 : f32
    %368 = vector.broadcast %cst_173 : f32 to vector<32x64xf32>
    %369 = arith.addf %368, %367 : vector<32x64xf32>
    %370 = arith.mulf %362, %369 : vector<32x64xf32>
    %cst_174 = arith.constant -0.284496725 : f32
    %371 = vector.broadcast %cst_174 : f32 to vector<32x64xf32>
    %372 = arith.addf %371, %370 : vector<32x64xf32>
    %373 = arith.mulf %362, %372 : vector<32x64xf32>
    %cst_175 = arith.constant 0.254829586 : f32
    %374 = vector.broadcast %cst_175 : f32 to vector<32x64xf32>
    %375 = arith.addf %374, %373 : vector<32x64xf32>
    %376 = arith.mulf %362, %375 : vector<32x64xf32>
    %cst_176 = arith.constant 0.000000e+00 : f32
    %377 = vector.broadcast %cst_176 : f32 to vector<32x64xf32>
    %378 = arith.subf %377, %357 : vector<32x64xf32>
    %379 = arith.mulf %378, %357 : vector<32x64xf32>
    %380 = math.exp %379 : vector<32x64xf32>
    %381 = arith.mulf %376, %380 : vector<32x64xf32>
    %cst_177 = arith.constant 1.000000e+00 : f32
    %382 = vector.broadcast %cst_177 : f32 to vector<32x64xf32>
    %383 = arith.subf %382, %381 : vector<32x64xf32>
    %384 = arith.mulf %356, %383 : vector<32x64xf32>
    %cst_178 = arith.constant 1.000000e+00 : f32
    %385 = vector.broadcast %cst_178 : f32 to vector<32x64xf32>
    %386 = arith.addf %385, %384 : vector<32x64xf32>
    %387 = arith.mulf %349, %386 : vector<32x64xf32>
    %c3_179 = arith.constant 3 : index
    %c0_180 = arith.constant 0 : index
    %c0_181 = arith.constant 0 : index
    %388 = vector.load %arg5[%c3_179, %c0_180, %c0_181] : memref<4x64x32xf32, #tpu.memory_space<vmem>>, vector<1x64x32xf32>
    %389 = vector.shape_cast %388 : vector<1x64x32xf32> to vector<64x32xf32>
    %cst_182 = arith.constant dense<0.000000e+00> : vector<32x32xf32>
    %390 = tpu.matmul %387, %389, %cst_182 {dimension_numbers = #tpu.dot_dimension_numbers<[1], [0], [0], [1], [0, 0, 1, 1], [], []>} : vector<32x64xf32>, vector<64x32xf32>, vector<32x32xf32> -> vector<32x32xf32>
    %391 = vector.broadcast %309 : vector<1x32xf32> to vector<32x32xf32>
    %392 = arith.addf %390, %391 : vector<32x32xf32>
    %393 = arith.addf %305, %392 : vector<32x32xf32>
    %394 = vector.broadcast %215 : vector<32x1xf32> to vector<32x32xf32>
    %395 = arith.mulf %393, %394 : vector<32x32xf32>
    %c12 = arith.constant 12 : index
    %c0_183 = arith.constant 0 : index
    %396 = vector.load %arg7[%c12, %c0_183] : memref<15x64xf32, #tpu.memory_space<vmem>>, vector<1x32xf32>
    %c12_184 = arith.constant 12 : index
    %c32_185 = arith.constant 32 : index
    %397 = vector.load %arg7[%c12_184, %c32_185] : memref<15x64xf32, #tpu.memory_space<vmem>>, vector<1x32xf32>
    %c14 = arith.constant 14 : index
    %c0_186 = arith.constant 0 : index
    %398 = vector.load %arg7[%c14, %c0_186] : memref<15x64xf32, #tpu.memory_space<vmem>>, vector<1x16xf32>
    %399 = vector.broadcast %28 : vector<32x1xf32> to vector<32x32xf32>
    %400 = arith.mulf %395, %399 : vector<32x32xf32>
    %cst_187 = arith.constant dense<0.000000e+00> : vector<32xf32>
    %401 = vector.multi_reduction <add>, %400, %cst_187 [1] : vector<32x32xf32> to vector<32xf32>
    %402 = vector.shape_cast %401 : vector<32xf32> to vector<32x1xf32>
    %cst_188 = arith.constant 3.200000e+01 : f32
    %403 = vector.broadcast %cst_188 : f32 to vector<32x1xf32>
    %404 = arith.divf %402, %403 : vector<32x1xf32>
    %405 = arith.mulf %400, %400 : vector<32x32xf32>
    %cst_189 = arith.constant dense<0.000000e+00> : vector<32xf32>
    %406 = vector.multi_reduction <add>, %405, %cst_189 [1] : vector<32x32xf32> to vector<32xf32>
    %407 = vector.shape_cast %406 : vector<32xf32> to vector<32x1xf32>
    %cst_190 = arith.constant 3.200000e+01 : f32
    %408 = vector.broadcast %cst_190 : f32 to vector<32x1xf32>
    %409 = arith.divf %407, %408 : vector<32x1xf32>
    %410 = arith.mulf %404, %404 : vector<32x1xf32>
    %411 = arith.subf %409, %410 : vector<32x1xf32>
    %412 = vector.broadcast %404 : vector<32x1xf32> to vector<32x32xf32>
    %413 = arith.subf %400, %412 : vector<32x32xf32>
    %cst_191 = arith.constant 9.99999974E-6 : f32
    %414 = vector.broadcast %cst_191 : f32 to vector<32x1xf32>
    %415 = arith.addf %411, %414 : vector<32x1xf32>
    %416 = math.rsqrt %415 : vector<32x1xf32>
    %417 = vector.broadcast %416 : vector<32x1xf32> to vector<32x32xf32>
    %418 = arith.mulf %413, %417 : vector<32x32xf32>
    %419 = vector.broadcast %396 : vector<1x32xf32> to vector<32x32xf32>
    %420 = arith.mulf %418, %419 : vector<32x32xf32>
    %421 = vector.broadcast %397 : vector<1x32xf32> to vector<32x32xf32>
    %422 = arith.addf %420, %421 : vector<32x32xf32>
    %423 = vector.broadcast %28 : vector<32x1xf32> to vector<32x32xf32>
    %424 = arith.mulf %422, %423 : vector<32x32xf32>
    %c0_192 = arith.constant 0 : index
    %c0_193 = arith.constant 0 : index
    %425 = vector.load %arg6[%c0_192, %c0_193] : memref<96x16xf32, #tpu.memory_space<vmem>>, vector<96x16xf32>
    %c1_i32_194 = arith.constant 1 : i32
    %426 = tpu.dynamic_rotate %424 by %c1_i32_194 dim 0 : vector<32x32xf32>, i32 -> vector<32x32xf32>
    %c1_195 = arith.constant 1 : index
    %c0_196 = arith.constant 0 : index
    %c0_197 = arith.constant 0 : index
    %427 = vector.load %arg2[%c1_195, %c0_196, %c0_197] : memref<5x32x32xf32, #tpu.memory_space<vmem>>, vector<1x32x32xf32>
    %428 = vector.shape_cast %427 : vector<1x32x32xf32> to vector<32x32xf32>
    %429 = arith.mulf %426, %428 : vector<32x32xf32>
    %c31_i32_198 = arith.constant 31 : i32
    %430 = tpu.dynamic_rotate %424 by %c31_i32_198 dim 0 : vector<32x32xf32>, i32 -> vector<32x32xf32>
    %c3_199 = arith.constant 3 : index
    %c0_200 = arith.constant 0 : index
    %c0_201 = arith.constant 0 : index
    %431 = vector.load %arg2[%c3_199, %c0_200, %c0_201] : memref<5x32x32xf32, #tpu.memory_space<vmem>>, vector<1x32x32xf32>
    %432 = vector.shape_cast %431 : vector<1x32x32xf32> to vector<32x32xf32>
    %433 = arith.mulf %430, %432 : vector<32x32xf32>
    %434 = tpu.concatenate %429, %424, %433 in 1 : vector<32x32xf32>, vector<32x32xf32>, vector<32x32xf32> -> vector<32x96xf32>
    %cst_202 = arith.constant dense<0.000000e+00> : vector<32x16xf32>
    %435 = tpu.matmul %434, %425, %cst_202 {dimension_numbers = #tpu.dot_dimension_numbers<[1], [0], [0], [1], [0, 0, 1, 1], [], []>} : vector<32x96xf32>, vector<96x16xf32>, vector<32x16xf32> -> vector<32x16xf32>
    %436 = vector.broadcast %398 : vector<1x16xf32> to vector<32x16xf32>
    %437 = arith.addf %435, %436 : vector<32x16xf32>
    %438 = vector.broadcast %28 : vector<32x1xf32> to vector<32x16xf32>
    %439 = arith.mulf %437, %438 : vector<32x16xf32>
    %c0_203 = arith.constant 0 : index
    %c0_204 = arith.constant 0 : index
    %440 = vector.load %arg8[%c0_203, %c0_204] : memref<32x16xf32, #tpu.memory_space<vmem>>, vector<32x16xf32>
    tpu.vector_store %arg8[%c0_203, %c0_204], %439 {strides = array<i32>} : memref<32x16xf32, #tpu.memory_space<vmem>>, vector<32x16xf32>,
    return
  }
}

</mosaic_0001>

<llo_original>
// kernel: conditional_conv_blocks.1
$region0: #{conditional_conv_blocks.1}
  #allocation0 [shape = 'u32[]', space=smem, size = 0x4, offset = 0x4, fixed_abs, tag = 'smem constant byte address 0x4 - core index']
  #allocation1 [shape = 'u32[144,128]{1,0:T(1,128)}', space=vmem, size = 0x12000, scoped, tag = 'internal scratch']
  %s0 = inlined_call_operand.vmem [shape: f32[32,32], index: 0, kind: input, shape index: {}]
  %s1 = inlined_call_operand.vmem [shape: f32[32,16], index: 1, kind: input, shape index: {}]
  %s2 = inlined_call_operand.vmem [shape: f32[5,32,32], index: 2, kind: input, shape index: {}]
  %s3 = inlined_call_operand.vmem [shape: f32[48,32], index: 3, kind: input, shape index: {}]
  %s4 = inlined_call_operand.vmem [shape: f32[4,96,64], index: 4, kind: input, shape index: {}]
  %s5 = inlined_call_operand.vmem [shape: f32[4,64,32], index: 5, kind: input, shape index: {}]
  %s6 = inlined_call_operand.vmem [shape: f32[96,16], index: 6, kind: input, shape index: {}]
  %s7 = inlined_call_operand.vmem [shape: f32[15,64], index: 7, kind: input, shape index: {}]
  %s8 = inlined_call_operand.hbm [shape: f32[32,16], index: 8, kind: output, shape index: {}]
  %s9 = sld [smem:[#allocation0]]
  $region42: #{conditional_conv_blocks.1} parent=0
    _
  %s11 = ssub.s32 1, %s9
  %s12 = scalar_select 0, %s11, %s9
  $region1: #{conditional_conv_blocks.1} parent=0
    #allocation2 [shape = 'u8[16384]{0}', space=vmem, size = 0x4000, scoped, tag = 'output window, operand 0, single buffered']
    #allocation3 [shape = 's32[1]{0}', space=sflag, size = 0x4, scoped, tag = 'scoped memory for conditional_conv_blocks.1']
    %13 = vsyncpa [#allocation3], 0
    // Predicated region
    $region2: #{conditional_conv_blocks.1} parent=1 // pred_check
      _
    $region3: #{conditional_conv_blocks.1} parent=1 // pred_check_branch
      %15 = sbr.rel (0) target = $region5
    $region4: #{conditional_conv_blocks.1} parent=1 // pred_region
      _
    $region5: #{conditional_conv_blocks.1} parent=1 // pred_fallthru
      _
    // Predicated region
    $region6: #{conditional_conv_blocks.1} parent=1 // pred_check
      _
    $region7: #{conditional_conv_blocks.1} parent=1 // pred_check_branch
      %17 = sbr.rel (0) target = $region9
    $region8: #{conditional_conv_blocks.1} parent=1 // pred_region
      _
    $region9: #{conditional_conv_blocks.1} parent=1 // pred_fallthru
      _
    // Predicated region
    $region10: #{conditional_conv_blocks.1} parent=1 // pred_check
      _
    $region11: #{conditional_conv_blocks.1} parent=1 // pred_check_branch
      %19 = sbr.rel (0) target = $region13
    $region12: #{conditional_conv_blocks.1} parent=1 // pred_region
      _
    $region13: #{conditional_conv_blocks.1} parent=1 // pred_fallthru
      _
    // Predicated region
    $region14: #{conditional_conv_blocks.1} parent=1 // pred_check
      _
    $region15: #{conditional_conv_blocks.1} parent=1 // pred_check_branch
      %21 = sbr.rel (0) target = $region17
    $region16: #{conditional_conv_blocks.1} parent=1 // pred_region
      _
    $region17: #{conditional_conv_blocks.1} parent=1 // pred_fallthru
      _
    // Predicated region
    $region18: #{conditional_conv_blocks.1} parent=1 // pred_check
      _
    $region19: #{conditional_conv_blocks.1} parent=1 // pred_check_branch
      %23 = sbr.rel (0) target = $region21
    $region20: #{conditional_conv_blocks.1} parent=1 // pred_region
      _
    $region21: #{conditional_conv_blocks.1} parent=1 // pred_fallthru
      _
    // Predicated region
    $region22: #{conditional_conv_blocks.1} parent=1 // pred_check
      _
    $region23: #{conditional_conv_blocks.1} parent=1 // pred_check_branch
      %25 = sbr.rel (0) target = $region25
    $region24: #{conditional_conv_blocks.1} parent=1 // pred_region
      _
    $region25: #{conditional_conv_blocks.1} parent=1 // pred_fallthru
      _
    // Predicated region
    $region26: #{conditional_conv_blocks.1} parent=1 // pred_check
      _
    $region27: #{conditional_conv_blocks.1} parent=1 // pred_check_branch
      %27 = sbr.rel (0) target = $region29
    $region28: #{conditional_conv_blocks.1} parent=1 // pred_region
      _
    $region29: #{conditional_conv_blocks.1} parent=1 // pred_fallthru
      _
    // Predicated region
    $region30: #{conditional_conv_blocks.1} parent=1 // pred_check
      _
    $region31: #{conditional_conv_blocks.1} parent=1 // pred_check_branch
      %29 = sbr.rel (0) target = $region33
    $region32: #{conditional_conv_blocks.1} parent=1 // pred_region
      _
    $region33: #{conditional_conv_blocks.1} parent=1 // pred_fallthru
      _
    %v30 = vld [vmem:[%s0] sm:$0xff]
    %v31 = vld [vmem:[%s0 + $0x8] sm:$0xff]
    %v32 = vld [vmem:[%s0 + $0x10] sm:$0xff]
    %v33 = vld [vmem:[%s0 + $0x18] sm:$0xff]
    %v34 = vld [vmem:[%s1] sm:$0xff]
    %v35 = vld [vmem:[%s1 + $0x8] sm:$0xff]
    %v36 = vld [vmem:[%s1 + $0x10] sm:$0xff]
    %v37 = vld [vmem:[%s1 + $0x18] sm:$0xff]
    %v38 = vand.u32 2147483647, %v30
    %v39 = vand.u32 2147483647, %v31
    %v40 = vand.u32 2147483647, %v32
    %v41 = vand.u32 2147483647, %v33
    %vm42 = vcmask 261120
    %v43 = vsel %vm42, %v38, 0.0
    %44 = vadd.xlane.f32.xlu0 %v43
    %v45 = vpop.xlane.xlu0 %44
    %v46 = vsel %vm42, %v39, 0.0
    %47 = vadd.xlane.f32.xlu0 %v46
    %v48 = vpop.xlane.xlu0 %47
    %v49 = vsel %vm42, %v40, 0.0
    %50 = vadd.xlane.f32.xlu0 %v49
    %v51 = vpop.xlane.xlu0 %50
    %v52 = vsel %vm42, %v41, 0.0
    %53 = vadd.xlane.f32.xlu0 %v52
    %v54 = vpop.xlane.xlu0 %53
    %v55 = vld [vmem:[%s7 + $0xd] sm:$0x1]
    %v56 = vld [vmem:[%s3] sm:$0xff]
    %v57 = vld [vmem:[%s3 + $0x8] sm:$0xff]
    %v58 = vld [vmem:[%s3 + $0x10] sm:$0xff]
    %v59 = vld [vmem:[%s3 + $0x18] sm:$0xff]
    %v60 = vld [vmem:[%s3 + $0x20] sm:$0xff]
    %v61 = vld [vmem:[%s3 + $0x28] sm:$0xff]
    %v62 = vrot.slane %v34, 7
    %v63 = vrot.slane %v35, 7
    %v64 = vrot.slane %v36, 7
    %v65 = vrot.slane %v37, 7
    %v66 = vlaneseq
    %v67 = vshrl.u32 %v66, 7
    %vm68 = vcmp.lt.s32.totalorder %v67, 1
    %v69 = vsel %vm68, %v64, %v65
    %v70 = vsel %vm68, %v63, %v64
    %v71 = vsel %vm68, %v62, %v63
    %v72 = vsel %vm68, %v65, %v62
    %s73 = scalar_lea.vmem %s2, 32
    %v74 = vld [vmem:[%s73] sm:$0xff]
    %v75 = vld [vmem:[%s73 + $0x8] sm:$0xff]
    %v76 = vld [vmem:[%s73 + $0x10] sm:$0xff]
    %v77 = vld [vmem:[%s73 + $0x18] sm:$0xff]
    %v78 = vmul.f32 %v72, %v74
    %v79 = vmul.f32 %v71, %v75
    %v80 = vmul.f32 %v70, %v76
    %v81 = vmul.f32 %v69, %v77
    %v82 = vrot.slane %v34, 1
    %v83 = vrot.slane %v35, 1
    %v84 = vrot.slane %v36, 1
    %v85 = vrot.slane %v37, 1
    %vm86 = vcmp.lt.s32.totalorder %v67, 7
    %v87 = vsel %vm86, %v84, %v85
    %v88 = vsel %vm86, %v83, %v84
    %v89 = vsel %vm86, %v82, %v83
    %v90 = vsel %vm86, %v85, %v82
    %s91 = scalar_lea.vmem %s2, 96
    %v92 = vld [vmem:[%s91] sm:$0xff]
    %v93 = vld [vmem:[%s91 + $0x8] sm:$0xff]
    %v94 = vld [vmem:[%s91 + $0x10] sm:$0xff]
    %v95 = vld [vmem:[%s91 + $0x18] sm:$0xff]
    %v96 = vmul.f32 %v89, %v92
    %v97 = vmul.f32 %v88, %v93
    %v98 = vmul.f32 %v87, %v94
    %v99 = vmul.f32 %v90, %v95
    %104 = vrot.lane.b32.xlu0 %v34, 16
    %v105 = vpop.permute.xlu0 %104
    %106 = vrot.lane.b32.xlu0 %v35, 16
    %v107 = vpop.permute.xlu0 %106
    %108 = vrot.lane.b32.xlu0 %v36, 16
    %v109 = vpop.permute.xlu0 %108
    %110 = vrot.lane.b32.xlu0 %v37, 16
    %v111 = vpop.permute.xlu0 %110
    %120 = vrot.lane.b32.xlu0 %v96, 32
    %v121 = vpop.permute.xlu0 %120
    %122 = vrot.lane.b32.xlu0 %v97, 32
    %v123 = vpop.permute.xlu0 %122
    %124 = vrot.lane.b32.xlu0 %v98, 32
    %v125 = vpop.permute.xlu0 %124
    %126 = vrot.lane.b32.xlu0 %v99, 32
    %v127 = vpop.permute.xlu0 %126
    %vm132 = vcmask 130048
    %v133 = vsel %vm132, %v78, %v105
    %v134 = vsel %vm132, %v79, %v107
    %v135 = vsel %vm132, %v80, %v109
    %v136 = vsel %vm132, %v81, %v111
    %v137 = vsel %vm42, %v133, %v121
    %v138 = vsel %vm42, %v134, %v123
    %v139 = vsel %vm42, %v135, %v125
    %v140 = vsel %vm42, %v136, %v127
    %v141 = vlaneseq
    %v142 = vshrl.u32 %v141, 7
    %v143 = vsub.s32 0, %v142
    %v144 = vrot.slane %v55, %v143
    %vm145 = vcmask 392192
    %v147 = vsel %vm145, %v137, 0
    %v150 = vsel %vm145, %v138, 0
    %v153 = vsel %vm145, %v139, 0
    %v156 = vsel %vm145, %v140, 0
    %158 = vmatprep.subr.mxu0 0.0
    %159 = vmatpush1.msra.mxu0 %v56
    %160 = vmatprep.subr.mxu0 0.0
    %161 = vmatpush1.msra.mxu0 %v57
    %162 = vmatprep.subr.mxu0 0.0
    %163 = vmatpush1.msra.mxu0 %v58
    %164 = vmatprep.subr.mxu0 0.0
    %165 = vmatpush1.msra.mxu0 %v59
    %166 = vmatprep.subr.mxu0 0.0
    %167 = vmatpush1.msra.mxu0 %v60
    %168 = vmatprep.subr.mxu0 0.0
    %169 = vmatpush1.msra.mxu0 %v61
    %170 = vmatprep.subr.mxu0 0.0
    %171 = vmatpush1.msra.mxu0 0.0
    %172 = vmatprep.subr.mxu0 0.0
    %173 = vmatpush1.msra.mxu0 0.0
    %174 = vmatprep.subr.mxu0 0.0
    %175 = vmatpush1.msra.mxu0 0.0
    %176 = vmatprep.subr.mxu0 0.0
    %177 = vmatpush1.msra.mxu0 0.0
    %178 = vmatprep.subr.mxu0 0.0
    %179 = vmatpush1.msra.mxu0 0.0
    %180 = vmatprep.subr.mxu0 0.0
    %181 = vmatpush1.msra.mxu0 0.0
    %182 = vmatprep.subr.mxu0 0.0
    %183 = vmatpush1.msra.mxu0 0.0
    %184 = vmatprep.subr.mxu0 0.0
    %185 = vmatpush1.msra.mxu0 0.0
    %186 = vmatprep.subr.mxu0 0.0
    %187 = vmatpush1.msra.mxu0 0.0
    %188 = vmatprep.subr.mxu0 0.0
    %189 = vmatpush1.msra.mxu0 0.0
    %190 = vmatprep.subr.mxu0 0.0
    %191 = vmatpush1.msra.mxu0 0.0
    %192 = vmatprep.subr.mxu0 0.0
    %193 = vmatpush1.msra.mxu0 0.0
    %194 = vmatprep.subr.mxu0 0.0
    %195 = vmatpush1.msra.mxu0 0.0
    %196 = vmatprep.subr.mxu0 0.0
    %197 = vmatpush1.msra.mxu0 0.0
    %198 = vmatprep.subr.mxu0 0.0
    %199 = vmatpush1.msra.mxu0 0.0
    %200 = vmatprep.subr.mxu0 0.0
    %201 = vmatpush1.msra.mxu0 0.0
    %202 = vmatprep.subr.mxu0 0.0
    %203 = vmatpush1.msra.mxu0 0.0
    %204 = vmatprep.subr.mxu0 0.0
    %205 = vmatpush1.msra.mxu0 0.0
    %206 = vmatprep.subr.mxu0 0.0
    %207 = vmatpush1.msra.mxu0 0.0
    %208 = vmatprep.subr.mxu0 0.0
    %209 = vmatpush1.msra.mxu0 0.0
    %210 = vmatprep.subr.mxu0 0.0
    %211 = vmatpush1.msra.mxu0 0.0
    %212 = vmatprep.subr.mxu0 0.0
    %213 = vmatpush1.msra.mxu0 0.0
    %214 = vmatprep.subr.mxu0 0.0
    %215 = vmatpush1.msra.mxu0 0.0
    %216 = vmatprep.subr.mxu0 0.0
    %217 = vmatpush1.msra.mxu0 0.0
    %218 = vmatprep.subr.mxu0 0.0
    %219 = vmatpush1.msra.mxu0 0.0
    %220 = vmatprep.subr.mxu0 0.0
    %221 = vmatpush1.msra.mxu0 0.0
    %222 = vmatprep.mubr.f32.mxu0 0.0
    %223 = vmatmul.mubr.f32.gmra.mrb[0].mxu0 %v147
    %v224 = vpop.f32.mrb[0].mxu0
    %v225 = vadd.f32 %v144, %v224
    %v226 = vpop.f32.mrb[0].mxu0
    %227 = vmatprep.mubr.f32.mxu0 0.0
    %228 = vmatmul.mubr.f32.gmra.mrb[0].mxu0 %v150
    %v229 = vpop.f32.mrb[0].mxu0
    %v230 = vadd.f32 %v144, %v229
    %v231 = vpop.f32.mrb[0].mxu0
    %232 = vmatprep.mubr.f32.mxu0 0.0
    %233 = vmatmul.mubr.f32.gmra.mrb[0].mxu0 %v153
    %v234 = vpop.f32.mrb[0].mxu0
    %v235 = vadd.f32 %v144, %v234
    %v236 = vpop.f32.mrb[0].mxu0
    %237 = vmatprep.mubr.f32.mxu0 0.0
    %238 = vmatmul.mubr.f32.gmra.mrb[0].mxu0 %v156
    %v239 = vpop.f32.mrb[0].mxu0
    %v240 = vadd.f32 %v144, %v239
    %v241 = vpop.f32.mrb[0].mxu0
    %242 = vdwg.mxu0
    %v243 = vadd.f32 %v30, %v225
    %v244 = vadd.f32 %v31, %v230
    %v245 = vadd.f32 %v32, %v235
    %v246 = vadd.f32 %v33, %v240
    %v247 = vmul.f32 %v243, %v45
    %v248 = vmul.f32 %v244, %v48
    %v249 = vmul.f32 %v245, %v51
    %v250 = vmul.f32 %v246, %v54
    %v251 = vand.u32 2147483647, %v247
    %v252 = vand.u32 2147483647, %v248
    %v253 = vand.u32 2147483647, %v249
    %v254 = vand.u32 2147483647, %v250
    %v255 = vsel %vm42, %v251, 0.0
    %256 = vadd.xlane.f32.xlu0 %v255
    %v257 = vpop.xlane.xlu0 %256
    %v258 = vsel %vm42, %v252, 0.0
    %259 = vadd.xlane.f32.xlu0 %v258
    %v260 = vpop.xlane.xlu0 %259
    %v261 = vsel %vm42, %v253, 0.0
    %262 = vadd.xlane.f32.xlu0 %v261
    %v263 = vpop.xlane.xlu0 %262
    %v264 = vsel %vm42, %v254, 0.0
    %265 = vadd.xlane.f32.xlu0 %v264
    %v266 = vpop.xlane.xlu0 %265
    %vm267 = vcmp.gt.f32.partialorder %v257, 0.0
    %vm268 = vcmp.gt.f32.partialorder %v260, 0.0
    %vm269 = vcmp.gt.f32.partialorder %v263, 0.0
    %vm270 = vcmp.gt.f32.partialorder %v266, 0.0
    %v271 = vsel %vm267, 1, 0
    %v272 = vsel %vm268, 1, 0
    %v273 = vsel %vm269, 1, 0
    %v274 = vsel %vm270, 1, 0
    %v275 = vcvt.s32.f32 %v271
    %v276 = vcvt.s32.f32 %v272
    %v277 = vcvt.s32.f32 %v273
    %v278 = vcvt.s32.f32 %v274
    %v279 = vld [vmem:[%s7] sm:$0x1]
    %v280 = vld [vmem:[%s7 + $0x4] sm:$0x1]
    %v281 = vld [vmem:[%s7 + $0x8] sm:$0x1]
    %v282 = vsel %vm42, %v247, 0.0
    %283 = vadd.xlane.f32.xlu0 %v282
    %v284 = vpop.xlane.xlu0 %283
    %v285 = vsel %vm42, %v248, 0.0
    %286 = vadd.xlane.f32.xlu0 %v285
    %v287 = vpop.xlane.xlu0 %286
    %v288 = vsel %vm42, %v249, 0.0
    %289 = vadd.xlane.f32.xlu0 %v288
    %v290 = vpop.xlane.xlu0 %289
    %v291 = vsel %vm42, %v250, 0.0
    %292 = vadd.xlane.f32.xlu0 %v291
    %v293 = vpop.xlane.xlu0 %292
    %v294 = vrcp.pop 32.0
    %v295 = vmul.f32 %v284, %v294
    %v296 = vmul.f32 %v287, %v294
    %v297 = vmul.f32 %v290, %v294
    %v298 = vmul.f32 %v293, %v294
    %v299 = vmul.f32 %v247, %v247
    %v300 = vmul.f32 %v248, %v248
    %v301 = vmul.f32 %v249, %v249
    %v302 = vmul.f32 %v250, %v250
    %v303 = vsel %vm42, %v299, 0.0
    %304 = vadd.xlane.f32.xlu0 %v303
    %v305 = vpop.xlane.xlu0 %304
    %v306 = vsel %vm42, %v300, 0.0
    %307 = vadd.xlane.f32.xlu0 %v306
    %v308 = vpop.xlane.xlu0 %307
    %v309 = vsel %vm42, %v301, 0.0
    %310 = vadd.xlane.f32.xlu0 %v309
    %v311 = vpop.xlane.xlu0 %310
    %v312 = vsel %vm42, %v302, 0.0
    %313 = vadd.xlane.f32.xlu0 %v312
    %v314 = vpop.xlane.xlu0 %313
    %v315 = vmul.f32 %v305, %v294
    %v316 = vmul.f32 %v308, %v294
    %v317 = vmul.f32 %v311, %v294
    %v318 = vmul.f32 %v314, %v294
    %v319 = vmul.f32 %v295, %v295
    %v320 = vmul.f32 %v296, %v296
    %v321 = vmul.f32 %v297, %v297
    %v322 = vmul.f32 %v298, %v298
    %v323 = vsub.f32 %v315, %v319
    %v324 = vsub.f32 %v316, %v320
    %v325 = vsub.f32 %v317, %v321
    %v326 = vsub.f32 %v318, %v322
    %v327 = vsub.f32 %v247, %v295
    %v328 = vsub.f32 %v248, %v296
    %v329 = vsub.f32 %v249, %v297
    %v330 = vsub.f32 %v250, %v298
    %v331 = vadd.f32 %v323, 1e-05
    %v332 = vadd.f32 %v324, 1e-05
    %v333 = vadd.f32 %v325, 1e-05
    %v334 = vadd.f32 %v326, 1e-05
    %v335 = vrsqrt.pop %v331
    %v336 = vrsqrt.pop %v332
    %v337 = vrsqrt.pop %v333
    %v338 = vrsqrt.pop %v334
    %v339 = vmul.f32 %v327, %v335
    %v340 = vmul.f32 %v328, %v336
    %v341 = vmul.f32 %v329, %v337
    %v342 = vmul.f32 %v330, %v338
    %v343 = vlaneseq
    %v344 = vshrl.u32 %v343, 7
    %v345 = vsub.s32 0, %v344
    %v346 = vrot.slane %v279, %v345
    %v347 = vmul.f32 %v339, %v346
    %v348 = vmul.f32 %v340, %v346
    %v349 = vmul.f32 %v341, %v346
    %v350 = vmul.f32 %v342, %v346
    %352 = vrot.lane.b32.xlu0 %v346, 96
    %v353 = vpop.permute.xlu0 %352
    %v355 = vadd.f32 %v347, %v353
    %v356 = vadd.f32 %v348, %v353
    %v357 = vadd.f32 %v349, %v353
    %v358 = vadd.f32 %v350, %v353
    %v359 = vld [vmem:[%s4] sm:$0xff]
    %v360 = vld [vmem:[%s4 + $0x8] sm:$0xff]
    %v361 = vld [vmem:[%s4 + $0x10] sm:$0xff]
    %v362 = vld [vmem:[%s4 + $0x18] sm:$0xff]
    %v363 = vld [vmem:[%s4 + $0x20] sm:$0xff]
    %v364 = vld [vmem:[%s4 + $0x28] sm:$0xff]
    %v365 = vld [vmem:[%s4 + $0x30] sm:$0xff]
    %v366 = vld [vmem:[%s4 + $0x38] sm:$0xff]
    %v367 = vld [vmem:[%s4 + $0x40] sm:$0xff]
    %v368 = vld [vmem:[%s4 + $0x48] sm:$0xff]
    %v369 = vld [vmem:[%s4 + $0x50] sm:$0xff]
    %v370 = vld [vmem:[%s4 + $0x58] sm:$0xff]
    %v371 = vrot.slane %v355, 7
    %v372 = vrot.slane %v356, 7
    %v373 = vrot.slane %v357, 7
    %v374 = vrot.slane %v358, 7
    %v375 = vsel %vm68, %v373, %v374
    %v376 = vsel %vm68, %v372, %v373
    %v377 = vsel %vm68, %v371, %v372
    %v378 = vsel %vm68, %v374, %v371
    %v379 = vmul.f32 %v378, %v74
    %v380 = vmul.f32 %v377, %v75
    %v381 = vmul.f32 %v376, %v76
    %v382 = vmul.f32 %v375, %v77
    %v383 = vrot.slane %v355, 1
    %v384 = vrot.slane %v356, 1
    %v385 = vrot.slane %v357, 1
    %v386 = vrot.slane %v358, 1
    %v387 = vsel %vm86, %v385, %v386
    %v388 = vsel %vm86, %v384, %v385
    %v389 = vsel %vm86, %v383, %v384
    %v390 = vsel %vm86, %v386, %v383
    %v391 = vmul.f32 %v389, %v92
    %v392 = vmul.f32 %v388, %v93
    %v393 = vmul.f32 %v387, %v94
    %v394 = vmul.f32 %v390, %v95
    %399 = vrot.lane.b32.xlu0 %v355, 32
    %v400 = vpop.permute.xlu0 %399
    %401 = vrot.lane.b32.xlu0 %v356, 32
    %v402 = vpop.permute.xlu0 %401
    %403 = vrot.lane.b32.xlu0 %v357, 32
    %v404 = vpop.permute.xlu0 %403
    %405 = vrot.lane.b32.xlu0 %v358, 32
    %v406 = vpop.permute.xlu0 %405
    %415 = vrot.lane.b32.xlu0 %v391, 64
    %v416 = vpop.permute.xlu0 %415
    %417 = vrot.lane.b32.xlu0 %v392, 64
    %v418 = vpop.permute.xlu0 %417
    %419 = vrot.lane.b32.xlu0 %v393, 64
    %v420 = vpop.permute.xlu0 %419
    %421 = vrot.lane.b32.xlu0 %v394, 64
    %v422 = vpop.permute.xlu0 %421
    %v427 = vsel %vm42, %v379, %v400
    %v428 = vsel %vm42, %v380, %v402
    %v429 = vsel %vm42, %v381, %v404
    %v430 = vsel %vm42, %v382, %v406
    %vm431 = vcmask 523264
    %v432 = vsel %vm431, %v427, %v416
    %v433 = vsel %vm431, %v428, %v418
    %v434 = vsel %vm431, %v429, %v420
    %v435 = vsel %vm431, %v430, %v422
    %v436 = vlaneseq
    %v437 = vshrl.u32 %v436, 7
    %v438 = vsub.s32 0, %v437
    %v439 = vrot.slane %v280, %v438
    %vm440 = vcmask 785408
    %v442 = vsel %vm440, %v432, 0
    %v445 = vsel %vm440, %v433, 0
    %v448 = vsel %vm440, %v434, 0
    %v451 = vsel %vm440, %v435, 0
    %453 = vmatprep.subr.mxu0 0.0
    %454 = vmatpush1.msra.mxu0 %v359
    %455 = vmatprep.subr.mxu0 0.0
    %456 = vmatpush1.msra.mxu0 %v360
    %457 = vmatprep.subr.mxu0 0.0
    %458 = vmatpush1.msra.mxu0 %v361
    %459 = vmatprep.subr.mxu0 0.0
    %460 = vmatpush1.msra.mxu0 %v362
    %461 = vmatprep.subr.mxu0 0.0
    %462 = vmatpush1.msra.mxu0 %v363
    %463 = vmatprep.subr.mxu0 0.0
    %464 = vmatpush1.msra.mxu0 %v364
    %465 = vmatprep.subr.mxu0 0.0
    %466 = vmatpush1.msra.mxu0 %v365
    %467 = vmatprep.subr.mxu0 0.0
    %468 = vmatpush1.msra.mxu0 %v366
    %469 = vmatprep.subr.mxu0 0.0
    %470 = vmatpush1.msra.mxu0 %v367
    %471 = vmatprep.subr.mxu0 0.0
    %472 = vmatpush1.msra.mxu0 %v368
    %473 = vmatprep.subr.mxu0 0.0
    %474 = vmatpush1.msra.mxu0 %v369
    %475 = vmatprep.subr.mxu0 0.0
    %476 = vmatpush1.msra.mxu0 %v370
    %477 = vmatprep.subr.mxu0 0.0
    %478 = vmatpush1.msra.mxu0 0.0
    %479 = vmatprep.subr.mxu0 0.0
    %480 = vmatpush1.msra.mxu0 0.0
    %481 = vmatprep.subr.mxu0 0.0
    %482 = vmatpush1.msra.mxu0 0.0
    %483 = vmatprep.subr.mxu0 0.0
    %484 = vmatpush1.msra.mxu0 0.0
    %485 = vmatprep.subr.mxu0 0.0
    %486 = vmatpush1.msra.mxu0 0.0
    %487 = vmatprep.subr.mxu0 0.0
    %488 = vmatpush1.msra.mxu0 0.0
    %489 = vmatprep.subr.mxu0 0.0
    %490 = vmatpush1.msra.mxu0 0.0
    %491 = vmatprep.subr.mxu0 0.0
    %492 = vmatpush1.msra.mxu0 0.0
    %493 = vmatprep.subr.mxu0 0.0
    %494 = vmatpush1.msra.mxu0 0.0
    %495 = vmatprep.subr.mxu0 0.0
    %496 = vmatpush1.msra.mxu0 0.0
    %497 = vmatprep.subr.mxu0 0.0
    %498 = vmatpush1.msra.mxu0 0.0
    %499 = vmatprep.subr.mxu0 0.0
    %500 = vmatpush1.msra.mxu0 0.0
    %501 = vmatprep.subr.mxu0 0.0
    %502 = vmatpush1.msra.mxu0 0.0
    %503 = vmatprep.subr.mxu0 0.0
    %504 = vmatpush1.msra.mxu0 0.0
    %505 = vmatprep.subr.mxu0 0.0
    %506 = vmatpush1.msra.mxu0 0.0
    %507 = vmatprep.subr.mxu0 0.0
    %508 = vmatpush1.msra.mxu0 0.0
    %509 = vmatprep.subr.mxu0 0.0
    %510 = vmatpush1.msra.mxu0 0.0
    %511 = vmatprep.subr.mxu0 0.0
    %512 = vmatpush1.msra.mxu0 0.0
    %513 = vmatprep.subr.mxu0 0.0
    %514 = vmatpush1.msra.mxu0 0.0
    %515 = vmatprep.subr.mxu0 0.0
    %516 = vmatpush1.msra.mxu0 0.0
    %517 = vmatprep.mubr.f32.mxu0 0.0
    %518 = vmatmul.mubr.f32.gmra.mrb[0].mxu0 %v442
    %v519 = vpop.f32.mrb[0].mxu0
    %v520 = vadd.f32 %v439, %v519
    %v521 = vpop.f32.mrb[0].mxu0
    %522 = vmatprep.mubr.f32.mxu0 0.0
    %523 = vmatmul.mubr.f32.gmra.mrb[0].mxu0 %v445
    %v524 = vpop.f32.mrb[0].mxu0
    %v525 = vadd.f32 %v439, %v524
    %v526 = vpop.f32.mrb[0].mxu0
    %527 = vmatprep.mubr.f32.mxu0 0.0
    %528 = vmatmul.mubr.f32.gmra.mrb[0].mxu0 %v448
    %v529 = vpop.f32.mrb[0].mxu0
    %v530 = vadd.f32 %v439, %v529
    %v531 = vpop.f32.mrb[0].mxu0
    %532 = vmatprep.mubr.f32.mxu0 0.0
    %533 = vmatmul.mubr.f32.gmra.mrb[0].mxu0 %v451
    %v534 = vpop.f32.mrb[0].mxu0
    %v535 = vadd.f32 %v439, %v534
    %v536 = vpop.f32.mrb[0].mxu0
    %537 = vdwg.mxu0
    %v538 = vmul.f32 %v520, 0.57735026
    %v539 = vmul.f32 %v525, 0.57735026
    %v540 = vmul.f32 %v530, 0.57735026
    %v541 = vmul.f32 %v535, 0.57735026
    %v542 = vmul.f32 %v538, 0.5
    %v543 = vmul.f32 %v539, 0.5
    %v544 = vmul.f32 %v540, 0.5
    %v545 = vmul.f32 %v541, 0.5
    %v546 = vmul.f32 %v538, 0.70710677
    %v547 = vmul.f32 %v539, 0.70710677
    %v548 = vmul.f32 %v540, 0.70710677
    %v549 = vmul.f32 %v541, 0.70710677
    %vm550 = vcmp.ge.f32.partialorder %v546, 0.0
    %vm551 = vcmp.ge.f32.partialorder %v547, 0.0
    %vm552 = vcmp.ge.f32.partialorder %v548, 0.0
    %vm553 = vcmp.ge.f32.partialorder %v549, 0.0
    %v554 = vsel %vm550, 1.0, -1.0
    %v555 = vsel %vm551, 1.0, -1.0
    %v556 = vsel %vm552, 1.0, -1.0
    %v557 = vsel %vm553, 1.0, -1.0
    %v558 = vand.u32 2147483647, %v546
    %v559 = vand.u32 2147483647, %v547
    %v560 = vand.u32 2147483647, %v548
    %v561 = vand.u32 2147483647, %v549
    %v562 = vmul.f32 %v558, 0.3275911
    %v563 = vmul.f32 %v559, 0.3275911
    %v564 = vmul.f32 %v560, 0.3275911
    %v565 = vmul.f32 %v561, 0.3275911
    %v566 = vadd.f32 %v562, 1.0
    %v567 = vadd.f32 %v563, 1.0
    %v568 = vadd.f32 %v564, 1.0
    %v569 = vadd.f32 %v565, 1.0
    %v570 = vrcp.pop %v566
    %v571 = vrcp.pop %v567
    %v572 = vrcp.pop %v568
    %v573 = vrcp.pop %v569
    %v574 = vmul.f32 %v570, 1.0614054
    %v575 = vmul.f32 %v571, 1.0614054
    %v576 = vmul.f32 %v572, 1.0614054
    %v577 = vmul.f32 %v573, 1.0614054
    %v578 = vadd.f32 %v574, -1.4531521
    %v579 = vadd.f32 %v575, -1.4531521
    %v580 = vadd.f32 %v576, -1.4531521
    %v581 = vadd.f32 %v577, -1.4531521
    %v582 = vmul.f32 %v570, %v578
    %v583 = vmul.f32 %v571, %v579
    %v584 = vmul.f32 %v572, %v580
    %v585 = vmul.f32 %v573, %v581
    %v586 = vadd.f32 %v582, 1.4214138
    %v587 = vadd.f32 %v583, 1.4214138
    %v588 = vadd.f32 %v584, 1.4214138
    %v589 = vadd.f32 %v585, 1.4214138
    %v590 = vmul.f32 %v570, %v586
    %v591 = vmul.f32 %v571, %v587
    %v592 = vmul.f32 %v572, %v588
    %v593 = vmul.f32 %v573, %v589
    %v594 = vadd.f32 %v590, -0.28449672
    %v595 = vadd.f32 %v591, -0.28449672
    %v596 = vadd.f32 %v592, -0.28449672
    %v597 = vadd.f32 %v593, -0.28449672
    %v598 = vmul.f32 %v570, %v594
    %v599 = vmul.f32 %v571, %v595
    %v600 = vmul.f32 %v572, %v596
    %v601 = vmul.f32 %v573, %v597
    %v602 = vadd.f32 %v598, 0.2548296
    %v603 = vadd.f32 %v599, 0.2548296
    %v604 = vadd.f32 %v600, 0.2548296
    %v605 = vadd.f32 %v601, 0.2548296
    %v606 = vmul.f32 %v570, %v602
    %v607 = vmul.f32 %v571, %v603
    %v608 = vmul.f32 %v572, %v604
    %v609 = vmul.f32 %v573, %v605
    %v610 = vsub.f32 0.0, %v558
    %v611 = vsub.f32 0.0, %v559
    %v612 = vsub.f32 0.0, %v560
    %v613 = vsub.f32 0.0, %v561
    %v614 = vmul.f32 %v610, %v558
    %v615 = vmul.f32 %v611, %v559
    %v616 = vmul.f32 %v612, %v560
    %v617 = vmul.f32 %v613, %v561
    %v618 = vmul.f32 %v614, 1.442695
    %v619 = vpow.pop %v618
    %v620 = vmul.f32 %v615, 1.442695
    %v621 = vpow.pop %v620
    %v622 = vmul.f32 %v616, 1.442695
    %v623 = vpow.pop %v622
    %v624 = vmul.f32 %v617, 1.442695
    %v625 = vpow.pop %v624
    %v626 = vmul.f32 %v606, %v619
    %v627 = vmul.f32 %v607, %v621
    %v628 = vmul.f32 %v608, %v623
    %v629 = vmul.f32 %v609, %v625
    %v630 = vsub.f32 1.0, %v626
    %v631 = vsub.f32 1.0, %v627
    %v632 = vsub.f32 1.0, %v628
    %v633 = vsub.f32 1.0, %v629
    %v634 = vmul.f32 %v554, %v630
    %v635 = vmul.f32 %v555, %v631
    %v636 = vmul.f32 %v556, %v632
    %v637 = vmul.f32 %v557, %v633
    %v638 = vadd.f32 %v634, 1.0
    %v639 = vadd.f32 %v635, 1.0
    %v640 = vadd.f32 %v636, 1.0
    %v641 = vadd.f32 %v637, 1.0
    %v642 = vmul.f32 %v542, %v638
    %v643 = vmul.f32 %v543, %v639
    %v644 = vmul.f32 %v544, %v640
    %v645 = vmul.f32 %v545, %v641
    %v646 = vld [vmem:[%s5] sm:$0xff]
    %v647 = vld [vmem:[%s5 + $0x8] sm:$0xff]
    %v648 = vld [vmem:[%s5 + $0x10] sm:$0xff]
    %v649 = vld [vmem:[%s5 + $0x18] sm:$0xff]
    %v650 = vld [vmem:[%s5 + $0x20] sm:$0xff]
    %v651 = vld [vmem:[%s5 + $0x28] sm:$0xff]
    %v652 = vld [vmem:[%s5 + $0x30] sm:$0xff]
    %v653 = vld [vmem:[%s5 + $0x38] sm:$0xff]
    %v654 = vlaneseq
    %v655 = vshrl.u32 %v654, 7
    %v656 = vsub.s32 0, %v655
    %v657 = vrot.slane %v281, %v656
    %v659 = vsel %vm431, %v642, 0
    %v662 = vsel %vm431, %v643, 0
    %v665 = vsel %vm431, %v644, 0
    %v668 = vsel %vm431, %v645, 0
    %670 = vmatprep.subr.mxu0 0.0
    %671 = vmatpush1.msra.mxu0 %v646
    %672 = vmatprep.subr.mxu0 0.0
    %673 = vmatpush1.msra.mxu0 %v647
    %674 = vmatprep.subr.mxu0 0.0
    %675 = vmatpush1.msra.mxu0 %v648
    %676 = vmatprep.subr.mxu0 0.0
    %677 = vmatpush1.msra.mxu0 %v649
    %678 = vmatprep.subr.mxu0 0.0
    %679 = vmatpush1.msra.mxu0 %v650
    %680 = vmatprep.subr.mxu0 0.0
    %681 = vmatpush1.msra.mxu0 %v651
    %682 = vmatprep.subr.mxu0 0.0
    %683 = vmatpush1.msra.mxu0 %v652
    %684 = vmatprep.subr.mxu0 0.0
    %685 = vmatpush1.msra.mxu0 %v653
    %686 = vmatprep.subr.mxu0 0.0
    %687 = vmatpush1.msra.mxu0 0.0
    %688 = vmatprep.subr.mxu0 0.0
    %689 = vmatpush1.msra.mxu0 0.0
    %690 = vmatprep.subr.mxu0 0.0
    %691 = vmatpush1.msra.mxu0 0.0
    %692 = vmatprep.subr.mxu0 0.0
    %693 = vmatpush1.msra.mxu0 0.0
    %694 = vmatprep.subr.mxu0 0.0
    %695 = vmatpush1.msra.mxu0 0.0
    %696 = vmatprep.subr.mxu0 0.0
    %697 = vmatpush1.msra.mxu0 0.0
    %698 = vmatprep.subr.mxu0 0.0
    %699 = vmatpush1.msra.mxu0 0.0
    %700 = vmatprep.subr.mxu0 0.0
    %701 = vmatpush1.msra.mxu0 0.0
    %702 = vmatprep.subr.mxu0 0.0
    %703 = vmatpush1.msra.mxu0 0.0
    %704 = vmatprep.subr.mxu0 0.0
    %705 = vmatpush1.msra.mxu0 0.0
    %706 = vmatprep.subr.mxu0 0.0
    %707 = vmatpush1.msra.mxu0 0.0
    %708 = vmatprep.subr.mxu0 0.0
    %709 = vmatpush1.msra.mxu0 0.0
    %710 = vmatprep.subr.mxu0 0.0
    %711 = vmatpush1.msra.mxu0 0.0
    %712 = vmatprep.subr.mxu0 0.0
    %713 = vmatpush1.msra.mxu0 0.0
    %714 = vmatprep.subr.mxu0 0.0
    %715 = vmatpush1.msra.mxu0 0.0
    %716 = vmatprep.subr.mxu0 0.0
    %717 = vmatpush1.msra.mxu0 0.0
    %718 = vmatprep.subr.mxu0 0.0
    %719 = vmatpush1.msra.mxu0 0.0
    %720 = vmatprep.subr.mxu0 0.0
    %721 = vmatpush1.msra.mxu0 0.0
    %722 = vmatprep.subr.mxu0 0.0
    %723 = vmatpush1.msra.mxu0 0.0
    %724 = vmatprep.subr.mxu0 0.0
    %725 = vmatpush1.msra.mxu0 0.0
    %726 = vmatprep.subr.mxu0 0.0
    %727 = vmatpush1.msra.mxu0 0.0
    %728 = vmatprep.subr.mxu0 0.0
    %729 = vmatpush1.msra.mxu0 0.0
    %730 = vmatprep.subr.mxu0 0.0
    %731 = vmatpush1.msra.mxu0 0.0
    %732 = vmatprep.subr.mxu0 0.0
    %733 = vmatpush1.msra.mxu0 0.0
    %734 = vmatprep.mubr.f32.mxu0 0.0
    %735 = vmatmul.mubr.f32.gmra.mrb[0].mxu0 %v659
    %v736 = vpop.f32.mrb[0].mxu0
    %v737 = vadd.f32 %v657, %v736
    %v738 = vpop.f32.mrb[0].mxu0
    %739 = vmatprep.mubr.f32.mxu0 0.0
    %740 = vmatmul.mubr.f32.gmra.mrb[0].mxu0 %v662
    %v741 = vpop.f32.mrb[0].mxu0
    %v742 = vadd.f32 %v657, %v741
    %v743 = vpop.f32.mrb[0].mxu0
    %744 = vmatprep.mubr.f32.mxu0 0.0
    %745 = vmatmul.mubr.f32.gmra.mrb[0].mxu0 %v665
    %v746 = vpop.f32.mrb[0].mxu0
    %v747 = vadd.f32 %v657, %v746
    %v748 = vpop.f32.mrb[0].mxu0
    %749 = vmatprep.mubr.f32.mxu0 0.0
    %750 = vmatmul.mubr.f32.gmra.mrb[0].mxu0 %v668
    %v751 = vpop.f32.mrb[0].mxu0
    %v752 = vadd.f32 %v657, %v751
    %v753 = vpop.f32.mrb[0].mxu0
    %754 = vdwg.mxu0
    %v755 = vadd.f32 %v247, %v737
    %v756 = vadd.f32 %v248, %v742
    %v757 = vadd.f32 %v249, %v747
    %v758 = vadd.f32 %v250, %v752
    %v759 = vmul.f32 %v755, %v275
    %v760 = vmul.f32 %v756, %v276
    %v761 = vmul.f32 %v757, %v277
    %v762 = vmul.f32 %v758, %v278
    %v763 = vld [vmem:[%s7 + $0x1] sm:$0x1]
    %v764 = vld [vmem:[%s7 + $0x5] sm:$0x1]
    %v765 = vld [vmem:[%s7 + $0x9] sm:$0x1]
    %v766 = vsel %vm42, %v759, 0.0
    %767 = vadd.xlane.f32.xlu0 %v766
    %v768 = vpop.xlane.xlu0 %767
    %v769 = vsel %vm42, %v760, 0.0
    %770 = vadd.xlane.f32.xlu0 %v769
    %v771 = vpop.xlane.xlu0 %770
    %v772 = vsel %vm42, %v761, 0.0
    %773 = vadd.xlane.f32.xlu0 %v772
    %v774 = vpop.xlane.xlu0 %773
    %v775 = vsel %vm42, %v762, 0.0
    %776 = vadd.xlane.f32.xlu0 %v775
    %v777 = vpop.xlane.xlu0 %776
    %v778 = vmul.f32 %v768, %v294
    %v779 = vmul.f32 %v771, %v294
    %v780 = vmul.f32 %v774, %v294
    %v781 = vmul.f32 %v777, %v294
    %v782 = vmul.f32 %v759, %v759
    %v783 = vmul.f32 %v760, %v760
    %v784 = vmul.f32 %v761, %v761
    %v785 = vmul.f32 %v762, %v762
    %v786 = vsel %vm42, %v782, 0.0
    %787 = vadd.xlane.f32.xlu0 %v786
    %v788 = vpop.xlane.xlu0 %787
    %v789 = vsel %vm42, %v783, 0.0
    %790 = vadd.xlane.f32.xlu0 %v789
    %v791 = vpop.xlane.xlu0 %790
    %v792 = vsel %vm42, %v784, 0.0
    %793 = vadd.xlane.f32.xlu0 %v792
    %v794 = vpop.xlane.xlu0 %793
    %v795 = vsel %vm42, %v785, 0.0
    %796 = vadd.xlane.f32.xlu0 %v795
    %v797 = vpop.xlane.xlu0 %796
    %v798 = vmul.f32 %v788, %v294
    %v799 = vmul.f32 %v791, %v294
    %v800 = vmul.f32 %v794, %v294
    %v801 = vmul.f32 %v797, %v294
    %v802 = vmul.f32 %v778, %v778
    %v803 = vmul.f32 %v779, %v779
    %v804 = vmul.f32 %v780, %v780
    %v805 = vmul.f32 %v781, %v781
    %v806 = vsub.f32 %v798, %v802
    %v807 = vsub.f32 %v799, %v803
    %v808 = vsub.f32 %v800, %v804
    %v809 = vsub.f32 %v801, %v805
    %v810 = vsub.f32 %v759, %v778
    %v811 = vsub.f32 %v760, %v779
    %v812 = vsub.f32 %v761, %v780
    %v813 = vsub.f32 %v762, %v781
    %v814 = vadd.f32 %v806, 1e-05
    %v815 = vadd.f32 %v807, 1e-05
    %v816 = vadd.f32 %v808, 1e-05
    %v817 = vadd.f32 %v809, 1e-05
    %v818 = vrsqrt.pop %v814
    %v819 = vrsqrt.pop %v815
    %v820 = vrsqrt.pop %v816
    %v821 = vrsqrt.pop %v817
    %v822 = vmul.f32 %v810, %v818
    %v823 = vmul.f32 %v811, %v819
    %v824 = vmul.f32 %v812, %v820
    %v825 = vmul.f32 %v813, %v821
    %v826 = vlaneseq
    %v827 = vshrl.u32 %v826, 7
    %v828 = vsub.s32 0, %v827
    %v829 = vrot.slane %v763, %v828
    %v830 = vmul.f32 %v822, %v829
    %v831 = vmul.f32 %v823, %v829
    %v832 = vmul.f32 %v824, %v829
    %v833 = vmul.f32 %v825, %v829
    %835 = vrot.lane.b32.xlu0 %v829, 96
    %v836 = vpop.permute.xlu0 %835
    %v838 = vadd.f32 %v830, %v836
    %v839 = vadd.f32 %v831, %v836
    %v840 = vadd.f32 %v832, %v836
    %v841 = vadd.f32 %v833, %v836
    %s842 = scalar_lea.vmem %s4, 96
    %v843 = vld [vmem:[%s842] sm:$0xff]
    %v844 = vld [vmem:[%s842 + $0x8] sm:$0xff]
    %v845 = vld [vmem:[%s842 + $0x10] sm:$0xff]
    %v846 = vld [vmem:[%s842 + $0x18] sm:$0xff]
    %v847 = vld [vmem:[%s842 + $0x20] sm:$0xff]
    %v848 = vld [vmem:[%s842 + $0x28] sm:$0xff]
    %v849 = vld [vmem:[%s842 + $0x30] sm:$0xff]
    %v850 = vld [vmem:[%s842 + $0x38] sm:$0xff]
    %v851 = vld [vmem:[%s842 + $0x40] sm:$0xff]
    %v852 = vld [vmem:[%s842 + $0x48] sm:$0xff]
    %v853 = vld [vmem:[%s842 + $0x50] sm:$0xff]
    %v854 = vld [vmem:[%s842 + $0x58] sm:$0xff]
    %v855 = vrot.slane %v838, 7
    %v856 = vrot.slane %v839, 7
    %v857 = vrot.slane %v840, 7
    %v858 = vrot.slane %v841, 7
    %v859 = vsel %vm68, %v857, %v858
    %v860 = vsel %vm68, %v856, %v857
    %v861 = vsel %vm68, %v855, %v856
    %v862 = vsel %vm68, %v858, %v855
    %v863 = vmul.f32 %v862, %v74
    %v864 = vmul.f32 %v861, %v75
    %v865 = vmul.f32 %v860, %v76
    %v866 = vmul.f32 %v859, %v77
    %v867 = vrot.slane %v838, 1
    %v868 = vrot.slane %v839, 1
    %v869 = vrot.slane %v840, 1
    %v870 = vrot.slane %v841, 1
    %v871 = vsel %vm86, %v869, %v870
    %v872 = vsel %vm86, %v868, %v869
    %v873 = vsel %vm86, %v867, %v868
    %v874 = vsel %vm86, %v870, %v867
    %v875 = vmul.f32 %v873, %v92
    %v876 = vmul.f32 %v872, %v93
    %v877 = vmul.f32 %v871, %v94
    %v878 = vmul.f32 %v874, %v95
    %883 = vrot.lane.b32.xlu0 %v838, 32
    %v884 = vpop.permute.xlu0 %883
    %885 = vrot.lane.b32.xlu0 %v839, 32
    %v886 = vpop.permute.xlu0 %885
    %887 = vrot.lane.b32.xlu0 %v840, 32
    %v888 = vpop.permute.xlu0 %887
    %889 = vrot.lane.b32.xlu0 %v841, 32
    %v890 = vpop.permute.xlu0 %889
    %899 = vrot.lane.b32.xlu0 %v875, 64
    %v900 = vpop.permute.xlu0 %899
    %901 = vrot.lane.b32.xlu0 %v876, 64
    %v902 = vpop.permute.xlu0 %901
    %903 = vrot.lane.b32.xlu0 %v877, 64
    %v904 = vpop.permute.xlu0 %903
    %905 = vrot.lane.b32.xlu0 %v878, 64
    %v906 = vpop.permute.xlu0 %905
    %v911 = vsel %vm42, %v863, %v884
    %v912 = vsel %vm42, %v864, %v886
    %v913 = vsel %vm42, %v865, %v888
    %v914 = vsel %vm42, %v866, %v890
    %v915 = vsel %vm431, %v911, %v900
    %v916 = vsel %vm431, %v912, %v902
    %v917 = vsel %vm431, %v913, %v904
    %v918 = vsel %vm431, %v914, %v906
    %v919 = vlaneseq
    %v920 = vshrl.u32 %v919, 7
    %v921 = vsub.s32 0, %v920
    %v922 = vrot.slane %v764, %v921
    %v924 = vsel %vm440, %v915, 0
    %v927 = vsel %vm440, %v916, 0
    %v930 = vsel %vm440, %v917, 0
    %v933 = vsel %vm440, %v918, 0
    %935 = vmatprep.subr.mxu0 0.0
    %936 = vmatpush1.msra.mxu0 %v843
    %937 = vmatprep.subr.mxu0 0.0
    %938 = vmatpush1.msra.mxu0 %v844
    %939 = vmatprep.subr.mxu0 0.0
    %940 = vmatpush1.msra.mxu0 %v845
    %941 = vmatprep.subr.mxu0 0.0
    %942 = vmatpush1.msra.mxu0 %v846
    %943 = vmatprep.subr.mxu0 0.0
    %944 = vmatpush1.msra.mxu0 %v847
    %945 = vmatprep.subr.mxu0 0.0
    %946 = vmatpush1.msra.mxu0 %v848
    %947 = vmatprep.subr.mxu0 0.0
    %948 = vmatpush1.msra.mxu0 %v849
    %949 = vmatprep.subr.mxu0 0.0
    %950 = vmatpush1.msra.mxu0 %v850
    %951 = vmatprep.subr.mxu0 0.0
    %952 = vmatpush1.msra.mxu0 %v851
    %953 = vmatprep.subr.mxu0 0.0
    %954 = vmatpush1.msra.mxu0 %v852
    %955 = vmatprep.subr.mxu0 0.0
    %956 = vmatpush1.msra.mxu0 %v853
    %957 = vmatprep.subr.mxu0 0.0
    %958 = vmatpush1.msra.mxu0 %v854
    %959 = vmatprep.subr.mxu0 0.0
    %960 = vmatpush1.msra.mxu0 0.0
    %961 = vmatprep.subr.mxu0 0.0
    %962 = vmatpush1.msra.mxu0 0.0
    %963 = vmatprep.subr.mxu0 0.0
    %964 = vmatpush1.msra.mxu0 0.0
    %965 = vmatprep.subr.mxu0 0.0
    %966 = vmatpush1.msra.mxu0 0.0
    %967 = vmatprep.subr.mxu0 0.0
    %968 = vmatpush1.msra.mxu0 0.0
    %969 = vmatprep.subr.mxu0 0.0
    %970 = vmatpush1.msra.mxu0 0.0
    %971 = vmatprep.subr.mxu0 0.0
    %972 = vmatpush1.msra.mxu0 0.0
    %973 = vmatprep.subr.mxu0 0.0
    %974 = vmatpush1.msra.mxu0 0.0
    %975 = vmatprep.subr.mxu0 0.0
    %976 = vmatpush1.msra.mxu0 0.0
    %977 = vmatprep.subr.mxu0 0.0
    %978 = vmatpush1.msra.mxu0 0.0
    %979 = vmatprep.subr.mxu0 0.0
    %980 = vmatpush1.msra.mxu0 0.0
    %981 = vmatprep.subr.mxu0 0.0
    %982 = vmatpush1.msra.mxu0 0.0
    %983 = vmatprep.subr.mxu0 0.0
    %984 = vmatpush1.msra.mxu0 0.0
    %985 = vmatprep.subr.mxu0 0.0
    %986 = vmatpush1.msra.mxu0 0.0
    %987 = vmatprep.subr.mxu0 0.0
    %988 = vmatpush1.msra.mxu0 0.0
    %989 = vmatprep.subr.mxu0 0.0
    %990 = vmatpush1.msra.mxu0 0.0
    %991 = vmatprep.subr.mxu0 0.0
    %992 = vmatpush1.msra.mxu0 0.0
    %993 = vmatprep.subr.mxu0 0.0
    %994 = vmatpush1.msra.mxu0 0.0
    %995 = vmatprep.subr.mxu0 0.0
    %996 = vmatpush1.msra.mxu0 0.0
    %997 = vmatprep.subr.mxu0 0.0
    %998 = vmatpush1.msra.mxu0 0.0
    %999 = vmatprep.mubr.f32.mxu0 0.0
    %1000 = vmatmul.mubr.f32.gmra.mrb[0].mxu0 %v924
    %v1001 = vpop.f32.mrb[0].mxu0
    %v1002 = vadd.f32 %v922, %v1001
    %v1003 = vpop.f32.mrb[0].mxu0
    %1004 = vmatprep.mubr.f32.mxu0 0.0
    %1005 = vmatmul.mubr.f32.gmra.mrb[0].mxu0 %v927
    %v1006 = vpop.f32.mrb[0].mxu0
    %v1007 = vadd.f32 %v922, %v1006
    %v1008 = vpop.f32.mrb[0].mxu0
    %1009 = vmatprep.mubr.f32.mxu0 0.0
    %1010 = vmatmul.mubr.f32.gmra.mrb[0].mxu0 %v930
    %v1011 = vpop.f32.mrb[0].mxu0
    %v1012 = vadd.f32 %v922, %v1011
    %v1013 = vpop.f32.mrb[0].mxu0
    %1014 = vmatprep.mubr.f32.mxu0 0.0
    %1015 = vmatmul.mubr.f32.gmra.mrb[0].mxu0 %v933
    %v1016 = vpop.f32.mrb[0].mxu0
    %v1017 = vadd.f32 %v922, %v1016
    %v1018 = vpop.f32.mrb[0].mxu0
    %1019 = vdwg.mxu0
    %v1020 = vmul.f32 %v1002, 0.57735026
    %v1021 = vmul.f32 %v1007, 0.57735026
    %v1022 = vmul.f32 %v1012, 0.57735026
    %v1023 = vmul.f32 %v1017, 0.57735026
    %v1024 = vmul.f32 %v1020, 0.5
    %v1025 = vmul.f32 %v1021, 0.5
    %v1026 = vmul.f32 %v1022, 0.5
    %v1027 = vmul.f32 %v1023, 0.5
    %v1028 = vmul.f32 %v1020, 0.70710677
    %v1029 = vmul.f32 %v1021, 0.70710677
    %v1030 = vmul.f32 %v1022, 0.70710677
    %v1031 = vmul.f32 %v1023, 0.70710677
    %vm1032 = vcmp.ge.f32.partialorder %v1028, 0.0
    %vm1033 = vcmp.ge.f32.partialorder %v1029, 0.0
    %vm1034 = vcmp.ge.f32.partialorder %v1030, 0.0
    %vm1035 = vcmp.ge.f32.partialorder %v1031, 0.0
    %v1036 = vsel %vm1032, 1.0, -1.0
    %v1037 = vsel %vm1033, 1.0, -1.0
    %v1038 = vsel %vm1034, 1.0, -1.0
    %v1039 = vsel %vm1035, 1.0, -1.0
    %v1040 = vand.u32 2147483647, %v1028
    %v1041 = vand.u32 2147483647, %v1029
    %v1042 = vand.u32 2147483647, %v1030
    %v1043 = vand.u32 2147483647, %v1031
    %v1044 = vmul.f32 %v1040, 0.3275911
    %v1045 = vmul.f32 %v1041, 0.3275911
    %v1046 = vmul.f32 %v1042, 0.3275911
    %v1047 = vmul.f32 %v1043, 0.3275911
    %v1048 = vadd.f32 %v1044, 1.0
    %v1049 = vadd.f32 %v1045, 1.0
    %v1050 = vadd.f32 %v1046, 1.0
    %v1051 = vadd.f32 %v1047, 1.0
    %v1052 = vrcp.pop %v1048
    %v1053 = vrcp.pop %v1049
    %v1054 = vrcp.pop %v1050
    %v1055 = vrcp.pop %v1051
    %v1056 = vmul.f32 %v1052, 1.0614054
    %v1057 = vmul.f32 %v1053, 1.0614054
    %v1058 = vmul.f32 %v1054, 1.0614054
    %v1059 = vmul.f32 %v1055, 1.0614054
    %v1060 = vadd.f32 %v1056, -1.4531521
    %v1061 = vadd.f32 %v1057, -1.4531521
    %v1062 = vadd.f32 %v1058, -1.4531521
    %v1063 = vadd.f32 %v1059, -1.4531521
    %v1064 = vmul.f32 %v1052, %v1060
    %v1065 = vmul.f32 %v1053, %v1061
    %v1066 = vmul.f32 %v1054, %v1062
    %v1067 = vmul.f32 %v1055, %v1063
    %v1068 = vadd.f32 %v1064, 1.4214138
    %v1069 = vadd.f32 %v1065, 1.4214138
    %v1070 = vadd.f32 %v1066, 1.4214138
    %v1071 = vadd.f32 %v1067, 1.4214138
    %v1072 = vmul.f32 %v1052, %v1068
    %v1073 = vmul.f32 %v1053, %v1069
    %v1074 = vmul.f32 %v1054, %v1070
    %v1075 = vmul.f32 %v1055, %v1071
    %v1076 = vadd.f32 %v1072, -0.28449672
    %v1077 = vadd.f32 %v1073, -0.28449672
    %v1078 = vadd.f32 %v1074, -0.28449672
    %v1079 = vadd.f32 %v1075, -0.28449672
    %v1080 = vmul.f32 %v1052, %v1076
    %v1081 = vmul.f32 %v1053, %v1077
    %v1082 = vmul.f32 %v1054, %v1078
    %v1083 = vmul.f32 %v1055, %v1079
    %v1084 = vadd.f32 %v1080, 0.2548296
    %v1085 = vadd.f32 %v1081, 0.2548296
    %v1086 = vadd.f32 %v1082, 0.2548296
    %v1087 = vadd.f32 %v1083, 0.2548296
    %v1088 = vmul.f32 %v1052, %v1084
    %v1089 = vmul.f32 %v1053, %v1085
    %v1090 = vmul.f32 %v1054, %v1086
    %v1091 = vmul.f32 %v1055, %v1087
    %v1092 = vsub.f32 0.0, %v1040
    %v1093 = vsub.f32 0.0, %v1041
    %v1094 = vsub.f32 0.0, %v1042
    %v1095 = vsub.f32 0.0, %v1043
    %v1096 = vmul.f32 %v1092, %v1040
    %v1097 = vmul.f32 %v1093, %v1041
    %v1098 = vmul.f32 %v1094, %v1042
    %v1099 = vmul.f32 %v1095, %v1043
    %v1100 = vmul.f32 %v1096, 1.442695
    %v1101 = vpow.pop %v1100
    %v1102 = vmul.f32 %v1097, 1.442695
    %v1103 = vpow.pop %v1102
    %v1104 = vmul.f32 %v1098, 1.442695
    %v1105 = vpow.pop %v1104
    %v1106 = vmul.f32 %v1099, 1.442695
    %v1107 = vpow.pop %v1106
    %v1108 = vmul.f32 %v1088, %v1101
    %v1109 = vmul.f32 %v1089, %v1103
    %v1110 = vmul.f32 %v1090, %v1105
    %v1111 = vmul.f32 %v1091, %v1107
    %v1112 = vsub.f32 1.0, %v1108
    %v1113 = vsub.f32 1.0, %v1109
    %v1114 = vsub.f32 1.0, %v1110
    %v1115 = vsub.f32 1.0, %v1111
    %v1116 = vmul.f32 %v1036, %v1112
    %v1117 = vmul.f32 %v1037, %v1113
    %v1118 = vmul.f32 %v1038, %v1114
    %v1119 = vmul.f32 %v1039, %v1115
    %v1120 = vadd.f32 %v1116, 1.0
    %v1121 = vadd.f32 %v1117, 1.0
    %v1122 = vadd.f32 %v1118, 1.0
    %v1123 = vadd.f32 %v1119, 1.0
    %v1124 = vmul.f32 %v1024, %v1120
    %v1125 = vmul.f32 %v1025, %v1121
    %v1126 = vmul.f32 %v1026, %v1122
    %v1127 = vmul.f32 %v1027, %v1123
    %s1128 = scalar_lea.vmem %s5, 64
    %v1129 = vld [vmem:[%s1128] sm:$0xff]
    %v1130 = vld [vmem:[%s1128 + $0x8] sm:$0xff]
    %v1131 = vld [vmem:[%s1128 + $0x10] sm:$0xff]
    %v1132 = vld [vmem:[%s1128 + $0x18] sm:$0xff]
    %v1133 = vld [vmem:[%s1128 + $0x20] sm:$0xff]
    %v1134 = vld [vmem:[%s1128 + $0x28] sm:$0xff]
    %v1135 = vld [vmem:[%s1128 + $0x30] sm:$0xff]
    %v1136 = vld [vmem:[%s1128 + $0x38] sm:$0xff]
    %v1137 = vlaneseq
    %v1138 = vshrl.u32 %v1137, 7
    %v1139 = vsub.s32 0, %v1138
    %v1140 = vrot.slane %v765, %v1139
    %v1142 = vsel %vm431, %v1124, 0
    %v1145 = vsel %vm431, %v1125, 0
    %v1148 = vsel %vm431, %v1126, 0
    %v1151 = vsel %vm431, %v1127, 0
    %1153 = vmatprep.subr.mxu0 0.0
    %1154 = vmatpush1.msra.mxu0 %v1129
    %1155 = vmatprep.subr.mxu0 0.0
    %1156 = vmatpush1.msra.mxu0 %v1130
    %1157 = vmatprep.subr.mxu0 0.0
    %1158 = vmatpush1.msra.mxu0 %v1131
    %1159 = vmatprep.subr.mxu0 0.0
    %1160 = vmatpush1.msra.mxu0 %v1132
    %1161 = vmatprep.subr.mxu0 0.0
    %1162 = vmatpush1.msra.mxu0 %v1133
    %1163 = vmatprep.subr.mxu0 0.0
    %1164 = vmatpush1.msra.mxu0 %v1134
    %1165 = vmatprep.subr.mxu0 0.0
    %1166 = vmatpush1.msra.mxu0 %v1135
    %1167 = vmatprep.subr.mxu0 0.0
    %1168 = vmatpush1.msra.mxu0 %v1136
    %1169 = vmatprep.subr.mxu0 0.0
    %1170 = vmatpush1.msra.mxu0 0.0
    %1171 = vmatprep.subr.mxu0 0.0
    %1172 = vmatpush1.msra.mxu0 0.0
    %1173 = vmatprep.subr.mxu0 0.0
    %1174 = vmatpush1.msra.mxu0 0.0
    %1175 = vmatprep.subr.mxu0 0.0
    %1176 = vmatpush1.msra.mxu0 0.0
    %1177 = vmatprep.subr.mxu0 0.0
    %1178 = vmatpush1.msra.mxu0 0.0
    %1179 = vmatprep.subr.mxu0 0.0
    %1180 = vmatpush1.msra.mxu0 0.0
    %1181 = vmatprep.subr.mxu0 0.0
    %1182 = vmatpush1.msra.mxu0 0.0
    %1183 = vmatprep.subr.mxu0 0.0
    %1184 = vmatpush1.msra.mxu0 0.0
    %1185 = vmatprep.subr.mxu0 0.0
    %1186 = vmatpush1.msra.mxu0 0.0
    %1187 = vmatprep.subr.mxu0 0.0
    %1188 = vmatpush1.msra.mxu0 0.0
    %1189 = vmatprep.subr.mxu0 0.0
    %1190 = vmatpush1.msra.mxu0 0.0
    %1191 = vmatprep.subr.mxu0 0.0
    %1192 = vmatpush1.msra.mxu0 0.0
    %1193 = vmatprep.subr.mxu0 0.0
    %1194 = vmatpush1.msra.mxu0 0.0
    %1195 = vmatprep.subr.mxu0 0.0
    %1196 = vmatpush1.msra.mxu0 0.0
    %1197 = vmatprep.subr.mxu0 0.0
    %1198 = vmatpush1.msra.mxu0 0.0
    %1199 = vmatprep.subr.mxu0 0.0
    %1200 = vmatpush1.msra.mxu0 0.0
    %1201 = vmatprep.subr.mxu0 0.0
    %1202 = vmatpush1.msra.mxu0 0.0
    %1203 = vmatprep.subr.mxu0 0.0
    %1204 = vmatpush1.msra.mxu0 0.0
    %1205 = vmatprep.subr.mxu0 0.0
    %1206 = vmatpush1.msra.mxu0 0.0
    %1207 = vmatprep.subr.mxu0 0.0
    %1208 = vmatpush1.msra.mxu0 0.0
    %1209 = vmatprep.subr.mxu0 0.0
    %1210 = vmatpush1.msra.mxu0 0.0
    %1211 = vmatprep.subr.mxu0 0.0
    %1212 = vmatpush1.msra.mxu0 0.0
    %1213 = vmatprep.subr.mxu0 0.0
    %1214 = vmatpush1.msra.mxu0 0.0
    %1215 = vmatprep.subr.mxu0 0.0
    %1216 = vmatpush1.msra.mxu0 0.0
    %1217 = vmatprep.mubr.f32.mxu0 0.0
    %1218 = vmatmul.mubr.f32.gmra.mrb[0].mxu0 %v1142
    %v1219 = vpop.f32.mrb[0].mxu0
    %v1220 = vadd.f32 %v1140, %v1219
    %v1221 = vpop.f32.mrb[0].mxu0
    %1222 = vmatprep.mubr.f32.mxu0 0.0
    %1223 = vmatmul.mubr.f32.gmra.mrb[0].mxu0 %v1145
    %v1224 = vpop.f32.mrb[0].mxu0
    %v1225 = vadd.f32 %v1140, %v1224
    %v1226 = vpop.f32.mrb[0].mxu0
    %1227 = vmatprep.mubr.f32.mxu0 0.0
    %1228 = vmatmul.mubr.f32.gmra.mrb[0].mxu0 %v1148
    %v1229 = vpop.f32.mrb[0].mxu0
    %v1230 = vadd.f32 %v1140, %v1229
    %v1231 = vpop.f32.mrb[0].mxu0
    %1232 = vmatprep.mubr.f32.mxu0 0.0
    %1233 = vmatmul.mubr.f32.gmra.mrb[0].mxu0 %v1151
    %v1234 = vpop.f32.mrb[0].mxu0
    %v1235 = vadd.f32 %v1140, %v1234
    %v1236 = vpop.f32.mrb[0].mxu0
    %1237 = vdwg.mxu0
    %v1238 = vadd.f32 %v759, %v1220
    %v1239 = vadd.f32 %v760, %v1225
    %v1240 = vadd.f32 %v761, %v1230
    %v1241 = vadd.f32 %v762, %v1235
    %v1242 = vmul.f32 %v1238, %v275
    %v1243 = vmul.f32 %v1239, %v276
    %v1244 = vmul.f32 %v1240, %v277
    %v1245 = vmul.f32 %v1241, %v278
    %v1246 = vand.u32 2147483647, %v1242
    %v1247 = vand.u32 2147483647, %v1243
    %v1248 = vand.u32 2147483647, %v1244
    %v1249 = vand.u32 2147483647, %v1245
    %v1250 = vsel %vm42, %v1246, 0.0
    %1251 = vadd.xlane.f32.xlu0 %v1250
    %v1252 = vpop.xlane.xlu0 %1251
    %v1253 = vsel %vm42, %v1247, 0.0
    %1254 = vadd.xlane.f32.xlu0 %v1253
    %v1255 = vpop.xlane.xlu0 %1254
    %v1256 = vsel %vm42, %v1248, 0.0
    %1257 = vadd.xlane.f32.xlu0 %v1256
    %v1258 = vpop.xlane.xlu0 %1257
    %v1259 = vsel %vm42, %v1249, 0.0
    %1260 = vadd.xlane.f32.xlu0 %v1259
    %v1261 = vpop.xlane.xlu0 %1260
    %vm1262 = vcmp.gt.f32.partialorder %v1252, 0.0
    %vm1263 = vcmp.gt.f32.partialorder %v1255, 0.0
    %vm1264 = vcmp.gt.f32.partialorder %v1258, 0.0
    %vm1265 = vcmp.gt.f32.partialorder %v1261, 0.0
    %v1266 = vsel %vm1262, 1, 0
    %v1267 = vsel %vm1263, 1, 0
    %v1268 = vsel %vm1264, 1, 0
    %v1269 = vsel %vm1265, 1, 0
    %v1270 = vcvt.s32.f32 %v1266
    %v1271 = vcvt.s32.f32 %v1267
    %v1272 = vcvt.s32.f32 %v1268
    %v1273 = vcvt.s32.f32 %v1269
    %v1274 = vld [vmem:[%s7 + $0x2] sm:$0x1]
    %v1275 = vld [vmem:[%s7 + $0x6] sm:$0x1]
    %v1276 = vld [vmem:[%s7 + $0xa] sm:$0x1]
    %v1277 = vsel %vm42, %v1242, 0.0
    %1278 = vadd.xlane.f32.xlu0 %v1277
    %v1279 = vpop.xlane.xlu0 %1278
    %v1280 = vsel %vm42, %v1243, 0.0
    %1281 = vadd.xlane.f32.xlu0 %v1280
    %v1282 = vpop.xlane.xlu0 %1281
    %v1283 = vsel %vm42, %v1244, 0.0
    %1284 = vadd.xlane.f32.xlu0 %v1283
    %v1285 = vpop.xlane.xlu0 %1284
    %v1286 = vsel %vm42, %v1245, 0.0
    %1287 = vadd.xlane.f32.xlu0 %v1286
    %v1288 = vpop.xlane.xlu0 %1287
    %v1289 = vmul.f32 %v1279, %v294
    %v1290 = vmul.f32 %v1282, %v294
    %v1291 = vmul.f32 %v1285, %v294
    %v1292 = vmul.f32 %v1288, %v294
    %v1293 = vmul.f32 %v1242, %v1242
    %v1294 = vmul.f32 %v1243, %v1243
    %v1295 = vmul.f32 %v1244, %v1244
    %v1296 = vmul.f32 %v1245, %v1245
    %v1297 = vsel %vm42, %v1293, 0.0
    %1298 = vadd.xlane.f32.xlu0 %v1297
    %v1299 = vpop.xlane.xlu0 %1298
    %v1300 = vsel %vm42, %v1294, 0.0
    %1301 = vadd.xlane.f32.xlu0 %v1300
    %v1302 = vpop.xlane.xlu0 %1301
    %v1303 = vsel %vm42, %v1295, 0.0
    %1304 = vadd.xlane.f32.xlu0 %v1303
    %v1305 = vpop.xlane.xlu0 %1304
    %v1306 = vsel %vm42, %v1296, 0.0
    %1307 = vadd.xlane.f32.xlu0 %v1306
    %v1308 = vpop.xlane.xlu0 %1307
    %v1309 = vmul.f32 %v1299, %v294
    %v1310 = vmul.f32 %v1302, %v294
    %v1311 = vmul.f32 %v1305, %v294
    %v1312 = vmul.f32 %v1308, %v294
    %v1313 = vmul.f32 %v1289, %v1289
    %v1314 = vmul.f32 %v1290, %v1290
    %v1315 = vmul.f32 %v1291, %v1291
    %v1316 = vmul.f32 %v1292, %v1292
    %v1317 = vsub.f32 %v1309, %v1313
    %v1318 = vsub.f32 %v1310, %v1314
    %v1319 = vsub.f32 %v1311, %v1315
    %v1320 = vsub.f32 %v1312, %v1316
    %v1321 = vsub.f32 %v1242, %v1289
    %v1322 = vsub.f32 %v1243, %v1290
    %v1323 = vsub.f32 %v1244, %v1291
    %v1324 = vsub.f32 %v1245, %v1292
    %v1325 = vadd.f32 %v1317, 1e-05
    %v1326 = vadd.f32 %v1318, 1e-05
    %v1327 = vadd.f32 %v1319, 1e-05
    %v1328 = vadd.f32 %v1320, 1e-05
    %v1329 = vrsqrt.pop %v1325
    %v1330 = vrsqrt.pop %v1326
    %v1331 = vrsqrt.pop %v1327
    %v1332 = vrsqrt.pop %v1328
    %v1333 = vmul.f32 %v1321, %v1329
    %v1334 = vmul.f32 %v1322, %v1330
    %v1335 = vmul.f32 %v1323, %v1331
    %v1336 = vmul.f32 %v1324, %v1332
    %v1337 = vlaneseq
    %v1338 = vshrl.u32 %v1337, 7
    %v1339 = vsub.s32 0, %v1338
    %v1340 = vrot.slane %v1274, %v1339
    %v1341 = vmul.f32 %v1333, %v1340
    %v1342 = vmul.f32 %v1334, %v1340
    %v1343 = vmul.f32 %v1335, %v1340
    %v1344 = vmul.f32 %v1336, %v1340
    %1346 = vrot.lane.b32.xlu0 %v1340, 96
    %v1347 = vpop.permute.xlu0 %1346
    %v1349 = vadd.f32 %v1341, %v1347
    %v1350 = vadd.f32 %v1342, %v1347
    %v1351 = vadd.f32 %v1343, %v1347
    %v1352 = vadd.f32 %v1344, %v1347
    %s1353 = scalar_lea.vmem %s4, 192
    %v1354 = vld [vmem:[%s1353] sm:$0xff]
    %v1355 = vld [vmem:[%s1353 + $0x8] sm:$0xff]
    %v1356 = vld [vmem:[%s1353 + $0x10] sm:$0xff]
    %v1357 = vld [vmem:[%s1353 + $0x18] sm:$0xff]
    %v1358 = vld [vmem:[%s1353 + $0x20] sm:$0xff]
    %v1359 = vld [vmem:[%s1353 + $0x28] sm:$0xff]
    %v1360 = vld [vmem:[%s1353 + $0x30] sm:$0xff]
    %v1361 = vld [vmem:[%s1353 + $0x38] sm:$0xff]
    %v1362 = vld [vmem:[%s1353 + $0x40] sm:$0xff]
    %v1363 = vld [vmem:[%s1353 + $0x48] sm:$0xff]
    %v1364 = vld [vmem:[%s1353 + $0x50] sm:$0xff]
    %v1365 = vld [vmem:[%s1353 + $0x58] sm:$0xff]
    %v1366 = vrot.slane %v1349, 6
    %v1367 = vrot.slane %v1350, 6
    %v1368 = vrot.slane %v1351, 6
    %v1369 = vrot.slane %v1352, 6
    %vm1370 = vcmp.lt.s32.totalorder %v67, 2
    %v1371 = vsel %vm1370, %v1368, %v1369
    %v1372 = vsel %vm1370, %v1367, %v1368
    %v1373 = vsel %vm1370, %v1366, %v1367
    %v1374 = vsel %vm1370, %v1369, %v1366
    %v1375 = vld [vmem:[%s2] sm:$0xff]
    %v1376 = vld [vmem:[%s2 + $0x8] sm:$0xff]
    %v1377 = vld [vmem:[%s2 + $0x10] sm:$0xff]
    %v1378 = vld [vmem:[%s2 + $0x18] sm:$0xff]
    %v1379 = vmul.f32 %v1374, %v1375
    %v1380 = vmul.f32 %v1373, %v1376
    %v1381 = vmul.f32 %v1372, %v1377
    %v1382 = vmul.f32 %v1371, %v1378
    %v1383 = vrot.slane %v1349, 2
    %v1384 = vrot.slane %v1350, 2
    %v1385 = vrot.slane %v1351, 2
    %v1386 = vrot.slane %v1352, 2
    %vm1387 = vcmp.lt.s32.totalorder %v67, 6
    %v1388 = vsel %vm1387, %v1385, %v1386
    %v1389 = vsel %vm1387, %v1384, %v1385
    %v1390 = vsel %vm1387, %v1383, %v1384
    %v1391 = vsel %vm1387, %v1386, %v1383
    %s1392 = scalar_lea.vmem %s2, 128
    %v1393 = vld [vmem:[%s1392] sm:$0xff]
    %v1394 = vld [vmem:[%s1392 + $0x8] sm:$0xff]
    %v1395 = vld [vmem:[%s1392 + $0x10] sm:$0xff]
    %v1396 = vld [vmem:[%s1392 + $0x18] sm:$0xff]
    %v1397 = vmul.f32 %v1390, %v1393
    %v1398 = vmul.f32 %v1389, %v1394
    %v1399 = vmul.f32 %v1388, %v1395
    %v1400 = vmul.f32 %v1391, %v1396
    %1405 = vrot.lane.b32.xlu0 %v1349, 32
    %v1406 = vpop.permute.xlu0 %1405
    %1407 = vrot.lane.b32.xlu0 %v1350, 32
    %v1408 = vpop.permute.xlu0 %1407
    %1409 = vrot.lane.b32.xlu0 %v1351, 32
    %v1410 = vpop.permute.xlu0 %1409
    %1411 = vrot.lane.b32.xlu0 %v1352, 32
    %v1412 = vpop.permute.xlu0 %1411
    %1421 = vrot.lane.b32.xlu0 %v1397, 64
    %v1422 = vpop.permute.xlu0 %1421
    %1423 = vrot.lane.b32.xlu0 %v1398, 64
    %v1424 = vpop.permute.xlu0 %1423
    %1425 = vrot.lane.b32.xlu0 %v1399, 64
    %v1426 = vpop.permute.xlu0 %1425
    %1427 = vrot.lane.b32.xlu0 %v1400, 64
    %v1428 = vpop.permute.xlu0 %1427
    %v1433 = vsel %vm42, %v1379, %v1406
    %v1434 = vsel %vm42, %v1380, %v1408
    %v1435 = vsel %vm42, %v1381, %v1410
    %v1436 = vsel %vm42, %v1382, %v1412
    %v1437 = vsel %vm431, %v1433, %v1422
    %v1438 = vsel %vm431, %v1434, %v1424
    %v1439 = vsel %vm431, %v1435, %v1426
    %v1440 = vsel %vm431, %v1436, %v1428
    %v1441 = vlaneseq
    %v1442 = vshrl.u32 %v1441, 7
    %v1443 = vsub.s32 0, %v1442
    %v1444 = vrot.slane %v1275, %v1443
    %v1446 = vsel %vm440, %v1437, 0
    %v1449 = vsel %vm440, %v1438, 0
    %v1452 = vsel %vm440, %v1439, 0
    %v1455 = vsel %vm440, %v1440, 0
    %1457 = vmatprep.subr.mxu0 0.0
    %1458 = vmatpush1.msra.mxu0 %v1354
    %1459 = vmatprep.subr.mxu0 0.0
    %1460 = vmatpush1.msra.mxu0 %v1355
    %1461 = vmatprep.subr.mxu0 0.0
    %1462 = vmatpush1.msra.mxu0 %v1356
    %1463 = vmatprep.subr.mxu0 0.0
    %1464 = vmatpush1.msra.mxu0 %v1357
    %1465 = vmatprep.subr.mxu0 0.0
    %1466 = vmatpush1.msra.mxu0 %v1358
    %1467 = vmatprep.subr.mxu0 0.0
    %1468 = vmatpush1.msra.mxu0 %v1359
    %1469 = vmatprep.subr.mxu0 0.0
    %1470 = vmatpush1.msra.mxu0 %v1360
    %1471 = vmatprep.subr.mxu0 0.0
    %1472 = vmatpush1.msra.mxu0 %v1361
    %1473 = vmatprep.subr.mxu0 0.0
    %1474 = vmatpush1.msra.mxu0 %v1362
    %1475 = vmatprep.subr.mxu0 0.0
    %1476 = vmatpush1.msra.mxu0 %v1363
    %1477 = vmatprep.subr.mxu0 0.0
    %1478 = vmatpush1.msra.mxu0 %v1364
    %1479 = vmatprep.subr.mxu0 0.0
    %1480 = vmatpush1.msra.mxu0 %v1365
    %1481 = vmatprep.subr.mxu0 0.0
    %1482 = vmatpush1.msra.mxu0 0.0
    %1483 = vmatprep.subr.mxu0 0.0
    %1484 = vmatpush1.msra.mxu0 0.0
    %1485 = vmatprep.subr.mxu0 0.0
    %1486 = vmatpush1.msra.mxu0 0.0
    %1487 = vmatprep.subr.mxu0 0.0
    %1488 = vmatpush1.msra.mxu0 0.0
    %1489 = vmatprep.subr.mxu0 0.0
    %1490 = vmatpush1.msra.mxu0 0.0
    %1491 = vmatprep.subr.mxu0 0.0
    %1492 = vmatpush1.msra.mxu0 0.0
    %1493 = vmatprep.subr.mxu0 0.0
    %1494 = vmatpush1.msra.mxu0 0.0
    %1495 = vmatprep.subr.mxu0 0.0
    %1496 = vmatpush1.msra.mxu0 0.0
    %1497 = vmatprep.subr.mxu0 0.0
    %1498 = vmatpush1.msra.mxu0 0.0
    %1499 = vmatprep.subr.mxu0 0.0
    %1500 = vmatpush1.msra.mxu0 0.0
    %1501 = vmatprep.subr.mxu0 0.0
    %1502 = vmatpush1.msra.mxu0 0.0
    %1503 = vmatprep.subr.mxu0 0.0
    %1504 = vmatpush1.msra.mxu0 0.0
    %1505 = vmatprep.subr.mxu0 0.0
    %1506 = vmatpush1.msra.mxu0 0.0
    %1507 = vmatprep.subr.mxu0 0.0
    %1508 = vmatpush1.msra.mxu0 0.0
    %1509 = vmatprep.subr.mxu0 0.0
    %1510 = vmatpush1.msra.mxu0 0.0
    %1511 = vmatprep.subr.mxu0 0.0
    %1512 = vmatpush1.msra.mxu0 0.0
    %1513 = vmatprep.subr.mxu0 0.0
    %1514 = vmatpush1.msra.mxu0 0.0
    %1515 = vmatprep.subr.mxu0 0.0
    %1516 = vmatpush1.msra.mxu0 0.0
    %1517 = vmatprep.subr.mxu0 0.0
    %1518 = vmatpush1.msra.mxu0 0.0
    %1519 = vmatprep.subr.mxu0 0.0
    %1520 = vmatpush1.msra.mxu0 0.0
    %1521 = vmatprep.mubr.f32.mxu0 0.0
    %1522 = vmatmul.mubr.f32.gmra.mrb[0].mxu0 %v1446
    %v1523 = vpop.f32.mrb[0].mxu0
    %v1524 = vadd.f32 %v1444, %v1523
    %v1525 = vpop.f32.mrb[0].mxu0
    %1526 = vmatprep.mubr.f32.mxu0 0.0
    %1527 = vmatmul.mubr.f32.gmra.mrb[0].mxu0 %v1449
    %v1528 = vpop.f32.mrb[0].mxu0
    %v1529 = vadd.f32 %v1444, %v1528
    %v1530 = vpop.f32.mrb[0].mxu0
    %1531 = vmatprep.mubr.f32.mxu0 0.0
    %1532 = vmatmul.mubr.f32.gmra.mrb[0].mxu0 %v1452
    %v1533 = vpop.f32.mrb[0].mxu0
    %v1534 = vadd.f32 %v1444, %v1533
    %v1535 = vpop.f32.mrb[0].mxu0
    %1536 = vmatprep.mubr.f32.mxu0 0.0
    %1537 = vmatmul.mubr.f32.gmra.mrb[0].mxu0 %v1455
    %v1538 = vpop.f32.mrb[0].mxu0
    %v1539 = vadd.f32 %v1444, %v1538
    %v1540 = vpop.f32.mrb[0].mxu0
    %1541 = vdwg.mxu0
    %v1542 = vmul.f32 %v1524, 0.57735026
    %v1543 = vmul.f32 %v1529, 0.57735026
    %v1544 = vmul.f32 %v1534, 0.57735026
    %v1545 = vmul.f32 %v1539, 0.57735026
    %v1546 = vmul.f32 %v1542, 0.5
    %v1547 = vmul.f32 %v1543, 0.5
    %v1548 = vmul.f32 %v1544, 0.5
    %v1549 = vmul.f32 %v1545, 0.5
    %v1550 = vmul.f32 %v1542, 0.70710677
    %v1551 = vmul.f32 %v1543, 0.70710677
    %v1552 = vmul.f32 %v1544, 0.70710677
    %v1553 = vmul.f32 %v1545, 0.70710677
    %vm1554 = vcmp.ge.f32.partialorder %v1550, 0.0
    %vm1555 = vcmp.ge.f32.partialorder %v1551, 0.0
    %vm1556 = vcmp.ge.f32.partialorder %v1552, 0.0
    %vm1557 = vcmp.ge.f32.partialorder %v1553, 0.0
    %v1558 = vsel %vm1554, 1.0, -1.0
    %v1559 = vsel %vm1555, 1.0, -1.0
    %v1560 = vsel %vm1556, 1.0, -1.0
    %v1561 = vsel %vm1557, 1.0, -1.0
    %v1562 = vand.u32 2147483647, %v1550
    %v1563 = vand.u32 2147483647, %v1551
    %v1564 = vand.u32 2147483647, %v1552
    %v1565 = vand.u32 2147483647, %v1553
    %v1566 = vmul.f32 %v1562, 0.3275911
    %v1567 = vmul.f32 %v1563, 0.3275911
    %v1568 = vmul.f32 %v1564, 0.3275911
    %v1569 = vmul.f32 %v1565, 0.3275911
    %v1570 = vadd.f32 %v1566, 1.0
    %v1571 = vadd.f32 %v1567, 1.0
    %v1572 = vadd.f32 %v1568, 1.0
    %v1573 = vadd.f32 %v1569, 1.0
    %v1574 = vrcp.pop %v1570
    %v1575 = vrcp.pop %v1571
    %v1576 = vrcp.pop %v1572
    %v1577 = vrcp.pop %v1573
    %v1578 = vmul.f32 %v1574, 1.0614054
    %v1579 = vmul.f32 %v1575, 1.0614054
    %v1580 = vmul.f32 %v1576, 1.0614054
    %v1581 = vmul.f32 %v1577, 1.0614054
    %v1582 = vadd.f32 %v1578, -1.4531521
    %v1583 = vadd.f32 %v1579, -1.4531521
    %v1584 = vadd.f32 %v1580, -1.4531521
    %v1585 = vadd.f32 %v1581, -1.4531521
    %v1586 = vmul.f32 %v1574, %v1582
    %v1587 = vmul.f32 %v1575, %v1583
    %v1588 = vmul.f32 %v1576, %v1584
    %v1589 = vmul.f32 %v1577, %v1585
    %v1590 = vadd.f32 %v1586, 1.4214138
    %v1591 = vadd.f32 %v1587, 1.4214138
    %v1592 = vadd.f32 %v1588, 1.4214138
    %v1593 = vadd.f32 %v1589, 1.4214138
    %v1594 = vmul.f32 %v1574, %v1590
    %v1595 = vmul.f32 %v1575, %v1591
    %v1596 = vmul.f32 %v1576, %v1592
    %v1597 = vmul.f32 %v1577, %v1593
    %v1598 = vadd.f32 %v1594, -0.28449672
    %v1599 = vadd.f32 %v1595, -0.28449672
    %v1600 = vadd.f32 %v1596, -0.28449672
    %v1601 = vadd.f32 %v1597, -0.28449672
    %v1602 = vmul.f32 %v1574, %v1598
    %v1603 = vmul.f32 %v1575, %v1599
    %v1604 = vmul.f32 %v1576, %v1600
    %v1605 = vmul.f32 %v1577, %v1601
    %v1606 = vadd.f32 %v1602, 0.2548296
    %v1607 = vadd.f32 %v1603, 0.2548296
    %v1608 = vadd.f32 %v1604, 0.2548296
    %v1609 = vadd.f32 %v1605, 0.2548296
    %v1610 = vmul.f32 %v1574, %v1606
    %v1611 = vmul.f32 %v1575, %v1607
    %v1612 = vmul.f32 %v1576, %v1608
    %v1613 = vmul.f32 %v1577, %v1609
    %v1614 = vsub.f32 0.0, %v1562
    %v1615 = vsub.f32 0.0, %v1563
    %v1616 = vsub.f32 0.0, %v1564
    %v1617 = vsub.f32 0.0, %v1565
    %v1618 = vmul.f32 %v1614, %v1562
    %v1619 = vmul.f32 %v1615, %v1563
    %v1620 = vmul.f32 %v1616, %v1564
    %v1621 = vmul.f32 %v1617, %v1565
    %v1622 = vmul.f32 %v1618, 1.442695
    %v1623 = vpow.pop %v1622
    %v1624 = vmul.f32 %v1619, 1.442695
    %v1625 = vpow.pop %v1624
    %v1626 = vmul.f32 %v1620, 1.442695
    %v1627 = vpow.pop %v1626
    %v1628 = vmul.f32 %v1621, 1.442695
    %v1629 = vpow.pop %v1628
    %v1630 = vmul.f32 %v1610, %v1623
    %v1631 = vmul.f32 %v1611, %v1625
    %v1632 = vmul.f32 %v1612, %v1627
    %v1633 = vmul.f32 %v1613, %v1629
    %v1634 = vsub.f32 1.0, %v1630
    %v1635 = vsub.f32 1.0, %v1631
    %v1636 = vsub.f32 1.0, %v1632
    %v1637 = vsub.f32 1.0, %v1633
    %v1638 = vmul.f32 %v1558, %v1634
    %v1639 = vmul.f32 %v1559, %v1635
    %v1640 = vmul.f32 %v1560, %v1636
    %v1641 = vmul.f32 %v1561, %v1637
    %v1642 = vadd.f32 %v1638, 1.0
    %v1643 = vadd.f32 %v1639, 1.0
    %v1644 = vadd.f32 %v1640, 1.0
    %v1645 = vadd.f32 %v1641, 1.0
    %v1646 = vmul.f32 %v1546, %v1642
    %v1647 = vmul.f32 %v1547, %v1643
    %v1648 = vmul.f32 %v1548, %v1644
    %v1649 = vmul.f32 %v1549, %v1645
    %s1650 = scalar_lea.vmem %s5, 128
    %v1651 = vld [vmem:[%s1650] sm:$0xff]
    %v1652 = vld [vmem:[%s1650 + $0x8] sm:$0xff]
    %v1653 = vld [vmem:[%s1650 + $0x10] sm:$0xff]
    %v1654 = vld [vmem:[%s1650 + $0x18] sm:$0xff]
    %v1655 = vld [vmem:[%s1650 + $0x20] sm:$0xff]
    %v1656 = vld [vmem:[%s1650 + $0x28] sm:$0xff]
    %v1657 = vld [vmem:[%s1650 + $0x30] sm:$0xff]
    %v1658 = vld [vmem:[%s1650 + $0x38] sm:$0xff]
    %v1659 = vlaneseq
    %v1660 = vshrl.u32 %v1659, 7
    %v1661 = vsub.s32 0, %v1660
    %v1662 = vrot.slane %v1276, %v1661
    %v1664 = vsel %vm431, %v1646, 0
    %v1667 = vsel %vm431, %v1647, 0
    %v1670 = vsel %vm431, %v1648, 0
    %v1673 = vsel %vm431, %v1649, 0
    %1675 = vmatprep.subr.mxu0 0.0
    %1676 = vmatpush1.msra.mxu0 %v1651
    %1677 = vmatprep.subr.mxu0 0.0
    %1678 = vmatpush1.msra.mxu0 %v1652
    %1679 = vmatprep.subr.mxu0 0.0
    %1680 = vmatpush1.msra.mxu0 %v1653
    %1681 = vmatprep.subr.mxu0 0.0
    %1682 = vmatpush1.msra.mxu0 %v1654
    %1683 = vmatprep.subr.mxu0 0.0
    %1684 = vmatpush1.msra.mxu0 %v1655
    %1685 = vmatprep.subr.mxu0 0.0
    %1686 = vmatpush1.msra.mxu0 %v1656
    %1687 = vmatprep.subr.mxu0 0.0
    %1688 = vmatpush1.msra.mxu0 %v1657
    %1689 = vmatprep.subr.mxu0 0.0
    %1690 = vmatpush1.msra.mxu0 %v1658
    %1691 = vmatprep.subr.mxu0 0.0
    %1692 = vmatpush1.msra.mxu0 0.0
    %1693 = vmatprep.subr.mxu0 0.0
    %1694 = vmatpush1.msra.mxu0 0.0
    %1695 = vmatprep.subr.mxu0 0.0
    %1696 = vmatpush1.msra.mxu0 0.0
    %1697 = vmatprep.subr.mxu0 0.0
    %1698 = vmatpush1.msra.mxu0 0.0
    %1699 = vmatprep.subr.mxu0 0.0
    %1700 = vmatpush1.msra.mxu0 0.0
    %1701 = vmatprep.subr.mxu0 0.0
    %1702 = vmatpush1.msra.mxu0 0.0
    %1703 = vmatprep.subr.mxu0 0.0
    %1704 = vmatpush1.msra.mxu0 0.0
    %1705 = vmatprep.subr.mxu0 0.0
    %1706 = vmatpush1.msra.mxu0 0.0
    %1707 = vmatprep.subr.mxu0 0.0
    %1708 = vmatpush1.msra.mxu0 0.0
    %1709 = vmatprep.subr.mxu0 0.0
    %1710 = vmatpush1.msra.mxu0 0.0
    %1711 = vmatprep.subr.mxu0 0.0
    %1712 = vmatpush1.msra.mxu0 0.0
    %1713 = vmatprep.subr.mxu0 0.0
    %1714 = vmatpush1.msra.mxu0 0.0
    %1715 = vmatprep.subr.mxu0 0.0
    %1716 = vmatpush1.msra.mxu0 0.0
    %1717 = vmatprep.subr.mxu0 0.0
    %1718 = vmatpush1.msra.mxu0 0.0
    %1719 = vmatprep.subr.mxu0 0.0
    %1720 = vmatpush1.msra.mxu0 0.0
    %1721 = vmatprep.subr.mxu0 0.0
    %1722 = vmatpush1.msra.mxu0 0.0
    %1723 = vmatprep.subr.mxu0 0.0
    %1724 = vmatpush1.msra.mxu0 0.0
    %1725 = vmatprep.subr.mxu0 0.0
    %1726 = vmatpush1.msra.mxu0 0.0
    %1727 = vmatprep.subr.mxu0 0.0
    %1728 = vmatpush1.msra.mxu0 0.0
    %1729 = vmatprep.subr.mxu0 0.0
    %1730 = vmatpush1.msra.mxu0 0.0
    %1731 = vmatprep.subr.mxu0 0.0
    %1732 = vmatpush1.msra.mxu0 0.0
    %1733 = vmatprep.subr.mxu0 0.0
    %1734 = vmatpush1.msra.mxu0 0.0
    %1735 = vmatprep.subr.mxu0 0.0
    %1736 = vmatpush1.msra.mxu0 0.0
    %1737 = vmatprep.subr.mxu0 0.0
    %1738 = vmatpush1.msra.mxu0 0.0
    %1739 = vmatprep.mubr.f32.mxu0 0.0
    %1740 = vmatmul.mubr.f32.gmra.mrb[0].mxu0 %v1664
    %v1741 = vpop.f32.mrb[0].mxu0
    %v1742 = vadd.f32 %v1662, %v1741
    %v1743 = vpop.f32.mrb[0].mxu0
    %1744 = vmatprep.mubr.f32.mxu0 0.0
    %1745 = vmatmul.mubr.f32.gmra.mrb[0].mxu0 %v1667
    %v1746 = vpop.f32.mrb[0].mxu0
    %v1747 = vadd.f32 %v1662, %v1746
    %v1748 = vpop.f32.mrb[0].mxu0
    %1749 = vmatprep.mubr.f32.mxu0 0.0
    %1750 = vmatmul.mubr.f32.gmra.mrb[0].mxu0 %v1670
    %v1751 = vpop.f32.mrb[0].mxu0
    %v1752 = vadd.f32 %v1662, %v1751
    %v1753 = vpop.f32.mrb[0].mxu0
    %1754 = vmatprep.mubr.f32.mxu0 0.0
    %1755 = vmatmul.mubr.f32.gmra.mrb[0].mxu0 %v1673
    %v1756 = vpop.f32.mrb[0].mxu0
    %v1757 = vadd.f32 %v1662, %v1756
    %v1758 = vpop.f32.mrb[0].mxu0
    %1759 = vdwg.mxu0
    %v1760 = vadd.f32 %v1242, %v1742
    %v1761 = vadd.f32 %v1243, %v1747
    %v1762 = vadd.f32 %v1244, %v1752
    %v1763 = vadd.f32 %v1245, %v1757
    %v1764 = vmul.f32 %v1760, %v1270
    %v1765 = vmul.f32 %v1761, %v1271
    %v1766 = vmul.f32 %v1762, %v1272
    %v1767 = vmul.f32 %v1763, %v1273
    %v1768 = vld [vmem:[%s7 + $0x3] sm:$0x1]
    %v1769 = vld [vmem:[%s7 + $0x7] sm:$0x1]
    %v1770 = vld [vmem:[%s7 + $0xb] sm:$0x1]
    %v1771 = vsel %vm42, %v1764, 0.0
    %1772 = vadd.xlane.f32.xlu0 %v1771
    %v1773 = vpop.xlane.xlu0 %1772
    %v1774 = vsel %vm42, %v1765, 0.0
    %1775 = vadd.xlane.f32.xlu0 %v1774
    %v1776 = vpop.xlane.xlu0 %1775
    %v1777 = vsel %vm42, %v1766, 0.0
    %1778 = vadd.xlane.f32.xlu0 %v1777
    %v1779 = vpop.xlane.xlu0 %1778
    %v1780 = vsel %vm42, %v1767, 0.0
    %1781 = vadd.xlane.f32.xlu0 %v1780
    %v1782 = vpop.xlane.xlu0 %1781
    %v1783 = vmul.f32 %v1773, %v294
    %v1784 = vmul.f32 %v1776, %v294
    %v1785 = vmul.f32 %v1779, %v294
    %v1786 = vmul.f32 %v1782, %v294
    %v1787 = vmul.f32 %v1764, %v1764
    %v1788 = vmul.f32 %v1765, %v1765
    %v1789 = vmul.f32 %v1766, %v1766
    %v1790 = vmul.f32 %v1767, %v1767
    %v1791 = vsel %vm42, %v1787, 0.0
    %1792 = vadd.xlane.f32.xlu0 %v1791
    %v1793 = vpop.xlane.xlu0 %1792
    %v1794 = vsel %vm42, %v1788, 0.0
    %1795 = vadd.xlane.f32.xlu0 %v1794
    %v1796 = vpop.xlane.xlu0 %1795
    %v1797 = vsel %vm42, %v1789, 0.0
    %1798 = vadd.xlane.f32.xlu0 %v1797
    %v1799 = vpop.xlane.xlu0 %1798
    %v1800 = vsel %vm42, %v1790, 0.0
    %1801 = vadd.xlane.f32.xlu0 %v1800
    %v1802 = vpop.xlane.xlu0 %1801
    %v1803 = vmul.f32 %v1793, %v294
    %v1804 = vmul.f32 %v1796, %v294
    %v1805 = vmul.f32 %v1799, %v294
    %v1806 = vmul.f32 %v1802, %v294
    %v1807 = vmul.f32 %v1783, %v1783
    %v1808 = vmul.f32 %v1784, %v1784
    %v1809 = vmul.f32 %v1785, %v1785
    %v1810 = vmul.f32 %v1786, %v1786
    %v1811 = vsub.f32 %v1803, %v1807
    %v1812 = vsub.f32 %v1804, %v1808
    %v1813 = vsub.f32 %v1805, %v1809
    %v1814 = vsub.f32 %v1806, %v1810
    %v1815 = vsub.f32 %v1764, %v1783
    %v1816 = vsub.f32 %v1765, %v1784
    %v1817 = vsub.f32 %v1766, %v1785
    %v1818 = vsub.f32 %v1767, %v1786
    %v1819 = vadd.f32 %v1811, 1e-05
    %v1820 = vadd.f32 %v1812, 1e-05
    %v1821 = vadd.f32 %v1813, 1e-05
    %v1822 = vadd.f32 %v1814, 1e-05
    %v1823 = vrsqrt.pop %v1819
    %v1824 = vrsqrt.pop %v1820
    %v1825 = vrsqrt.pop %v1821
    %v1826 = vrsqrt.pop %v1822
    %v1827 = vmul.f32 %v1815, %v1823
    %v1828 = vmul.f32 %v1816, %v1824
    %v1829 = vmul.f32 %v1817, %v1825
    %v1830 = vmul.f32 %v1818, %v1826
    %v1831 = vlaneseq
    %v1832 = vshrl.u32 %v1831, 7
    %v1833 = vsub.s32 0, %v1832
    %v1834 = vrot.slane %v1768, %v1833
    %v1835 = vmul.f32 %v1827, %v1834
    %v1836 = vmul.f32 %v1828, %v1834
    %v1837 = vmul.f32 %v1829, %v1834
    %v1838 = vmul.f32 %v1830, %v1834
    %1840 = vrot.lane.b32.xlu0 %v1834, 96
    %v1841 = vpop.permute.xlu0 %1840
    %v1843 = vadd.f32 %v1835, %v1841
    %v1844 = vadd.f32 %v1836, %v1841
    %v1845 = vadd.f32 %v1837, %v1841
    %v1846 = vadd.f32 %v1838, %v1841
    %s1847 = scalar_lea.vmem %s4, 288
    %v1848 = vld [vmem:[%s1847] sm:$0xff]
    %v1849 = vld [vmem:[%s1847 + $0x8] sm:$0xff]
    %v1850 = vld [vmem:[%s1847 + $0x10] sm:$0xff]
    %v1851 = vld [vmem:[%s1847 + $0x18] sm:$0xff]
    %v1852 = vld [vmem:[%s1847 + $0x20] sm:$0xff]
    %v1853 = vld [vmem:[%s1847 + $0x28] sm:$0xff]
    %v1854 = vld [vmem:[%s1847 + $0x30] sm:$0xff]
    %v1855 = vld [vmem:[%s1847 + $0x38] sm:$0xff]
    %v1856 = vld [vmem:[%s1847 + $0x40] sm:$0xff]
    %v1857 = vld [vmem:[%s1847 + $0x48] sm:$0xff]
    %v1858 = vld [vmem:[%s1847 + $0x50] sm:$0xff]
    %v1859 = vld [vmem:[%s1847 + $0x58] sm:$0xff]
    %v1860 = vrot.slane %v1843, 6
    %v1861 = vrot.slane %v1844, 6
    %v1862 = vrot.slane %v1845, 6
    %v1863 = vrot.slane %v1846, 6
    %v1864 = vsel %vm1370, %v1862, %v1863
    %v1865 = vsel %vm1370, %v1861, %v1862
    %v1866 = vsel %vm1370, %v1860, %v1861
    %v1867 = vsel %vm1370, %v1863, %v1860
    %v1868 = vmul.f32 %v1867, %v1375
    %v1869 = vmul.f32 %v1866, %v1376
    %v1870 = vmul.f32 %v1865, %v1377
    %v1871 = vmul.f32 %v1864, %v1378
    %v1872 = vrot.slane %v1843, 2
    %v1873 = vrot.slane %v1844, 2
    %v1874 = vrot.slane %v1845, 2
    %v1875 = vrot.slane %v1846, 2
    %v1876 = vsel %vm1387, %v1874, %v1875
    %v1877 = vsel %vm1387, %v1873, %v1874
    %v1878 = vsel %vm1387, %v1872, %v1873
    %v1879 = vsel %vm1387, %v1875, %v1872
    %v1880 = vmul.f32 %v1878, %v1393
    %v1881 = vmul.f32 %v1877, %v1394
    %v1882 = vmul.f32 %v1876, %v1395
    %v1883 = vmul.f32 %v1879, %v1396
    %1888 = vrot.lane.b32.xlu0 %v1843, 32
    %v1889 = vpop.permute.xlu0 %1888
    %1890 = vrot.lane.b32.xlu0 %v1844, 32
    %v1891 = vpop.permute.xlu0 %1890
    %1892 = vrot.lane.b32.xlu0 %v1845, 32
    %v1893 = vpop.permute.xlu0 %1892
    %1894 = vrot.lane.b32.xlu0 %v1846, 32
    %v1895 = vpop.permute.xlu0 %1894
    %1904 = vrot.lane.b32.xlu0 %v1880, 64
    %v1905 = vpop.permute.xlu0 %1904
    %1906 = vrot.lane.b32.xlu0 %v1881, 64
    %v1907 = vpop.permute.xlu0 %1906
    %1908 = vrot.lane.b32.xlu0 %v1882, 64
    %v1909 = vpop.permute.xlu0 %1908
    %1910 = vrot.lane.b32.xlu0 %v1883, 64
    %v1911 = vpop.permute.xlu0 %1910
    %v1916 = vsel %vm42, %v1868, %v1889
    %v1917 = vsel %vm42, %v1869, %v1891
    %v1918 = vsel %vm42, %v1870, %v1893
    %v1919 = vsel %vm42, %v1871, %v1895
    %v1920 = vsel %vm431, %v1916, %v1905
    %v1921 = vsel %vm431, %v1917, %v1907
    %v1922 = vsel %vm431, %v1918, %v1909
    %v1923 = vsel %vm431, %v1919, %v1911
    %v1924 = vlaneseq
    %v1925 = vshrl.u32 %v1924, 7
    %v1926 = vsub.s32 0, %v1925
    %v1927 = vrot.slane %v1769, %v1926
    %v1929 = vsel %vm440, %v1920, 0
    %v1932 = vsel %vm440, %v1921, 0
    %v1935 = vsel %vm440, %v1922, 0
    %v1938 = vsel %vm440, %v1923, 0
    %1940 = vmatprep.subr.mxu0 0.0
    %1941 = vmatpush1.msra.mxu0 %v1848
    %1942 = vmatprep.subr.mxu0 0.0
    %1943 = vmatpush1.msra.mxu0 %v1849
    %1944 = vmatprep.subr.mxu0 0.0
    %1945 = vmatpush1.msra.mxu0 %v1850
    %1946 = vmatprep.subr.mxu0 0.0
    %1947 = vmatpush1.msra.mxu0 %v1851
    %1948 = vmatprep.subr.mxu0 0.0
    %1949 = vmatpush1.msra.mxu0 %v1852
    %1950 = vmatprep.subr.mxu0 0.0
    %1951 = vmatpush1.msra.mxu0 %v1853
    %1952 = vmatprep.subr.mxu0 0.0
    %1953 = vmatpush1.msra.mxu0 %v1854
    %1954 = vmatprep.subr.mxu0 0.0
    %1955 = vmatpush1.msra.mxu0 %v1855
    %1956 = vmatprep.subr.mxu0 0.0
    %1957 = vmatpush1.msra.mxu0 %v1856
    %1958 = vmatprep.subr.mxu0 0.0
    %1959 = vmatpush1.msra.mxu0 %v1857
    %1960 = vmatprep.subr.mxu0 0.0
    %1961 = vmatpush1.msra.mxu0 %v1858
    %1962 = vmatprep.subr.mxu0 0.0
    %1963 = vmatpush1.msra.mxu0 %v1859
    %1964 = vmatprep.subr.mxu0 0.0
    %1965 = vmatpush1.msra.mxu0 0.0
    %1966 = vmatprep.subr.mxu0 0.0
    %1967 = vmatpush1.msra.mxu0 0.0
    %1968 = vmatprep.subr.mxu0 0.0
    %1969 = vmatpush1.msra.mxu0 0.0
    %1970 = vmatprep.subr.mxu0 0.0
    %1971 = vmatpush1.msra.mxu0 0.0
    %1972 = vmatprep.subr.mxu0 0.0
    %1973 = vmatpush1.msra.mxu0 0.0
    %1974 = vmatprep.subr.mxu0 0.0
    %1975 = vmatpush1.msra.mxu0 0.0
    %1976 = vmatprep.subr.mxu0 0.0
    %1977 = vmatpush1.msra.mxu0 0.0
    %1978 = vmatprep.subr.mxu0 0.0
    %1979 = vmatpush1.msra.mxu0 0.0
    %1980 = vmatprep.subr.mxu0 0.0
    %1981 = vmatpush1.msra.mxu0 0.0
    %1982 = vmatprep.subr.mxu0 0.0
    %1983 = vmatpush1.msra.mxu0 0.0
    %1984 = vmatprep.subr.mxu0 0.0
    %1985 = vmatpush1.msra.mxu0 0.0
    %1986 = vmatprep.subr.mxu0 0.0
    %1987 = vmatpush1.msra.mxu0 0.0
    %1988 = vmatprep.subr.mxu0 0.0
    %1989 = vmatpush1.msra.mxu0 0.0
    %1990 = vmatprep.subr.mxu0 0.0
    %1991 = vmatpush1.msra.mxu0 0.0
    %1992 = vmatprep.subr.mxu0 0.0
    %1993 = vmatpush1.msra.mxu0 0.0
    %1994 = vmatprep.subr.mxu0 0.0
    %1995 = vmatpush1.msra.mxu0 0.0
    %1996 = vmatprep.subr.mxu0 0.0
    %1997 = vmatpush1.msra.mxu0 0.0
    %1998 = vmatprep.subr.mxu0 0.0
    %1999 = vmatpush1.msra.mxu0 0.0
    %2000 = vmatprep.subr.mxu0 0.0
    %2001 = vmatpush1.msra.mxu0 0.0
    %2002 = vmatprep.subr.mxu0 0.0
    %2003 = vmatpush1.msra.mxu0 0.0
    %2004 = vmatprep.mubr.f32.mxu0 0.0
    %2005 = vmatmul.mubr.f32.gmra.mrb[0].mxu0 %v1929
    %v2006 = vpop.f32.mrb[0].mxu0
    %v2007 = vadd.f32 %v1927, %v2006
    %v2008 = vpop.f32.mrb[0].mxu0
    %2009 = vmatprep.mubr.f32.mxu0 0.0
    %2010 = vmatmul.mubr.f32.gmra.mrb[0].mxu0 %v1932
    %v2011 = vpop.f32.mrb[0].mxu0
    %v2012 = vadd.f32 %v1927, %v2011
    %v2013 = vpop.f32.mrb[0].mxu0
    %2014 = vmatprep.mubr.f32.mxu0 0.0
    %2015 = vmatmul.mubr.f32.gmra.mrb[0].mxu0 %v1935
    %v2016 = vpop.f32.mrb[0].mxu0
    %v2017 = vadd.f32 %v1927, %v2016
    %v2018 = vpop.f32.mrb[0].mxu0
    %2019 = vmatprep.mubr.f32.mxu0 0.0
    %2020 = vmatmul.mubr.f32.gmra.mrb[0].mxu0 %v1938
    %v2021 = vpop.f32.mrb[0].mxu0
    %v2022 = vadd.f32 %v1927, %v2021
    %v2023 = vpop.f32.mrb[0].mxu0
    %2024 = vdwg.mxu0
    %v2025 = vmul.f32 %v2007, 0.57735026
    %v2026 = vmul.f32 %v2012, 0.57735026
    %v2027 = vmul.f32 %v2017, 0.57735026
    %v2028 = vmul.f32 %v2022, 0.57735026
    %v2029 = vmul.f32 %v2025, 0.5
    %v2030 = vmul.f32 %v2026, 0.5
    %v2031 = vmul.f32 %v2027, 0.5
    %v2032 = vmul.f32 %v2028, 0.5
    %v2033 = vmul.f32 %v2025, 0.70710677
    %v2034 = vmul.f32 %v2026, 0.70710677
    %v2035 = vmul.f32 %v2027, 0.70710677
    %v2036 = vmul.f32 %v2028, 0.70710677
    %vm2037 = vcmp.ge.f32.partialorder %v2033, 0.0
    %vm2038 = vcmp.ge.f32.partialorder %v2034, 0.0
    %vm2039 = vcmp.ge.f32.partialorder %v2035, 0.0
    %vm2040 = vcmp.ge.f32.partialorder %v2036, 0.0
    %v2041 = vsel %vm2037, 1.0, -1.0
    %v2042 = vsel %vm2038, 1.0, -1.0
    %v2043 = vsel %vm2039, 1.0, -1.0
    %v2044 = vsel %vm2040, 1.0, -1.0
    %v2045 = vand.u32 2147483647, %v2033
    %v2046 = vand.u32 2147483647, %v2034
    %v2047 = vand.u32 2147483647, %v2035
    %v2048 = vand.u32 2147483647, %v2036
    %v2049 = vmul.f32 %v2045, 0.3275911
    %v2050 = vmul.f32 %v2046, 0.3275911
    %v2051 = vmul.f32 %v2047, 0.3275911
    %v2052 = vmul.f32 %v2048, 0.3275911
    %v2053 = vadd.f32 %v2049, 1.0
    %v2054 = vadd.f32 %v2050, 1.0
    %v2055 = vadd.f32 %v2051, 1.0
    %v2056 = vadd.f32 %v2052, 1.0
    %v2057 = vrcp.pop %v2053
    %v2058 = vrcp.pop %v2054
    %v2059 = vrcp.pop %v2055
    %v2060 = vrcp.pop %v2056
    %v2061 = vmul.f32 %v2057, 1.0614054
    %v2062 = vmul.f32 %v2058, 1.0614054
    %v2063 = vmul.f32 %v2059, 1.0614054
    %v2064 = vmul.f32 %v2060, 1.0614054
    %v2065 = vadd.f32 %v2061, -1.4531521
    %v2066 = vadd.f32 %v2062, -1.4531521
    %v2067 = vadd.f32 %v2063, -1.4531521
    %v2068 = vadd.f32 %v2064, -1.4531521
    %v2069 = vmul.f32 %v2057, %v2065
    %v2070 = vmul.f32 %v2058, %v2066
    %v2071 = vmul.f32 %v2059, %v2067
    %v2072 = vmul.f32 %v2060, %v2068
    %v2073 = vadd.f32 %v2069, 1.4214138
    %v2074 = vadd.f32 %v2070, 1.4214138
    %v2075 = vadd.f32 %v2071, 1.4214138
    %v2076 = vadd.f32 %v2072, 1.4214138
    %v2077 = vmul.f32 %v2057, %v2073
    %v2078 = vmul.f32 %v2058, %v2074
    %v2079 = vmul.f32 %v2059, %v2075
    %v2080 = vmul.f32 %v2060, %v2076
    %v2081 = vadd.f32 %v2077, -0.28449672
    %v2082 = vadd.f32 %v2078, -0.28449672
    %v2083 = vadd.f32 %v2079, -0.28449672
    %v2084 = vadd.f32 %v2080, -0.28449672
    %v2085 = vmul.f32 %v2057, %v2081
    %v2086 = vmul.f32 %v2058, %v2082
    %v2087 = vmul.f32 %v2059, %v2083
    %v2088 = vmul.f32 %v2060, %v2084
    %v2089 = vadd.f32 %v2085, 0.2548296
    %v2090 = vadd.f32 %v2086, 0.2548296
    %v2091 = vadd.f32 %v2087, 0.2548296
    %v2092 = vadd.f32 %v2088, 0.2548296
    %v2093 = vmul.f32 %v2057, %v2089
    %v2094 = vmul.f32 %v2058, %v2090
    %v2095 = vmul.f32 %v2059, %v2091
    %v2096 = vmul.f32 %v2060, %v2092
    %v2097 = vsub.f32 0.0, %v2045
    %v2098 = vsub.f32 0.0, %v2046
    %v2099 = vsub.f32 0.0, %v2047
    %v2100 = vsub.f32 0.0, %v2048
    %v2101 = vmul.f32 %v2097, %v2045
    %v2102 = vmul.f32 %v2098, %v2046
    %v2103 = vmul.f32 %v2099, %v2047
    %v2104 = vmul.f32 %v2100, %v2048
    %v2105 = vmul.f32 %v2101, 1.442695
    %v2106 = vpow.pop %v2105
    %v2107 = vmul.f32 %v2102, 1.442695
    %v2108 = vpow.pop %v2107
    %v2109 = vmul.f32 %v2103, 1.442695
    %v2110 = vpow.pop %v2109
    %v2111 = vmul.f32 %v2104, 1.442695
    %v2112 = vpow.pop %v2111
    %v2113 = vmul.f32 %v2093, %v2106
    %v2114 = vmul.f32 %v2094, %v2108
    %v2115 = vmul.f32 %v2095, %v2110
    %v2116 = vmul.f32 %v2096, %v2112
    %v2117 = vsub.f32 1.0, %v2113
    %v2118 = vsub.f32 1.0, %v2114
    %v2119 = vsub.f32 1.0, %v2115
    %v2120 = vsub.f32 1.0, %v2116
    %v2121 = vmul.f32 %v2041, %v2117
    %v2122 = vmul.f32 %v2042, %v2118
    %v2123 = vmul.f32 %v2043, %v2119
    %v2124 = vmul.f32 %v2044, %v2120
    %v2125 = vadd.f32 %v2121, 1.0
    %v2126 = vadd.f32 %v2122, 1.0
    %v2127 = vadd.f32 %v2123, 1.0
    %v2128 = vadd.f32 %v2124, 1.0
    %v2129 = vmul.f32 %v2029, %v2125
    %v2130 = vmul.f32 %v2030, %v2126
    %v2131 = vmul.f32 %v2031, %v2127
    %v2132 = vmul.f32 %v2032, %v2128
    %s2133 = scalar_lea.vmem %s5, 192
    %v2134 = vld [vmem:[%s2133] sm:$0xff]
    %v2135 = vld [vmem:[%s2133 + $0x8] sm:$0xff]
    %v2136 = vld [vmem:[%s2133 + $0x10] sm:$0xff]
    %v2137 = vld [vmem:[%s2133 + $0x18] sm:$0xff]
    %v2138 = vld [vmem:[%s2133 + $0x20] sm:$0xff]
    %v2139 = vld [vmem:[%s2133 + $0x28] sm:$0xff]
    %v2140 = vld [vmem:[%s2133 + $0x30] sm:$0xff]
    %v2141 = vld [vmem:[%s2133 + $0x38] sm:$0xff]
    %v2142 = vlaneseq
    %v2143 = vshrl.u32 %v2142, 7
    %v2144 = vsub.s32 0, %v2143
    %v2145 = vrot.slane %v1770, %v2144
    %v2147 = vsel %vm431, %v2129, 0
    %v2150 = vsel %vm431, %v2130, 0
    %v2153 = vsel %vm431, %v2131, 0
    %v2156 = vsel %vm431, %v2132, 0
    %2158 = vmatprep.subr.mxu0 0.0
    %2159 = vmatpush1.msra.mxu0 %v2134
    %2160 = vmatprep.subr.mxu0 0.0
    %2161 = vmatpush1.msra.mxu0 %v2135
    %2162 = vmatprep.subr.mxu0 0.0
    %2163 = vmatpush1.msra.mxu0 %v2136
    %2164 = vmatprep.subr.mxu0 0.0
    %2165 = vmatpush1.msra.mxu0 %v2137
    %2166 = vmatprep.subr.mxu0 0.0
    %2167 = vmatpush1.msra.mxu0 %v2138
    %2168 = vmatprep.subr.mxu0 0.0
    %2169 = vmatpush1.msra.mxu0 %v2139
    %2170 = vmatprep.subr.mxu0 0.0
    %2171 = vmatpush1.msra.mxu0 %v2140
    %2172 = vmatprep.subr.mxu0 0.0
    %2173 = vmatpush1.msra.mxu0 %v2141
    %2174 = vmatprep.subr.mxu0 0.0
    %2175 = vmatpush1.msra.mxu0 0.0
    %2176 = vmatprep.subr.mxu0 0.0
    %2177 = vmatpush1.msra.mxu0 0.0
    %2178 = vmatprep.subr.mxu0 0.0
    %2179 = vmatpush1.msra.mxu0 0.0
    %2180 = vmatprep.subr.mxu0 0.0
    %2181 = vmatpush1.msra.mxu0 0.0
    %2182 = vmatprep.subr.mxu0 0.0
    %2183 = vmatpush1.msra.mxu0 0.0
    %2184 = vmatprep.subr.mxu0 0.0
    %2185 = vmatpush1.msra.mxu0 0.0
    %2186 = vmatprep.subr.mxu0 0.0
    %2187 = vmatpush1.msra.mxu0 0.0
    %2188 = vmatprep.subr.mxu0 0.0
    %2189 = vmatpush1.msra.mxu0 0.0
    %2190 = vmatprep.subr.mxu0 0.0
    %2191 = vmatpush1.msra.mxu0 0.0
    %2192 = vmatprep.subr.mxu0 0.0
    %2193 = vmatpush1.msra.mxu0 0.0
    %2194 = vmatprep.subr.mxu0 0.0
    %2195 = vmatpush1.msra.mxu0 0.0
    %2196 = vmatprep.subr.mxu0 0.0
    %2197 = vmatpush1.msra.mxu0 0.0
    %2198 = vmatprep.subr.mxu0 0.0
    %2199 = vmatpush1.msra.mxu0 0.0
    %2200 = vmatprep.subr.mxu0 0.0
    %2201 = vmatpush1.msra.mxu0 0.0
    %2202 = vmatprep.subr.mxu0 0.0
    %2203 = vmatpush1.msra.mxu0 0.0
    %2204 = vmatprep.subr.mxu0 0.0
    %2205 = vmatpush1.msra.mxu0 0.0
    %2206 = vmatprep.subr.mxu0 0.0
    %2207 = vmatpush1.msra.mxu0 0.0
    %2208 = vmatprep.subr.mxu0 0.0
    %2209 = vmatpush1.msra.mxu0 0.0
    %2210 = vmatprep.subr.mxu0 0.0
    %2211 = vmatpush1.msra.mxu0 0.0
    %2212 = vmatprep.subr.mxu0 0.0
    %2213 = vmatpush1.msra.mxu0 0.0
    %2214 = vmatprep.subr.mxu0 0.0
    %2215 = vmatpush1.msra.mxu0 0.0
    %2216 = vmatprep.subr.mxu0 0.0
    %2217 = vmatpush1.msra.mxu0 0.0
    %2218 = vmatprep.subr.mxu0 0.0
    %2219 = vmatpush1.msra.mxu0 0.0
    %2220 = vmatprep.subr.mxu0 0.0
    %2221 = vmatpush1.msra.mxu0 0.0
    %2222 = vmatprep.mubr.f32.mxu0 0.0
    %2223 = vmatmul.mubr.f32.gmra.mrb[0].mxu0 %v2147
    %v2224 = vpop.f32.mrb[0].mxu0
    %v2225 = vadd.f32 %v2145, %v2224
    %v2226 = vpop.f32.mrb[0].mxu0
    %2227 = vmatprep.mubr.f32.mxu0 0.0
    %2228 = vmatmul.mubr.f32.gmra.mrb[0].mxu0 %v2150
    %v2229 = vpop.f32.mrb[0].mxu0
    %v2230 = vadd.f32 %v2145, %v2229
    %v2231 = vpop.f32.mrb[0].mxu0
    %2232 = vmatprep.mubr.f32.mxu0 0.0
    %2233 = vmatmul.mubr.f32.gmra.mrb[0].mxu0 %v2153
    %v2234 = vpop.f32.mrb[0].mxu0
    %v2235 = vadd.f32 %v2145, %v2234
    %v2236 = vpop.f32.mrb[0].mxu0
    %2237 = vmatprep.mubr.f32.mxu0 0.0
    %2238 = vmatmul.mubr.f32.gmra.mrb[0].mxu0 %v2156
    %v2239 = vpop.f32.mrb[0].mxu0
    %v2240 = vadd.f32 %v2145, %v2239
    %v2241 = vpop.f32.mrb[0].mxu0
    %2242 = vdwg.mxu0
    %v2243 = vadd.f32 %v1764, %v2225
    %v2244 = vadd.f32 %v1765, %v2230
    %v2245 = vadd.f32 %v1766, %v2235
    %v2246 = vadd.f32 %v1767, %v2240
    %v2247 = vmul.f32 %v2243, %v1270
    %v2248 = vmul.f32 %v2244, %v1271
    %v2249 = vmul.f32 %v2245, %v1272
    %v2250 = vmul.f32 %v2246, %v1273
    %v2251 = vld [vmem:[%s7 + $0xc] sm:$0x1]
    %v2252 = vld [vmem:[%s7 + $0xe] sm:$0x1]
    %v2253 = vmul.f32 %v2247, %v275
    %v2254 = vmul.f32 %v2248, %v276
    %v2255 = vmul.f32 %v2249, %v277
    %v2256 = vmul.f32 %v2250, %v278
    %v2257 = vsel %vm42, %v2253, 0.0
    %2258 = vadd.xlane.f32.xlu0 %v2257
    %v2259 = vpop.xlane.xlu0 %2258
    %v2260 = vsel %vm42, %v2254, 0.0
    %2261 = vadd.xlane.f32.xlu0 %v2260
    %v2262 = vpop.xlane.xlu0 %2261
    %v2263 = vsel %vm42, %v2255, 0.0
    %2264 = vadd.xlane.f32.xlu0 %v2263
    %v2265 = vpop.xlane.xlu0 %2264
    %v2266 = vsel %vm42, %v2256, 0.0
    %2267 = vadd.xlane.f32.xlu0 %v2266
    %v2268 = vpop.xlane.xlu0 %2267
    %v2269 = vmul.f32 %v2259, %v294
    %v2270 = vmul.f32 %v2262, %v294
    %v2271 = vmul.f32 %v2265, %v294
    %v2272 = vmul.f32 %v2268, %v294
    %v2273 = vmul.f32 %v2253, %v2253
    %v2274 = vmul.f32 %v2254, %v2254
    %v2275 = vmul.f32 %v2255, %v2255
    %v2276 = vmul.f32 %v2256, %v2256
    %v2277 = vsel %vm42, %v2273, 0.0
    %2278 = vadd.xlane.f32.xlu0 %v2277
    %v2279 = vpop.xlane.xlu0 %2278
    %v2280 = vsel %vm42, %v2274, 0.0
    %2281 = vadd.xlane.f32.xlu0 %v2280
    %v2282 = vpop.xlane.xlu0 %2281
    %v2283 = vsel %vm42, %v2275, 0.0
    %2284 = vadd.xlane.f32.xlu0 %v2283
    %v2285 = vpop.xlane.xlu0 %2284
    %v2286 = vsel %vm42, %v2276, 0.0
    %2287 = vadd.xlane.f32.xlu0 %v2286
    %v2288 = vpop.xlane.xlu0 %2287
    %v2289 = vmul.f32 %v2279, %v294
    %v2290 = vmul.f32 %v2282, %v294
    %v2291 = vmul.f32 %v2285, %v294
    %v2292 = vmul.f32 %v2288, %v294
    %v2293 = vmul.f32 %v2269, %v2269
    %v2294 = vmul.f32 %v2270, %v2270
    %v2295 = vmul.f32 %v2271, %v2271
    %v2296 = vmul.f32 %v2272, %v2272
    %v2297 = vsub.f32 %v2289, %v2293
    %v2298 = vsub.f32 %v2290, %v2294
    %v2299 = vsub.f32 %v2291, %v2295
    %v2300 = vsub.f32 %v2292, %v2296
    %v2301 = vsub.f32 %v2253, %v2269
    %v2302 = vsub.f32 %v2254, %v2270
    %v2303 = vsub.f32 %v2255, %v2271
    %v2304 = vsub.f32 %v2256, %v2272
    %v2305 = vadd.f32 %v2297, 1e-05
    %v2306 = vadd.f32 %v2298, 1e-05
    %v2307 = vadd.f32 %v2299, 1e-05
    %v2308 = vadd.f32 %v2300, 1e-05
    %v2309 = vrsqrt.pop %v2305
    %v2310 = vrsqrt.pop %v2306
    %v2311 = vrsqrt.pop %v2307
    %v2312 = vrsqrt.pop %v2308
    %v2313 = vmul.f32 %v2301, %v2309
    %v2314 = vmul.f32 %v2302, %v2310
    %v2315 = vmul.f32 %v2303, %v2311
    %v2316 = vmul.f32 %v2304, %v2312
    %v2317 = vlaneseq
    %v2318 = vshrl.u32 %v2317, 7
    %v2319 = vsub.s32 0, %v2318
    %v2320 = vrot.slane %v2251, %v2319
    %v2321 = vmul.f32 %v2313, %v2320
    %v2322 = vmul.f32 %v2314, %v2320
    %v2323 = vmul.f32 %v2315, %v2320
    %v2324 = vmul.f32 %v2316, %v2320
    %2326 = vrot.lane.b32.xlu0 %v2320, 96
    %v2327 = vpop.permute.xlu0 %2326
    %v2329 = vadd.f32 %v2321, %v2327
    %v2330 = vadd.f32 %v2322, %v2327
    %v2331 = vadd.f32 %v2323, %v2327
    %v2332 = vadd.f32 %v2324, %v2327
    %v2333 = vmul.f32 %v2329, %v275
    %v2334 = vmul.f32 %v2330, %v276
    %v2335 = vmul.f32 %v2331, %v277
    %v2336 = vmul.f32 %v2332, %v278
    %v2337 = vld [vmem:[%s6] sm:$0xff]
    %v2338 = vld [vmem:[%s6 + $0x8] sm:$0xff]
    %v2339 = vld [vmem:[%s6 + $0x10] sm:$0xff]
    %v2340 = vld [vmem:[%s6 + $0x18] sm:$0xff]
    %v2341 = vld [vmem:[%s6 + $0x20] sm:$0xff]
    %v2342 = vld [vmem:[%s6 + $0x28] sm:$0xff]
    %v2343 = vld [vmem:[%s6 + $0x30] sm:$0xff]
    %v2344 = vld [vmem:[%s6 + $0x38] sm:$0xff]
    %v2345 = vld [vmem:[%s6 + $0x40] sm:$0xff]
    %v2346 = vld [vmem:[%s6 + $0x48] sm:$0xff]
    %v2347 = vld [vmem:[%s6 + $0x50] sm:$0xff]
    %v2348 = vld [vmem:[%s6 + $0x58] sm:$0xff]
    %v2349 = vrot.slane %v2333, 7
    %v2350 = vrot.slane %v2334, 7
    %v2351 = vrot.slane %v2335, 7
    %v2352 = vrot.slane %v2336, 7
    %v2353 = vsel %vm68, %v2351, %v2352
    %v2354 = vsel %vm68, %v2350, %v2351
    %v2355 = vsel %vm68, %v2349, %v2350
    %v2356 = vsel %vm68, %v2352, %v2349
    %v2357 = vmul.f32 %v2356, %v74
    %v2358 = vmul.f32 %v2355, %v75
    %v2359 = vmul.f32 %v2354, %v76
    %v2360 = vmul.f32 %v2353, %v77
    %v2361 = vrot.slane %v2333, 1
    %v2362 = vrot.slane %v2334, 1
    %v2363 = vrot.slane %v2335, 1
    %v2364 = vrot.slane %v2336, 1
    %v2365 = vsel %vm86, %v2363, %v2364
    %v2366 = vsel %vm86, %v2362, %v2363
    %v2367 = vsel %vm86, %v2361, %v2362
    %v2368 = vsel %vm86, %v2364, %v2361
    %v2369 = vmul.f32 %v2367, %v92
    %v2370 = vmul.f32 %v2366, %v93
    %v2371 = vmul.f32 %v2365, %v94
    %v2372 = vmul.f32 %v2368, %v95
    %2377 = vrot.lane.b32.xlu0 %v2333, 32
    %v2378 = vpop.permute.xlu0 %2377
    %2379 = vrot.lane.b32.xlu0 %v2334, 32
    %v2380 = vpop.permute.xlu0 %2379
    %2381 = vrot.lane.b32.xlu0 %v2335, 32
    %v2382 = vpop.permute.xlu0 %2381
    %2383 = vrot.lane.b32.xlu0 %v2336, 32
    %v2384 = vpop.permute.xlu0 %2383
    %2393 = vrot.lane.b32.xlu0 %v2369, 64
    %v2394 = vpop.permute.xlu0 %2393
    %2395 = vrot.lane.b32.xlu0 %v2370, 64
    %v2396 = vpop.permute.xlu0 %2395
    %2397 = vrot.lane.b32.xlu0 %v2371, 64
    %v2398 = vpop.permute.xlu0 %2397
    %2399 = vrot.lane.b32.xlu0 %v2372, 64
    %v2400 = vpop.permute.xlu0 %2399
    %v2405 = vsel %vm42, %v2357, %v2378
    %v2406 = vsel %vm42, %v2358, %v2380
    %v2407 = vsel %vm42, %v2359, %v2382
    %v2408 = vsel %vm42, %v2360, %v2384
    %v2409 = vsel %vm431, %v2405, %v2394
    %v2410 = vsel %vm431, %v2406, %v2396
    %v2411 = vsel %vm431, %v2407, %v2398
    %v2412 = vsel %vm431, %v2408, %v2400
    %v2413 = vlaneseq
    %v2414 = vshrl.u32 %v2413, 7
    %v2415 = vsub.s32 0, %v2414
    %v2416 = vrot.slane %v2252, %v2415
    %v2418 = vsel %vm440, %v2409, 0
    %v2421 = vsel %vm440, %v2410, 0
    %v2424 = vsel %vm440, %v2411, 0
    %v2427 = vsel %vm440, %v2412, 0
    %2429 = vmatprep.subr.mxu0 0.0
    %2430 = vmatpush1.msra.mxu0 %v2337
    %2431 = vmatprep.subr.mxu0 0.0
    %2432 = vmatpush1.msra.mxu0 %v2338
    %2433 = vmatprep.subr.mxu0 0.0
    %2434 = vmatpush1.msra.mxu0 %v2339
    %2435 = vmatprep.subr.mxu0 0.0
    %2436 = vmatpush1.msra.mxu0 %v2340
    %2437 = vmatprep.subr.mxu0 0.0
    %2438 = vmatpush1.msra.mxu0 %v2341
    %2439 = vmatprep.subr.mxu0 0.0
    %2440 = vmatpush1.msra.mxu0 %v2342
    %2441 = vmatprep.subr.mxu0 0.0
    %2442 = vmatpush1.msra.mxu0 %v2343
    %2443 = vmatprep.subr.mxu0 0.0
    %2444 = vmatpush1.msra.mxu0 %v2344
    %2445 = vmatprep.subr.mxu0 0.0
    %2446 = vmatpush1.msra.mxu0 %v2345
    %2447 = vmatprep.subr.mxu0 0.0
    %2448 = vmatpush1.msra.mxu0 %v2346
    %2449 = vmatprep.subr.mxu0 0.0
    %2450 = vmatpush1.msra.mxu0 %v2347
    %2451 = vmatprep.subr.mxu0 0.0
    %2452 = vmatpush1.msra.mxu0 %v2348
    %2453 = vmatprep.subr.mxu0 0.0
    %2454 = vmatpush1.msra.mxu0 0.0
    %2455 = vmatprep.subr.mxu0 0.0
    %2456 = vmatpush1.msra.mxu0 0.0
    %2457 = vmatprep.subr.mxu0 0.0
    %2458 = vmatpush1.msra.mxu0 0.0
    %2459 = vmatprep.subr.mxu0 0.0
    %2460 = vmatpush1.msra.mxu0 0.0
    %2461 = vmatprep.subr.mxu0 0.0
    %2462 = vmatpush1.msra.mxu0 0.0
    %2463 = vmatprep.subr.mxu0 0.0
    %2464 = vmatpush1.msra.mxu0 0.0
    %2465 = vmatprep.subr.mxu0 0.0
    %2466 = vmatpush1.msra.mxu0 0.0
    %2467 = vmatprep.subr.mxu0 0.0
    %2468 = vmatpush1.msra.mxu0 0.0
    %2469 = vmatprep.subr.mxu0 0.0
    %2470 = vmatpush1.msra.mxu0 0.0
    %2471 = vmatprep.subr.mxu0 0.0
    %2472 = vmatpush1.msra.mxu0 0.0
    %2473 = vmatprep.subr.mxu0 0.0
    %2474 = vmatpush1.msra.mxu0 0.0
    %2475 = vmatprep.subr.mxu0 0.0
    %2476 = vmatpush1.msra.mxu0 0.0
    %2477 = vmatprep.subr.mxu0 0.0
    %2478 = vmatpush1.msra.mxu0 0.0
    %2479 = vmatprep.subr.mxu0 0.0
    %2480 = vmatpush1.msra.mxu0 0.0
    %2481 = vmatprep.subr.mxu0 0.0
    %2482 = vmatpush1.msra.mxu0 0.0
    %2483 = vmatprep.subr.mxu0 0.0
    %2484 = vmatpush1.msra.mxu0 0.0
    %2485 = vmatprep.subr.mxu0 0.0
    %2486 = vmatpush1.msra.mxu0 0.0
    %2487 = vmatprep.subr.mxu0 0.0
    %2488 = vmatpush1.msra.mxu0 0.0
    %2489 = vmatprep.subr.mxu0 0.0
    %2490 = vmatpush1.msra.mxu0 0.0
    %2491 = vmatprep.subr.mxu0 0.0
    %2492 = vmatpush1.msra.mxu0 0.0
    %2493 = vmatprep.mubr.f32.mxu0 0.0
    %2494 = vmatmul.mubr.f32.gmra.mrb[0].mxu0 %v2418
    %v2495 = vpop.f32.mrb[0].mxu0
    %v2496 = vadd.f32 %v2416, %v2495
    %v2497 = vpop.f32.mrb[0].mxu0
    %2498 = vmatprep.mubr.f32.mxu0 0.0
    %2499 = vmatmul.mubr.f32.gmra.mrb[0].mxu0 %v2421
    %v2500 = vpop.f32.mrb[0].mxu0
    %v2501 = vadd.f32 %v2416, %v2500
    %v2502 = vpop.f32.mrb[0].mxu0
    %2503 = vmatprep.mubr.f32.mxu0 0.0
    %2504 = vmatmul.mubr.f32.gmra.mrb[0].mxu0 %v2424
    %v2505 = vpop.f32.mrb[0].mxu0
    %v2506 = vadd.f32 %v2416, %v2505
    %v2507 = vpop.f32.mrb[0].mxu0
    %2508 = vmatprep.mubr.f32.mxu0 0.0
    %2509 = vmatmul.mubr.f32.gmra.mrb[0].mxu0 %v2427
    %v2510 = vpop.f32.mrb[0].mxu0
    %v2511 = vadd.f32 %v2416, %v2510
    %v2512 = vpop.f32.mrb[0].mxu0
    %2513 = vdwg.mxu0
    %v2514 = vmul.f32 %v2496, %v275
    %v2515 = vmul.f32 %v2501, %v276
    %v2516 = vmul.f32 %v2506, %v277
    %v2517 = vmul.f32 %v2511, %v278
    %2518 = vst.msk [vmem:[#allocation2] sm:$0xff] %vm132, %v2514
    %2519 = vst.msk [vmem:[#allocation2 + $0x8] sm:$0xff] %vm132, %v2515
    %2520 = vst.msk [vmem:[#allocation2 + $0x10] sm:$0xff] %vm132, %v2516
    %2521 = vst.msk [vmem:[#allocation2 + $0x18] sm:$0xff] %vm132, %v2517
    // Predicated region
    $region34: #{conditional_conv_blocks.1} parent=1 // pred_check
      _
    $region35: #{conditional_conv_blocks.1} parent=1 // pred_check_branch
      %2523 = sbr.rel (0) target = $region37
    $region36: #{conditional_conv_blocks.1} parent=1 // pred_region
      %s2525 = ssub.s32 512, 512
      %2526 = vsyncadd [#allocation3], %s2525
      %s2527 = sshll.u32 [#allocation2], 4
      %s2528 = int_to_ptr.vmem [resolvable:$true] %s2527
      %2533 = dma.vmem_to_hbm [thread:$0]  %s2528, 512, %s8, [#allocation3], 128, 128, 8
    $region37: #{conditional_conv_blocks.1} parent=1 // pred_fallthru
      _
    // Predicated region
    $region38: #{conditional_conv_blocks.1} parent=1 // pred_check
      _
    $region39: #{conditional_conv_blocks.1} parent=1 // pred_check_branch
      %2535 = sbr.rel (0) target = $region41
    $region40: #{conditional_conv_blocks.1} parent=1 // pred_region
      %2536 = dma.done [#allocation3], 512
    $region41: #{conditional_conv_blocks.1} parent=1 // pred_fallthru
      _
    %2537 = vsyncpa [#allocation3], 1

</llo_original>
